<compile_context>
chip_gen: v7x
topology: tpu7x:2x2x1
jax: 0.10.0
libtpu: 0.0.40
codegen_flags: <defaults>
</compile_context>

<pallas_src>
import jax
import jax.numpy as jnp
from jax import lax
from jax.experimental import pallas as pl
from jax.experimental.pallas import tpu as pltpu

LANE = 128


def _full_spec(shape):
    nd = len(shape)
    return pl.BlockSpec(shape, lambda *_: (0,) * nd)


def _round_up(n, m):
    return ((n + m - 1) // m) * m


# ------------------------- weight layout (padding) helpers --------------------

def _pad_cols(w, c_pad):
    c = w.shape[-1]
    if c == c_pad:
        return w
    return jnp.pad(w, [(0, 0)] * (w.ndim - 1) + [(0, c_pad - c)])


def _pad_rows(w, r_pad):
    r = w.shape[0]
    if r == r_pad:
        return w
    return jnp.pad(w, [(0, r_pad - r)] + [(0, 0)] * (w.ndim - 1))


def _pad_gate_cols(w, hidden, hp):
    """(d, 4*hidden) with gate blocks [i|f|g|o] -> (d, 4*hp); each gate block is
    placed at a lane-aligned offset k*hp, remaining columns are zero."""
    out = jnp.zeros((w.shape[0], 4 * hp), w.dtype)
    for k in range(4):
        out = out.at[:, k * hp:k * hp + hidden].set(w[:, k * hidden:(k + 1) * hidden])
    return out


# ------------------------------- fused kernel ---------------------------------

def make_fused_kernel(num_layers, Tp1, B, Hp, store_plan):
    def kernel(*refs):
        x_ref, ew_ref, eb_ref, gamma_ref, beta_ref, emb_ref = refs[:6]
        pos = 6
        layers = []
        for _ in range(num_layers):
            layers.append(tuple(refs[pos:pos + 3]))
            pos += 3
        lw_ref, lb_ref = refs[pos], refs[pos + 1]
        out_ref = refs[pos + 2]
        x0_sc, h_sc = refs[pos + 3], refs[pos + 4]

        # ---- encoder head: Linear + BatchNorm1d (training-mode batch stats) ----
        feat = jnp.dot(x_ref[...], ew_ref[...],
                       preferred_element_type=jnp.float32) + eb_ref[...]
        mean = jnp.mean(feat, axis=0, keepdims=True)
        var = jnp.mean((feat - mean) ** 2, axis=0, keepdims=True)
        feats = (feat - mean) * lax.rsqrt(var + 1e-5) * gamma_ref[...] + beta_ref[...]

        # ---- build time-major ((T+1)*B, Ep) sequence fully in VMEM -------------
        # row block 0 = encoder features, rows B.. = embeddings (already time-major)
        x0_sc[pl.ds(0, B), :] = feats
        x0_sc[pl.ds(B, (Tp1 - 1) * B), :] = emb_ref[...]

        x_in = x0_sc[...]                                   # ((T+1)*B, Ep)
        for (wih_ref, whh_ref, b_ref) in layers:
            # hoisted input projection: one matmul for all timesteps (+ bias)
            gates_x = jnp.dot(x_in, wih_ref[...],
                              preferred_element_type=jnp.float32) + b_ref[...]
            whh = whh_ref[...]
            h = jnp.zeros((B, Hp), jnp.float32)
            c = jnp.zeros((B, Hp), jnp.float32)
            for t in range(Tp1):                            # fully unrolled (static)
                g = gates_x[t * B:(t + 1) * B, :] + jnp.dot(
                    h, whh, preferred_element_type=jnp.float32)
                # gate blocks are 128-lane aligned full-vreg slices (i, f, g, o)
                i_g = jax.nn.sigmoid(g[:, 0 * Hp:1 * Hp])
                f_g = jax.nn.sigmoid(g[:, 1 * Hp:2 * Hp])
                g_g = jnp.tanh(g[:, 2 * Hp:3 * Hp])
                o_g = jax.nn.sigmoid(g[:, 3 * Hp:4 * Hp])
                c = f_g * c + i_g * g_g
                h = o_g * jnp.tanh(c)
                h_sc[pl.ds(t * B, B), :] = h                # lane-dense (Hp=128) store
            x_in = h_sc[...]                                # next layer's input

        # ---- vocab projection + packed-sequence-order writeback ----------------
        logits = jnp.dot(x_in, lw_ref[...],
                         preferred_element_type=jnp.float32) + lb_ref[...]
        for (src, dst, n) in store_plan:                    # statically coalesced
            out_ref[pl.ds(dst, n), :] = logits[src:src + n, :]

    return kernel


# ------------------------------- forward wrapper -------------------------------

def resnet_lstm_forward(params, images, captions, lengths):
    # lengths must be a static Python list, sorted descending (pack_padded_sequence).
    lengths = [int(l) for l in lengths]
    assert all(lengths[i] >= lengths[i + 1] for i in range(len(lengths) - 1))

    B = images.shape[0]
    T = captions.shape[1]
    Tp1 = T + 1
    H = params['hidden_size']
    E = params['embed'].shape[1]
    V = params['lin_w'].shape[1]
    Hp = _round_up(H, LANE)                  # hidden padded to full lane width
    Ep = _round_up(E, LANE)                  # embed padded to full lane width

    x_img = images.reshape(B, -1).astype(jnp.float32)
    # embedding lookup (gather glue op), built time-major directly -> (T*B, Ep)
    emb_flat = jnp.take(params['embed'], captions.T, axis=0).reshape(T * B, E)
    emb_flat = _pad_cols(emb_flat, Ep)

    # Encoder head padded along the embed axis (padded columns stay exactly zero
    # through Linear + BN since gamma_pad/beta_pad columns are zero).
    enc_w = _pad_cols(params['enc_w'], Ep)
    enc_b = _pad_cols(params['enc_b'], Ep)
    enc_gamma = _pad_cols(params['enc_gamma'], Ep)
    enc_beta = _pad_cols(params['enc_beta'], Ep)

    # Pad LSTM / output-linear weights so every gate block is a 128-lane slice and
    # the recurrent state is lane-dense; padded lanes remain exactly zero.
    lstm_padded = []
    for li, (wih_t, whh_t, bias) in enumerate(params['lstm']):
        d_in_pad = Ep if li == 0 else Hp
        wih_p = _pad_rows(_pad_gate_cols(wih_t, H, Hp), d_in_pad)
        whh_p = _pad_rows(_pad_gate_cols(whh_t, H, Hp), Hp)
        b_p = _pad_gate_cols(bias, H, Hp)
        lstm_padded.append((wih_p, whh_p, b_p))
    lin_w_p = _pad_rows(params['lin_w'], Hp)

    batch_sizes = [sum(1 for L in lengths if L > t) for t in range(Tp1)]
    S = sum(lengths)

    # Static store plan for pack_padded_sequence order: (src_row, dst_row, n_rows);
    # contiguous runs (all sequences still active) coalesce into a single store.
    store_plan = []
    dst = 0
    for t in range(Tp1):
        bt = batch_sizes[t]
        if bt == 0:
            continue
        src = t * B
        if store_plan and store_plan[-1][0] + store_plan[-1][2] == src:
            s0, d0, n0 = store_plan[-1]
            store_plan[-1] = (s0, d0, n0 + bt)
        else:
            store_plan.append((src, dst, bt))
        dst += bt

    inputs = [x_img, enc_w, enc_b, enc_gamma, enc_beta, emb_flat]
    for (wih_p, whh_p, b_p) in lstm_padded:
        inputs += [wih_p, whh_p, b_p]
    inputs += [lin_w_p, params['lin_b']]

    kernel = make_fused_kernel(len(lstm_padded), Tp1, B, Hp, store_plan)

    return pl.pallas_call(
        kernel,
        out_shape=jax.ShapeDtypeStruct((S, V), jnp.float32),
        in_specs=[_full_spec(a.shape) for a in inputs],
        out_specs=_full_spec((S, V)),
        scratch_shapes=[pltpu.VMEM((Tp1 * B, Ep), jnp.float32),   # time-major input seq
                        pltpu.VMEM((Tp1 * B, Hp), jnp.float32)],  # per-layer hiddens
    )(*inputs)


# ---------------------------------- params -------------------------------------

def init_params(key, embed_size, vocab_size, hidden_size, num_layers, feat_dim):
    ks = list(jax.random.split(key, 8 + num_layers))

    def nrm(k, shape, scale=0.05):
        return scale * jax.random.normal(k, shape, dtype=jnp.float32)

    params = {}
    # encoder.linear (feat_dim -> embed) + encoder.bn (BatchNorm1d(embed))
    params['enc_w'] = nrm(ks[0], (feat_dim, embed_size))
    params['enc_b'] = nrm(ks[1], (1, embed_size))
    params['enc_gamma'] = jnp.ones((1, embed_size), jnp.float32)
    params['enc_beta'] = jnp.zeros((1, embed_size), jnp.float32)
    # decoder.embed
    params['embed'] = nrm(ks[2], (vocab_size, embed_size))
    # decoder.lstm (per layer: W_ih^T, W_hh^T, b_ih + b_hh), gate order i,f,g,o
    lstm = []
    for layer in range(num_layers):
        in_dim = embed_size if layer == 0 else hidden_size
        kk = jax.random.split(ks[3 + layer], 4)
        wih_t = nrm(kk[0], (in_dim, 4 * hidden_size))
        whh_t = nrm(kk[1], (hidden_size, 4 * hidden_size))
        bias = nrm(kk[2], (1, 4 * hidden_size)) + nrm(kk[3], (1, 4 * hidden_size))
        lstm.append((wih_t, whh_t, bias))
    params['lstm'] = lstm
    # decoder.linear (hidden -> vocab)
    params['lin_w'] = nrm(ks[3 + num_layers], (hidden_size, vocab_size))
    params['lin_b'] = nrm(ks[4 + num_layers], (1, vocab_size))
    params['hidden_size'] = hidden_size
    return params


# ----------------------------------- main ---------------------------------------

if __name__ == "__main__":
    B, C, Himg, Wimg = 2, 4, 16, 16
    T = 7                                   # caption length -> LSTM seq len = T+1 = 8
    embed_size, hidden_size, vocab_size, num_layers = 32, 32, 128, 2

    key = jax.random.PRNGKey(0)
    k_img, k_cap, k_par = jax.random.split(key, 3)
    images = jax.random.normal(k_img, (B, C, Himg, Wimg), dtype=jnp.float32)
    captions = jax.random.randint(k_cap, (B, T), 0, vocab_size, dtype=jnp.int32)
    lengths = [8, 6]                        # sorted descending (pack_padded_sequence)

    params = init_params(k_par, embed_size, vocab_size, hidden_size, num_layers,
                         feat_dim=C * Himg * Wimg)

    out = resnet_lstm_forward(params, images, captions, lengths)
    out = jax.block_until_ready(out)
    assert out.shape == (sum(lengths), vocab_size), out.shape
    assert bool(jnp.all(jnp.isfinite(out)))
    print("KERNEL_OK")
</pallas_src>

<mosaic_0001>
module attributes {stable_mosaic.version = 11 : i64} {
  func.func @kernel(%arg0: memref<2x1024xf32, #tpu.memory_space<vmem>>, %arg1: memref<1024x128xf32, #tpu.memory_space<vmem>>, %arg2: memref<1x128xf32, #tpu.memory_space<vmem>>, %arg3: memref<1x128xf32, #tpu.memory_space<vmem>>, %arg4: memref<1x128xf32, #tpu.memory_space<vmem>>, %arg5: memref<14x128xf32, #tpu.memory_space<vmem>>, %arg6: memref<128x512xf32, #tpu.memory_space<vmem>>, %arg7: memref<128x512xf32, #tpu.memory_space<vmem>>, %arg8: memref<1x512xf32, #tpu.memory_space<vmem>>, %arg9: memref<128x512xf32, #tpu.memory_space<vmem>>, %arg10: memref<128x512xf32, #tpu.memory_space<vmem>>, %arg11: memref<1x512xf32, #tpu.memory_space<vmem>>, %arg12: memref<128x128xf32, #tpu.memory_space<vmem>>, %arg13: memref<1x128xf32, #tpu.memory_space<vmem>>, %arg14: memref<14x128xf32, #tpu.memory_space<vmem>>, %arg15: memref<16x128xf32, #tpu.memory_space<vmem>>, %arg16: memref<16x128xf32, #tpu.memory_space<vmem>>) attributes {dimension_semantics = [], scalar_prefetch = 0 : i64, scratch_operands = 2 : i64, tpu.core_type = #tpu.core_type<tc>} {
    %c0 = arith.constant 0 : index
    %c0_0 = arith.constant 0 : index
    %0 = vector.load %arg0[%c0, %c0_0] : memref<2x1024xf32, #tpu.memory_space<vmem>>, vector<2x1024xf32>
    %c0_1 = arith.constant 0 : index
    %c0_2 = arith.constant 0 : index
    %1 = vector.load %arg1[%c0_1, %c0_2] : memref<1024x128xf32, #tpu.memory_space<vmem>>, vector<1024x128xf32>
    %cst = arith.constant dense<0.000000e+00> : vector<2x128xf32>
    %2 = tpu.matmul %0, %1, %cst {dimension_numbers = #tpu.dot_dimension_numbers<[1], [0], [0], [1], [0, 0, 1, 1], [], []>} : vector<2x1024xf32>, vector<1024x128xf32>, vector<2x128xf32> -> vector<2x128xf32>
    %c0_3 = arith.constant 0 : index
    %c0_4 = arith.constant 0 : index
    %3 = vector.load %arg2[%c0_3, %c0_4] : memref<1x128xf32, #tpu.memory_space<vmem>>, vector<1x128xf32>
    %4 = vector.broadcast %3 : vector<1x128xf32> to vector<2x128xf32>
    %5 = arith.addf %2, %4 : vector<2x128xf32>
    %cst_5 = arith.constant dense<0.000000e+00> : vector<128xf32>
    %6 = vector.multi_reduction <add>, %5, %cst_5 [0] : vector<2x128xf32> to vector<128xf32>
    %7 = vector.shape_cast %6 : vector<128xf32> to vector<1x128xf32>
    %cst_6 = arith.constant 2.000000e+00 : f32
    %8 = vector.broadcast %cst_6 : f32 to vector<1x128xf32>
    %9 = arith.divf %7, %8 : vector<1x128xf32>
    %10 = vector.broadcast %9 : vector<1x128xf32> to vector<2x128xf32>
    %11 = arith.subf %5, %10 : vector<2x128xf32>
    %12 = arith.mulf %11, %11 : vector<2x128xf32>
    %cst_7 = arith.constant dense<0.000000e+00> : vector<128xf32>
    %13 = vector.multi_reduction <add>, %12, %cst_7 [0] : vector<2x128xf32> to vector<128xf32>
    %14 = vector.shape_cast %13 : vector<128xf32> to vector<1x128xf32>
    %cst_8 = arith.constant 2.000000e+00 : f32
    %15 = vector.broadcast %cst_8 : f32 to vector<1x128xf32>
    %16 = arith.divf %14, %15 : vector<1x128xf32>
    %17 = vector.broadcast %9 : vector<1x128xf32> to vector<2x128xf32>
    %18 = arith.subf %5, %17 : vector<2x128xf32>
    %cst_9 = arith.constant 9.99999974E-6 : f32
    %19 = vector.broadcast %cst_9 : f32 to vector<1x128xf32>
    %20 = arith.addf %16, %19 : vector<1x128xf32>
    %21 = math.rsqrt %20 : vector<1x128xf32>
    %22 = vector.broadcast %21 : vector<1x128xf32> to vector<2x128xf32>
    %23 = arith.mulf %18, %22 : vector<2x128xf32>
    %c0_10 = arith.constant 0 : index
    %c0_11 = arith.constant 0 : index
    %24 = vector.load %arg3[%c0_10, %c0_11] : memref<1x128xf32, #tpu.memory_space<vmem>>, vector<1x128xf32>
    %25 = vector.broadcast %24 : vector<1x128xf32> to vector<2x128xf32>
    %26 = arith.mulf %23, %25 : vector<2x128xf32>
    %c0_12 = arith.constant 0 : index
    %c0_13 = arith.constant 0 : index
    %27 = vector.load %arg4[%c0_12, %c0_13] : memref<1x128xf32, #tpu.memory_space<vmem>>, vector<1x128xf32>
    %28 = vector.broadcast %27 : vector<1x128xf32> to vector<2x128xf32>
    %29 = arith.addf %26, %28 : vector<2x128xf32>
    %c0_14 = arith.constant 0 : index
    %c0_15 = arith.constant 0 : index
    %30 = vector.load %arg15[%c0_14, %c0_15] : memref<16x128xf32, #tpu.memory_space<vmem>>, vector<2x128xf32>
    tpu.vector_store %arg15[%c0_14, %c0_15], %29 {strides = array<i32>} : memref<16x128xf32, #tpu.memory_space<vmem>>, vector<2x128xf32>,
    %c0_16 = arith.constant 0 : index
    %c0_17 = arith.constant 0 : index
    %31 = vector.load %arg5[%c0_16, %c0_17] : memref<14x128xf32, #tpu.memory_space<vmem>>, vector<14x128xf32>
    %c2 = arith.constant 2 : index
    %c0_18 = arith.constant 0 : index
    %32 = vector.load %arg15[%c2, %c0_18] : memref<16x128xf32, #tpu.memory_space<vmem>>, vector<14x128xf32>
    tpu.vector_store %arg15[%c2, %c0_18], %31 {strides = array<i32>} : memref<16x128xf32, #tpu.memory_space<vmem>>, vector<14x128xf32>,
    %c0_19 = arith.constant 0 : index
    %c0_20 = arith.constant 0 : index
    %33 = vector.load %arg15[%c0_19, %c0_20] : memref<16x128xf32, #tpu.memory_space<vmem>>, vector<16x128xf32>
    %c0_21 = arith.constant 0 : index
    %c0_22 = arith.constant 0 : index
    %34 = vector.load %arg6[%c0_21, %c0_22] : memref<128x512xf32, #tpu.memory_space<vmem>>, vector<128x512xf32>
    %cst_23 = arith.constant dense<0.000000e+00> : vector<16x512xf32>
    %35 = tpu.matmul %33, %34, %cst_23 {dimension_numbers = #tpu.dot_dimension_numbers<[1], [0], [0], [1], [0, 0, 1, 1], [], []>} : vector<16x128xf32>, vector<128x512xf32>, vector<16x512xf32> -> vector<16x512xf32>
    %c0_24 = arith.constant 0 : index
    %c0_25 = arith.constant 0 : index
    %36 = vector.load %arg8[%c0_24, %c0_25] : memref<1x512xf32, #tpu.memory_space<vmem>>, vector<1x512xf32>
    %37 = vector.broadcast %36 : vector<1x512xf32> to vector<16x512xf32>
    %38 = arith.addf %35, %37 : vector<16x512xf32>
    %c0_26 = arith.constant 0 : index
    %c0_27 = arith.constant 0 : index
    %39 = vector.load %arg7[%c0_26, %c0_27] : memref<128x512xf32, #tpu.memory_space<vmem>>, vector<128x512xf32>
    %cst_28 = arith.constant 0.000000e+00 : f32
    %40 = vector.broadcast %cst_28 : f32 to vector<2x128xf32>
    %cst_29 = arith.constant 0.000000e+00 : f32
    %41 = vector.broadcast %cst_29 : f32 to vector<2x128xf32>
    %42 = vector.extract_strided_slice %38 {offsets = [0, 0], sizes = [2, 512], strides = [1, 1]} : vector<16x512xf32> to vector<2x512xf32>
    %cst_30 = arith.constant dense<0.000000e+00> : vector<2x512xf32>
    %43 = tpu.matmul %40, %39, %cst_30 {dimension_numbers = #tpu.dot_dimension_numbers<[1], [0], [0], [1], [0, 0, 1, 1], [], []>} : vector<2x128xf32>, vector<128x512xf32>, vector<2x512xf32> -> vector<2x512xf32>
    %44 = arith.addf %42, %43 : vector<2x512xf32>
    %45 = vector.extract_strided_slice %44 {offsets = [0, 0], sizes = [2, 128], strides = [1, 1]} : vector<2x512xf32> to vector<2x128xf32>
    %46 = arith.negf %45 : vector<2x128xf32>
    %47 = math.exp %46 : vector<2x128xf32>
    %cst_31 = arith.constant 1.000000e+00 : f32
    %48 = vector.broadcast %cst_31 : f32 to vector<2x128xf32>
    %49 = arith.addf %48, %47 : vector<2x128xf32>
    %50 = arith.divf %48, %49 : vector<2x128xf32>
    %51 = vector.extract_strided_slice %44 {offsets = [0, 128], sizes = [2, 128], strides = [1, 1]} : vector<2x512xf32> to vector<2x128xf32>
    %52 = arith.negf %51 : vector<2x128xf32>
    %53 = math.exp %52 : vector<2x128xf32>
    %cst_32 = arith.constant 1.000000e+00 : f32
    %54 = vector.broadcast %cst_32 : f32 to vector<2x128xf32>
    %55 = arith.addf %54, %53 : vector<2x128xf32>
    %56 = arith.divf %54, %55 : vector<2x128xf32>
    %57 = vector.extract_strided_slice %44 {offsets = [0, 256], sizes = [2, 128], strides = [1, 1]} : vector<2x512xf32> to vector<2x128xf32>
    %58 = math.tanh %57 : vector<2x128xf32>
    %59 = vector.extract_strided_slice %44 {offsets = [0, 384], sizes = [2, 128], strides = [1, 1]} : vector<2x512xf32> to vector<2x128xf32>
    %60 = arith.negf %59 : vector<2x128xf32>
    %61 = math.exp %60 : vector<2x128xf32>
    %cst_33 = arith.constant 1.000000e+00 : f32
    %62 = vector.broadcast %cst_33 : f32 to vector<2x128xf32>
    %63 = arith.addf %62, %61 : vector<2x128xf32>
    %64 = arith.divf %62, %63 : vector<2x128xf32>
    %65 = arith.mulf %56, %41 : vector<2x128xf32>
    %66 = arith.mulf %50, %58 : vector<2x128xf32>
    %67 = arith.addf %65, %66 : vector<2x128xf32>
    %68 = math.tanh %67 : vector<2x128xf32>
    %69 = arith.mulf %64, %68 : vector<2x128xf32>
    %c0_34 = arith.constant 0 : index
    %c0_35 = arith.constant 0 : index
    %70 = vector.load %arg16[%c0_34, %c0_35] : memref<16x128xf32, #tpu.memory_space<vmem>>, vector<2x128xf32>
    tpu.vector_store %arg16[%c0_34, %c0_35], %69 {strides = array<i32>} : memref<16x128xf32, #tpu.memory_space<vmem>>, vector<2x128xf32>,
    %71 = vector.extract_strided_slice %38 {offsets = [2, 0], sizes = [2, 512], strides = [1, 1]} : vector<16x512xf32> to vector<2x512xf32>
    %cst_36 = arith.constant dense<0.000000e+00> : vector<2x512xf32>
    %72 = tpu.matmul %69, %39, %cst_36 {dimension_numbers = #tpu.dot_dimension_numbers<[1], [0], [0], [1], [0, 0, 1, 1], [], []>} : vector<2x128xf32>, vector<128x512xf32>, vector<2x512xf32> -> vector<2x512xf32>
    %73 = arith.addf %71, %72 : vector<2x512xf32>
    %74 = vector.extract_strided_slice %73 {offsets = [0, 0], sizes = [2, 128], strides = [1, 1]} : vector<2x512xf32> to vector<2x128xf32>
    %75 = arith.negf %74 : vector<2x128xf32>
    %76 = math.exp %75 : vector<2x128xf32>
    %cst_37 = arith.constant 1.000000e+00 : f32
    %77 = vector.broadcast %cst_37 : f32 to vector<2x128xf32>
    %78 = arith.addf %77, %76 : vector<2x128xf32>
    %79 = arith.divf %77, %78 : vector<2x128xf32>
    %80 = vector.extract_strided_slice %73 {offsets = [0, 128], sizes = [2, 128], strides = [1, 1]} : vector<2x512xf32> to vector<2x128xf32>
    %81 = arith.negf %80 : vector<2x128xf32>
    %82 = math.exp %81 : vector<2x128xf32>
    %cst_38 = arith.constant 1.000000e+00 : f32
    %83 = vector.broadcast %cst_38 : f32 to vector<2x128xf32>
    %84 = arith.addf %83, %82 : vector<2x128xf32>
    %85 = arith.divf %83, %84 : vector<2x128xf32>
    %86 = vector.extract_strided_slice %73 {offsets = [0, 256], sizes = [2, 128], strides = [1, 1]} : vector<2x512xf32> to vector<2x128xf32>
    %87 = math.tanh %86 : vector<2x128xf32>
    %88 = vector.extract_strided_slice %73 {offsets = [0, 384], sizes = [2, 128], strides = [1, 1]} : vector<2x512xf32> to vector<2x128xf32>
    %89 = arith.negf %88 : vector<2x128xf32>
    %90 = math.exp %89 : vector<2x128xf32>
    %cst_39 = arith.constant 1.000000e+00 : f32
    %91 = vector.broadcast %cst_39 : f32 to vector<2x128xf32>
    %92 = arith.addf %91, %90 : vector<2x128xf32>
    %93 = arith.divf %91, %92 : vector<2x128xf32>
    %94 = arith.mulf %85, %67 : vector<2x128xf32>
    %95 = arith.mulf %79, %87 : vector<2x128xf32>
    %96 = arith.addf %94, %95 : vector<2x128xf32>
    %97 = math.tanh %96 : vector<2x128xf32>
    %98 = arith.mulf %93, %97 : vector<2x128xf32>
    %c2_40 = arith.constant 2 : index
    %c0_41 = arith.constant 0 : index
    %99 = vector.load %arg16[%c2_40, %c0_41] : memref<16x128xf32, #tpu.memory_space<vmem>>, vector<2x128xf32>
    tpu.vector_store %arg16[%c2_40, %c0_41], %98 {strides = array<i32>} : memref<16x128xf32, #tpu.memory_space<vmem>>, vector<2x128xf32>,
    %100 = vector.extract_strided_slice %38 {offsets = [4, 0], sizes = [2, 512], strides = [1, 1]} : vector<16x512xf32> to vector<2x512xf32>
    %cst_42 = arith.constant dense<0.000000e+00> : vector<2x512xf32>
    %101 = tpu.matmul %98, %39, %cst_42 {dimension_numbers = #tpu.dot_dimension_numbers<[1], [0], [0], [1], [0, 0, 1, 1], [], []>} : vector<2x128xf32>, vector<128x512xf32>, vector<2x512xf32> -> vector<2x512xf32>
    %102 = arith.addf %100, %101 : vector<2x512xf32>
    %103 = vector.extract_strided_slice %102 {offsets = [0, 0], sizes = [2, 128], strides = [1, 1]} : vector<2x512xf32> to vector<2x128xf32>
    %104 = arith.negf %103 : vector<2x128xf32>
    %105 = math.exp %104 : vector<2x128xf32>
    %cst_43 = arith.constant 1.000000e+00 : f32
    %106 = vector.broadcast %cst_43 : f32 to vector<2x128xf32>
    %107 = arith.addf %106, %105 : vector<2x128xf32>
    %108 = arith.divf %106, %107 : vector<2x128xf32>
    %109 = vector.extract_strided_slice %102 {offsets = [0, 128], sizes = [2, 128], strides = [1, 1]} : vector<2x512xf32> to vector<2x128xf32>
    %110 = arith.negf %109 : vector<2x128xf32>
    %111 = math.exp %110 : vector<2x128xf32>
    %cst_44 = arith.constant 1.000000e+00 : f32
    %112 = vector.broadcast %cst_44 : f32 to vector<2x128xf32>
    %113 = arith.addf %112, %111 : vector<2x128xf32>
    %114 = arith.divf %112, %113 : vector<2x128xf32>
    %115 = vector.extract_strided_slice %102 {offsets = [0, 256], sizes = [2, 128], strides = [1, 1]} : vector<2x512xf32> to vector<2x128xf32>
    %116 = math.tanh %115 : vector<2x128xf32>
    %117 = vector.extract_strided_slice %102 {offsets = [0, 384], sizes = [2, 128], strides = [1, 1]} : vector<2x512xf32> to vector<2x128xf32>
    %118 = arith.negf %117 : vector<2x128xf32>
    %119 = math.exp %118 : vector<2x128xf32>
    %cst_45 = arith.constant 1.000000e+00 : f32
    %120 = vector.broadcast %cst_45 : f32 to vector<2x128xf32>
    %121 = arith.addf %120, %119 : vector<2x128xf32>
    %122 = arith.divf %120, %121 : vector<2x128xf32>
    %123 = arith.mulf %114, %96 : vector<2x128xf32>
    %124 = arith.mulf %108, %116 : vector<2x128xf32>
    %125 = arith.addf %123, %124 : vector<2x128xf32>
    %126 = math.tanh %125 : vector<2x128xf32>
    %127 = arith.mulf %122, %126 : vector<2x128xf32>
    %c4 = arith.constant 4 : index
    %c0_46 = arith.constant 0 : index
    %128 = vector.load %arg16[%c4, %c0_46] : memref<16x128xf32, #tpu.memory_space<vmem>>, vector<2x128xf32>
    tpu.vector_store %arg16[%c4, %c0_46], %127 {strides = array<i32>} : memref<16x128xf32, #tpu.memory_space<vmem>>, vector<2x128xf32>,
    %129 = vector.extract_strided_slice %38 {offsets = [6, 0], sizes = [2, 512], strides = [1, 1]} : vector<16x512xf32> to vector<2x512xf32>
    %cst_47 = arith.constant dense<0.000000e+00> : vector<2x512xf32>
    %130 = tpu.matmul %127, %39, %cst_47 {dimension_numbers = #tpu.dot_dimension_numbers<[1], [0], [0], [1], [0, 0, 1, 1], [], []>} : vector<2x128xf32>, vector<128x512xf32>, vector<2x512xf32> -> vector<2x512xf32>
    %131 = arith.addf %129, %130 : vector<2x512xf32>
    %132 = vector.extract_strided_slice %131 {offsets = [0, 0], sizes = [2, 128], strides = [1, 1]} : vector<2x512xf32> to vector<2x128xf32>
    %133 = arith.negf %132 : vector<2x128xf32>
    %134 = math.exp %133 : vector<2x128xf32>
    %cst_48 = arith.constant 1.000000e+00 : f32
    %135 = vector.broadcast %cst_48 : f32 to vector<2x128xf32>
    %136 = arith.addf %135, %134 : vector<2x128xf32>
    %137 = arith.divf %135, %136 : vector<2x128xf32>
    %138 = vector.extract_strided_slice %131 {offsets = [0, 128], sizes = [2, 128], strides = [1, 1]} : vector<2x512xf32> to vector<2x128xf32>
    %139 = arith.negf %138 : vector<2x128xf32>
    %140 = math.exp %139 : vector<2x128xf32>
    %cst_49 = arith.constant 1.000000e+00 : f32
    %141 = vector.broadcast %cst_49 : f32 to vector<2x128xf32>
    %142 = arith.addf %141, %140 : vector<2x128xf32>
    %143 = arith.divf %141, %142 : vector<2x128xf32>
    %144 = vector.extract_strided_slice %131 {offsets = [0, 256], sizes = [2, 128], strides = [1, 1]} : vector<2x512xf32> to vector<2x128xf32>
    %145 = math.tanh %144 : vector<2x128xf32>
    %146 = vector.extract_strided_slice %131 {offsets = [0, 384], sizes = [2, 128], strides = [1, 1]} : vector<2x512xf32> to vector<2x128xf32>
    %147 = arith.negf %146 : vector<2x128xf32>
    %148 = math.exp %147 : vector<2x128xf32>
    %cst_50 = arith.constant 1.000000e+00 : f32
    %149 = vector.broadcast %cst_50 : f32 to vector<2x128xf32>
    %150 = arith.addf %149, %148 : vector<2x128xf32>
    %151 = arith.divf %149, %150 : vector<2x128xf32>
    %152 = arith.mulf %143, %125 : vector<2x128xf32>
    %153 = arith.mulf %137, %145 : vector<2x128xf32>
    %154 = arith.addf %152, %153 : vector<2x128xf32>
    %155 = math.tanh %154 : vector<2x128xf32>
    %156 = arith.mulf %151, %155 : vector<2x128xf32>
    %c6 = arith.constant 6 : index
    %c0_51 = arith.constant 0 : index
    %157 = vector.load %arg16[%c6, %c0_51] : memref<16x128xf32, #tpu.memory_space<vmem>>, vector<2x128xf32>
    tpu.vector_store %arg16[%c6, %c0_51], %156 {strides = array<i32>} : memref<16x128xf32, #tpu.memory_space<vmem>>, vector<2x128xf32>,
    %158 = vector.extract_strided_slice %38 {offsets = [8, 0], sizes = [2, 512], strides = [1, 1]} : vector<16x512xf32> to vector<2x512xf32>
    %cst_52 = arith.constant dense<0.000000e+00> : vector<2x512xf32>
    %159 = tpu.matmul %156, %39, %cst_52 {dimension_numbers = #tpu.dot_dimension_numbers<[1], [0], [0], [1], [0, 0, 1, 1], [], []>} : vector<2x128xf32>, vector<128x512xf32>, vector<2x512xf32> -> vector<2x512xf32>
    %160 = arith.addf %158, %159 : vector<2x512xf32>
    %161 = vector.extract_strided_slice %160 {offsets = [0, 0], sizes = [2, 128], strides = [1, 1]} : vector<2x512xf32> to vector<2x128xf32>
    %162 = arith.negf %161 : vector<2x128xf32>
    %163 = math.exp %162 : vector<2x128xf32>
    %cst_53 = arith.constant 1.000000e+00 : f32
    %164 = vector.broadcast %cst_53 : f32 to vector<2x128xf32>
    %165 = arith.addf %164, %163 : vector<2x128xf32>
    %166 = arith.divf %164, %165 : vector<2x128xf32>
    %167 = vector.extract_strided_slice %160 {offsets = [0, 128], sizes = [2, 128], strides = [1, 1]} : vector<2x512xf32> to vector<2x128xf32>
    %168 = arith.negf %167 : vector<2x128xf32>
    %169 = math.exp %168 : vector<2x128xf32>
    %cst_54 = arith.constant 1.000000e+00 : f32
    %170 = vector.broadcast %cst_54 : f32 to vector<2x128xf32>
    %171 = arith.addf %170, %169 : vector<2x128xf32>
    %172 = arith.divf %170, %171 : vector<2x128xf32>
    %173 = vector.extract_strided_slice %160 {offsets = [0, 256], sizes = [2, 128], strides = [1, 1]} : vector<2x512xf32> to vector<2x128xf32>
    %174 = math.tanh %173 : vector<2x128xf32>
    %175 = vector.extract_strided_slice %160 {offsets = [0, 384], sizes = [2, 128], strides = [1, 1]} : vector<2x512xf32> to vector<2x128xf32>
    %176 = arith.negf %175 : vector<2x128xf32>
    %177 = math.exp %176 : vector<2x128xf32>
    %cst_55 = arith.constant 1.000000e+00 : f32
    %178 = vector.broadcast %cst_55 : f32 to vector<2x128xf32>
    %179 = arith.addf %178, %177 : vector<2x128xf32>
    %180 = arith.divf %178, %179 : vector<2x128xf32>
    %181 = arith.mulf %172, %154 : vector<2x128xf32>
    %182 = arith.mulf %166, %174 : vector<2x128xf32>
    %183 = arith.addf %181, %182 : vector<2x128xf32>
    %184 = math.tanh %183 : vector<2x128xf32>
    %185 = arith.mulf %180, %184 : vector<2x128xf32>
    %c8 = arith.constant 8 : index
    %c0_56 = arith.constant 0 : index
    %186 = vector.load %arg16[%c8, %c0_56] : memref<16x128xf32, #tpu.memory_space<vmem>>, vector<2x128xf32>
    tpu.vector_store %arg16[%c8, %c0_56], %185 {strides = array<i32>} : memref<16x128xf32, #tpu.memory_space<vmem>>, vector<2x128xf32>,
    %187 = vector.extract_strided_slice %38 {offsets = [10, 0], sizes = [2, 512], strides = [1, 1]} : vector<16x512xf32> to vector<2x512xf32>
    %cst_57 = arith.constant dense<0.000000e+00> : vector<2x512xf32>
    %188 = tpu.matmul %185, %39, %cst_57 {dimension_numbers = #tpu.dot_dimension_numbers<[1], [0], [0], [1], [0, 0, 1, 1], [], []>} : vector<2x128xf32>, vector<128x512xf32>, vector<2x512xf32> -> vector<2x512xf32>
    %189 = arith.addf %187, %188 : vector<2x512xf32>
    %190 = vector.extract_strided_slice %189 {offsets = [0, 0], sizes = [2, 128], strides = [1, 1]} : vector<2x512xf32> to vector<2x128xf32>
    %191 = arith.negf %190 : vector<2x128xf32>
    %192 = math.exp %191 : vector<2x128xf32>
    %cst_58 = arith.constant 1.000000e+00 : f32
    %193 = vector.broadcast %cst_58 : f32 to vector<2x128xf32>
    %194 = arith.addf %193, %192 : vector<2x128xf32>
    %195 = arith.divf %193, %194 : vector<2x128xf32>
    %196 = vector.extract_strided_slice %189 {offsets = [0, 128], sizes = [2, 128], strides = [1, 1]} : vector<2x512xf32> to vector<2x128xf32>
    %197 = arith.negf %196 : vector<2x128xf32>
    %198 = math.exp %197 : vector<2x128xf32>
    %cst_59 = arith.constant 1.000000e+00 : f32
    %199 = vector.broadcast %cst_59 : f32 to vector<2x128xf32>
    %200 = arith.addf %199, %198 : vector<2x128xf32>
    %201 = arith.divf %199, %200 : vector<2x128xf32>
    %202 = vector.extract_strided_slice %189 {offsets = [0, 256], sizes = [2, 128], strides = [1, 1]} : vector<2x512xf32> to vector<2x128xf32>
    %203 = math.tanh %202 : vector<2x128xf32>
    %204 = vector.extract_strided_slice %189 {offsets = [0, 384], sizes = [2, 128], strides = [1, 1]} : vector<2x512xf32> to vector<2x128xf32>
    %205 = arith.negf %204 : vector<2x128xf32>
    %206 = math.exp %205 : vector<2x128xf32>
    %cst_60 = arith.constant 1.000000e+00 : f32
    %207 = vector.broadcast %cst_60 : f32 to vector<2x128xf32>
    %208 = arith.addf %207, %206 : vector<2x128xf32>
    %209 = arith.divf %207, %208 : vector<2x128xf32>
    %210 = arith.mulf %201, %183 : vector<2x128xf32>
    %211 = arith.mulf %195, %203 : vector<2x128xf32>
    %212 = arith.addf %210, %211 : vector<2x128xf32>
    %213 = math.tanh %212 : vector<2x128xf32>
    %214 = arith.mulf %209, %213 : vector<2x128xf32>
    %c10 = arith.constant 10 : index
    %c0_61 = arith.constant 0 : index
    %215 = vector.load %arg16[%c10, %c0_61] : memref<16x128xf32, #tpu.memory_space<vmem>>, vector<2x128xf32>
    tpu.vector_store %arg16[%c10, %c0_61], %214 {strides = array<i32>} : memref<16x128xf32, #tpu.memory_space<vmem>>, vector<2x128xf32>,
    %216 = vector.extract_strided_slice %38 {offsets = [12, 0], sizes = [2, 512], strides = [1, 1]} : vector<16x512xf32> to vector<2x512xf32>
    %cst_62 = arith.constant dense<0.000000e+00> : vector<2x512xf32>
    %217 = tpu.matmul %214, %39, %cst_62 {dimension_numbers = #tpu.dot_dimension_numbers<[1], [0], [0], [1], [0, 0, 1, 1], [], []>} : vector<2x128xf32>, vector<128x512xf32>, vector<2x512xf32> -> vector<2x512xf32>
    %218 = arith.addf %216, %217 : vector<2x512xf32>
    %219 = vector.extract_strided_slice %218 {offsets = [0, 0], sizes = [2, 128], strides = [1, 1]} : vector<2x512xf32> to vector<2x128xf32>
    %220 = arith.negf %219 : vector<2x128xf32>
    %221 = math.exp %220 : vector<2x128xf32>
    %cst_63 = arith.constant 1.000000e+00 : f32
    %222 = vector.broadcast %cst_63 : f32 to vector<2x128xf32>
    %223 = arith.addf %222, %221 : vector<2x128xf32>
    %224 = arith.divf %222, %223 : vector<2x128xf32>
    %225 = vector.extract_strided_slice %218 {offsets = [0, 128], sizes = [2, 128], strides = [1, 1]} : vector<2x512xf32> to vector<2x128xf32>
    %226 = arith.negf %225 : vector<2x128xf32>
    %227 = math.exp %226 : vector<2x128xf32>
    %cst_64 = arith.constant 1.000000e+00 : f32
    %228 = vector.broadcast %cst_64 : f32 to vector<2x128xf32>
    %229 = arith.addf %228, %227 : vector<2x128xf32>
    %230 = arith.divf %228, %229 : vector<2x128xf32>
    %231 = vector.extract_strided_slice %218 {offsets = [0, 256], sizes = [2, 128], strides = [1, 1]} : vector<2x512xf32> to vector<2x128xf32>
    %232 = math.tanh %231 : vector<2x128xf32>
    %233 = vector.extract_strided_slice %218 {offsets = [0, 384], sizes = [2, 128], strides = [1, 1]} : vector<2x512xf32> to vector<2x128xf32>
    %234 = arith.negf %233 : vector<2x128xf32>
    %235 = math.exp %234 : vector<2x128xf32>
    %cst_65 = arith.constant 1.000000e+00 : f32
    %236 = vector.broadcast %cst_65 : f32 to vector<2x128xf32>
    %237 = arith.addf %236, %235 : vector<2x128xf32>
    %238 = arith.divf %236, %237 : vector<2x128xf32>
    %239 = arith.mulf %230, %212 : vector<2x128xf32>
    %240 = arith.mulf %224, %232 : vector<2x128xf32>
    %241 = arith.addf %239, %240 : vector<2x128xf32>
    %242 = math.tanh %241 : vector<2x128xf32>
    %243 = arith.mulf %238, %242 : vector<2x128xf32>
    %c12 = arith.constant 12 : index
    %c0_66 = arith.constant 0 : index
    %244 = vector.load %arg16[%c12, %c0_66] : memref<16x128xf32, #tpu.memory_space<vmem>>, vector<2x128xf32>
    tpu.vector_store %arg16[%c12, %c0_66], %243 {strides = array<i32>} : memref<16x128xf32, #tpu.memory_space<vmem>>, vector<2x128xf32>,
    %245 = vector.extract_strided_slice %38 {offsets = [14, 0], sizes = [2, 512], strides = [1, 1]} : vector<16x512xf32> to vector<2x512xf32>
    %cst_67 = arith.constant dense<0.000000e+00> : vector<2x512xf32>
    %246 = tpu.matmul %243, %39, %cst_67 {dimension_numbers = #tpu.dot_dimension_numbers<[1], [0], [0], [1], [0, 0, 1, 1], [], []>} : vector<2x128xf32>, vector<128x512xf32>, vector<2x512xf32> -> vector<2x512xf32>
    %247 = arith.addf %245, %246 : vector<2x512xf32>
    %248 = vector.extract_strided_slice %247 {offsets = [0, 0], sizes = [2, 128], strides = [1, 1]} : vector<2x512xf32> to vector<2x128xf32>
    %249 = arith.negf %248 : vector<2x128xf32>
    %250 = math.exp %249 : vector<2x128xf32>
    %cst_68 = arith.constant 1.000000e+00 : f32
    %251 = vector.broadcast %cst_68 : f32 to vector<2x128xf32>
    %252 = arith.addf %251, %250 : vector<2x128xf32>
    %253 = arith.divf %251, %252 : vector<2x128xf32>
    %254 = vector.extract_strided_slice %247 {offsets = [0, 128], sizes = [2, 128], strides = [1, 1]} : vector<2x512xf32> to vector<2x128xf32>
    %255 = arith.negf %254 : vector<2x128xf32>
    %256 = math.exp %255 : vector<2x128xf32>
    %cst_69 = arith.constant 1.000000e+00 : f32
    %257 = vector.broadcast %cst_69 : f32 to vector<2x128xf32>
    %258 = arith.addf %257, %256 : vector<2x128xf32>
    %259 = arith.divf %257, %258 : vector<2x128xf32>
    %260 = vector.extract_strided_slice %247 {offsets = [0, 256], sizes = [2, 128], strides = [1, 1]} : vector<2x512xf32> to vector<2x128xf32>
    %261 = math.tanh %260 : vector<2x128xf32>
    %262 = vector.extract_strided_slice %247 {offsets = [0, 384], sizes = [2, 128], strides = [1, 1]} : vector<2x512xf32> to vector<2x128xf32>
    %263 = arith.negf %262 : vector<2x128xf32>
    %264 = math.exp %263 : vector<2x128xf32>
    %cst_70 = arith.constant 1.000000e+00 : f32
    %265 = vector.broadcast %cst_70 : f32 to vector<2x128xf32>
    %266 = arith.addf %265, %264 : vector<2x128xf32>
    %267 = arith.divf %265, %266 : vector<2x128xf32>
    %268 = arith.mulf %259, %241 : vector<2x128xf32>
    %269 = arith.mulf %253, %261 : vector<2x128xf32>
    %270 = arith.addf %268, %269 : vector<2x128xf32>
    %271 = math.tanh %270 : vector<2x128xf32>
    %272 = arith.mulf %267, %271 : vector<2x128xf32>
    %c14 = arith.constant 14 : index
    %c0_71 = arith.constant 0 : index
    %273 = vector.load %arg16[%c14, %c0_71] : memref<16x128xf32, #tpu.memory_space<vmem>>, vector<2x128xf32>
    tpu.vector_store %arg16[%c14, %c0_71], %272 {strides = array<i32>} : memref<16x128xf32, #tpu.memory_space<vmem>>, vector<2x128xf32>,
    %c0_72 = arith.constant 0 : index
    %c0_73 = arith.constant 0 : index
    %274 = vector.load %arg16[%c0_72, %c0_73] : memref<16x128xf32, #tpu.memory_space<vmem>>, vector<16x128xf32>
    %c0_74 = arith.constant 0 : index
    %c0_75 = arith.constant 0 : index
    %275 = vector.load %arg9[%c0_74, %c0_75] : memref<128x512xf32, #tpu.memory_space<vmem>>, vector<128x512xf32>
    %cst_76 = arith.constant dense<0.000000e+00> : vector<16x512xf32>
    %276 = tpu.matmul %274, %275, %cst_76 {dimension_numbers = #tpu.dot_dimension_numbers<[1], [0], [0], [1], [0, 0, 1, 1], [], []>} : vector<16x128xf32>, vector<128x512xf32>, vector<16x512xf32> -> vector<16x512xf32>
    %c0_77 = arith.constant 0 : index
    %c0_78 = arith.constant 0 : index
    %277 = vector.load %arg11[%c0_77, %c0_78] : memref<1x512xf32, #tpu.memory_space<vmem>>, vector<1x512xf32>
    %278 = vector.broadcast %277 : vector<1x512xf32> to vector<16x512xf32>
    %279 = arith.addf %276, %278 : vector<16x512xf32>
    %c0_79 = arith.constant 0 : index
    %c0_80 = arith.constant 0 : index
    %280 = vector.load %arg10[%c0_79, %c0_80] : memref<128x512xf32, #tpu.memory_space<vmem>>, vector<128x512xf32>
    %cst_81 = arith.constant 0.000000e+00 : f32
    %281 = vector.broadcast %cst_81 : f32 to vector<2x128xf32>
    %cst_82 = arith.constant 0.000000e+00 : f32
    %282 = vector.broadcast %cst_82 : f32 to vector<2x128xf32>
    %283 = vector.extract_strided_slice %279 {offsets = [0, 0], sizes = [2, 512], strides = [1, 1]} : vector<16x512xf32> to vector<2x512xf32>
    %cst_83 = arith.constant dense<0.000000e+00> : vector<2x512xf32>
    %284 = tpu.matmul %281, %280, %cst_83 {dimension_numbers = #tpu.dot_dimension_numbers<[1], [0], [0], [1], [0, 0, 1, 1], [], []>} : vector<2x128xf32>, vector<128x512xf32>, vector<2x512xf32> -> vector<2x512xf32>
    %285 = arith.addf %283, %284 : vector<2x512xf32>
    %286 = vector.extract_strided_slice %285 {offsets = [0, 0], sizes = [2, 128], strides = [1, 1]} : vector<2x512xf32> to vector<2x128xf32>
    %287 = arith.negf %286 : vector<2x128xf32>
    %288 = math.exp %287 : vector<2x128xf32>
    %cst_84 = arith.constant 1.000000e+00 : f32
    %289 = vector.broadcast %cst_84 : f32 to vector<2x128xf32>
    %290 = arith.addf %289, %288 : vector<2x128xf32>
    %291 = arith.divf %289, %290 : vector<2x128xf32>
    %292 = vector.extract_strided_slice %285 {offsets = [0, 128], sizes = [2, 128], strides = [1, 1]} : vector<2x512xf32> to vector<2x128xf32>
    %293 = arith.negf %292 : vector<2x128xf32>
    %294 = math.exp %293 : vector<2x128xf32>
    %cst_85 = arith.constant 1.000000e+00 : f32
    %295 = vector.broadcast %cst_85 : f32 to vector<2x128xf32>
    %296 = arith.addf %295, %294 : vector<2x128xf32>
    %297 = arith.divf %295, %296 : vector<2x128xf32>
    %298 = vector.extract_strided_slice %285 {offsets = [0, 256], sizes = [2, 128], strides = [1, 1]} : vector<2x512xf32> to vector<2x128xf32>
    %299 = math.tanh %298 : vector<2x128xf32>
    %300 = vector.extract_strided_slice %285 {offsets = [0, 384], sizes = [2, 128], strides = [1, 1]} : vector<2x512xf32> to vector<2x128xf32>
    %301 = arith.negf %300 : vector<2x128xf32>
    %302 = math.exp %301 : vector<2x128xf32>
    %cst_86 = arith.constant 1.000000e+00 : f32
    %303 = vector.broadcast %cst_86 : f32 to vector<2x128xf32>
    %304 = arith.addf %303, %302 : vector<2x128xf32>
    %305 = arith.divf %303, %304 : vector<2x128xf32>
    %306 = arith.mulf %297, %282 : vector<2x128xf32>
    %307 = arith.mulf %291, %299 : vector<2x128xf32>
    %308 = arith.addf %306, %307 : vector<2x128xf32>
    %309 = math.tanh %308 : vector<2x128xf32>
    %310 = arith.mulf %305, %309 : vector<2x128xf32>
    %c0_87 = arith.constant 0 : index
    %c0_88 = arith.constant 0 : index
    %311 = vector.load %arg16[%c0_87, %c0_88] : memref<16x128xf32, #tpu.memory_space<vmem>>, vector<2x128xf32>
    tpu.vector_store %arg16[%c0_87, %c0_88], %310 {strides = array<i32>} : memref<16x128xf32, #tpu.memory_space<vmem>>, vector<2x128xf32>,
    %312 = vector.extract_strided_slice %279 {offsets = [2, 0], sizes = [2, 512], strides = [1, 1]} : vector<16x512xf32> to vector<2x512xf32>
    %cst_89 = arith.constant dense<0.000000e+00> : vector<2x512xf32>
    %313 = tpu.matmul %310, %280, %cst_89 {dimension_numbers = #tpu.dot_dimension_numbers<[1], [0], [0], [1], [0, 0, 1, 1], [], []>} : vector<2x128xf32>, vector<128x512xf32>, vector<2x512xf32> -> vector<2x512xf32>
    %314 = arith.addf %312, %313 : vector<2x512xf32>
    %315 = vector.extract_strided_slice %314 {offsets = [0, 0], sizes = [2, 128], strides = [1, 1]} : vector<2x512xf32> to vector<2x128xf32>
    %316 = arith.negf %315 : vector<2x128xf32>
    %317 = math.exp %316 : vector<2x128xf32>
    %cst_90 = arith.constant 1.000000e+00 : f32
    %318 = vector.broadcast %cst_90 : f32 to vector<2x128xf32>
    %319 = arith.addf %318, %317 : vector<2x128xf32>
    %320 = arith.divf %318, %319 : vector<2x128xf32>
    %321 = vector.extract_strided_slice %314 {offsets = [0, 128], sizes = [2, 128], strides = [1, 1]} : vector<2x512xf32> to vector<2x128xf32>
    %322 = arith.negf %321 : vector<2x128xf32>
    %323 = math.exp %322 : vector<2x128xf32>
    %cst_91 = arith.constant 1.000000e+00 : f32
    %324 = vector.broadcast %cst_91 : f32 to vector<2x128xf32>
    %325 = arith.addf %324, %323 : vector<2x128xf32>
    %326 = arith.divf %324, %325 : vector<2x128xf32>
    %327 = vector.extract_strided_slice %314 {offsets = [0, 256], sizes = [2, 128], strides = [1, 1]} : vector<2x512xf32> to vector<2x128xf32>
    %328 = math.tanh %327 : vector<2x128xf32>
    %329 = vector.extract_strided_slice %314 {offsets = [0, 384], sizes = [2, 128], strides = [1, 1]} : vector<2x512xf32> to vector<2x128xf32>
    %330 = arith.negf %329 : vector<2x128xf32>
    %331 = math.exp %330 : vector<2x128xf32>
    %cst_92 = arith.constant 1.000000e+00 : f32
    %332 = vector.broadcast %cst_92 : f32 to vector<2x128xf32>
    %333 = arith.addf %332, %331 : vector<2x128xf32>
    %334 = arith.divf %332, %333 : vector<2x128xf32>
    %335 = arith.mulf %326, %308 : vector<2x128xf32>
    %336 = arith.mulf %320, %328 : vector<2x128xf32>
    %337 = arith.addf %335, %336 : vector<2x128xf32>
    %338 = math.tanh %337 : vector<2x128xf32>
    %339 = arith.mulf %334, %338 : vector<2x128xf32>
    %c2_93 = arith.constant 2 : index
    %c0_94 = arith.constant 0 : index
    %340 = vector.load %arg16[%c2_93, %c0_94] : memref<16x128xf32, #tpu.memory_space<vmem>>, vector<2x128xf32>
    tpu.vector_store %arg16[%c2_93, %c0_94], %339 {strides = array<i32>} : memref<16x128xf32, #tpu.memory_space<vmem>>, vector<2x128xf32>,
    %341 = vector.extract_strided_slice %279 {offsets = [4, 0], sizes = [2, 512], strides = [1, 1]} : vector<16x512xf32> to vector<2x512xf32>
    %cst_95 = arith.constant dense<0.000000e+00> : vector<2x512xf32>
    %342 = tpu.matmul %339, %280, %cst_95 {dimension_numbers = #tpu.dot_dimension_numbers<[1], [0], [0], [1], [0, 0, 1, 1], [], []>} : vector<2x128xf32>, vector<128x512xf32>, vector<2x512xf32> -> vector<2x512xf32>
    %343 = arith.addf %341, %342 : vector<2x512xf32>
    %344 = vector.extract_strided_slice %343 {offsets = [0, 0], sizes = [2, 128], strides = [1, 1]} : vector<2x512xf32> to vector<2x128xf32>
    %345 = arith.negf %344 : vector<2x128xf32>
    %346 = math.exp %345 : vector<2x128xf32>
    %cst_96 = arith.constant 1.000000e+00 : f32
    %347 = vector.broadcast %cst_96 : f32 to vector<2x128xf32>
    %348 = arith.addf %347, %346 : vector<2x128xf32>
    %349 = arith.divf %347, %348 : vector<2x128xf32>
    %350 = vector.extract_strided_slice %343 {offsets = [0, 128], sizes = [2, 128], strides = [1, 1]} : vector<2x512xf32> to vector<2x128xf32>
    %351 = arith.negf %350 : vector<2x128xf32>
    %352 = math.exp %351 : vector<2x128xf32>
    %cst_97 = arith.constant 1.000000e+00 : f32
    %353 = vector.broadcast %cst_97 : f32 to vector<2x128xf32>
    %354 = arith.addf %353, %352 : vector<2x128xf32>
    %355 = arith.divf %353, %354 : vector<2x128xf32>
    %356 = vector.extract_strided_slice %343 {offsets = [0, 256], sizes = [2, 128], strides = [1, 1]} : vector<2x512xf32> to vector<2x128xf32>
    %357 = math.tanh %356 : vector<2x128xf32>
    %358 = vector.extract_strided_slice %343 {offsets = [0, 384], sizes = [2, 128], strides = [1, 1]} : vector<2x512xf32> to vector<2x128xf32>
    %359 = arith.negf %358 : vector<2x128xf32>
    %360 = math.exp %359 : vector<2x128xf32>
    %cst_98 = arith.constant 1.000000e+00 : f32
    %361 = vector.broadcast %cst_98 : f32 to vector<2x128xf32>
    %362 = arith.addf %361, %360 : vector<2x128xf32>
    %363 = arith.divf %361, %362 : vector<2x128xf32>
    %364 = arith.mulf %355, %337 : vector<2x128xf32>
    %365 = arith.mulf %349, %357 : vector<2x128xf32>
    %366 = arith.addf %364, %365 : vector<2x128xf32>
    %367 = math.tanh %366 : vector<2x128xf32>
    %368 = arith.mulf %363, %367 : vector<2x128xf32>
    %c4_99 = arith.constant 4 : index
    %c0_100 = arith.constant 0 : index
    %369 = vector.load %arg16[%c4_99, %c0_100] : memref<16x128xf32, #tpu.memory_space<vmem>>, vector<2x128xf32>
    tpu.vector_store %arg16[%c4_99, %c0_100], %368 {strides = array<i32>} : memref<16x128xf32, #tpu.memory_space<vmem>>, vector<2x128xf32>,
    %370 = vector.extract_strided_slice %279 {offsets = [6, 0], sizes = [2, 512], strides = [1, 1]} : vector<16x512xf32> to vector<2x512xf32>
    %cst_101 = arith.constant dense<0.000000e+00> : vector<2x512xf32>
    %371 = tpu.matmul %368, %280, %cst_101 {dimension_numbers = #tpu.dot_dimension_numbers<[1], [0], [0], [1], [0, 0, 1, 1], [], []>} : vector<2x128xf32>, vector<128x512xf32>, vector<2x512xf32> -> vector<2x512xf32>
    %372 = arith.addf %370, %371 : vector<2x512xf32>
    %373 = vector.extract_strided_slice %372 {offsets = [0, 0], sizes = [2, 128], strides = [1, 1]} : vector<2x512xf32> to vector<2x128xf32>
    %374 = arith.negf %373 : vector<2x128xf32>
    %375 = math.exp %374 : vector<2x128xf32>
    %cst_102 = arith.constant 1.000000e+00 : f32
    %376 = vector.broadcast %cst_102 : f32 to vector<2x128xf32>
    %377 = arith.addf %376, %375 : vector<2x128xf32>
    %378 = arith.divf %376, %377 : vector<2x128xf32>
    %379 = vector.extract_strided_slice %372 {offsets = [0, 128], sizes = [2, 128], strides = [1, 1]} : vector<2x512xf32> to vector<2x128xf32>
    %380 = arith.negf %379 : vector<2x128xf32>
    %381 = math.exp %380 : vector<2x128xf32>
    %cst_103 = arith.constant 1.000000e+00 : f32
    %382 = vector.broadcast %cst_103 : f32 to vector<2x128xf32>
    %383 = arith.addf %382, %381 : vector<2x128xf32>
    %384 = arith.divf %382, %383 : vector<2x128xf32>
    %385 = vector.extract_strided_slice %372 {offsets = [0, 256], sizes = [2, 128], strides = [1, 1]} : vector<2x512xf32> to vector<2x128xf32>
    %386 = math.tanh %385 : vector<2x128xf32>
    %387 = vector.extract_strided_slice %372 {offsets = [0, 384], sizes = [2, 128], strides = [1, 1]} : vector<2x512xf32> to vector<2x128xf32>
    %388 = arith.negf %387 : vector<2x128xf32>
    %389 = math.exp %388 : vector<2x128xf32>
    %cst_104 = arith.constant 1.000000e+00 : f32
    %390 = vector.broadcast %cst_104 : f32 to vector<2x128xf32>
    %391 = arith.addf %390, %389 : vector<2x128xf32>
    %392 = arith.divf %390, %391 : vector<2x128xf32>
    %393 = arith.mulf %384, %366 : vector<2x128xf32>
    %394 = arith.mulf %378, %386 : vector<2x128xf32>
    %395 = arith.addf %393, %394 : vector<2x128xf32>
    %396 = math.tanh %395 : vector<2x128xf32>
    %397 = arith.mulf %392, %396 : vector<2x128xf32>
    %c6_105 = arith.constant 6 : index
    %c0_106 = arith.constant 0 : index
    %398 = vector.load %arg16[%c6_105, %c0_106] : memref<16x128xf32, #tpu.memory_space<vmem>>, vector<2x128xf32>
    tpu.vector_store %arg16[%c6_105, %c0_106], %397 {strides = array<i32>} : memref<16x128xf32, #tpu.memory_space<vmem>>, vector<2x128xf32>,
    %399 = vector.extract_strided_slice %279 {offsets = [8, 0], sizes = [2, 512], strides = [1, 1]} : vector<16x512xf32> to vector<2x512xf32>
    %cst_107 = arith.constant dense<0.000000e+00> : vector<2x512xf32>
    %400 = tpu.matmul %397, %280, %cst_107 {dimension_numbers = #tpu.dot_dimension_numbers<[1], [0], [0], [1], [0, 0, 1, 1], [], []>} : vector<2x128xf32>, vector<128x512xf32>, vector<2x512xf32> -> vector<2x512xf32>
    %401 = arith.addf %399, %400 : vector<2x512xf32>
    %402 = vector.extract_strided_slice %401 {offsets = [0, 0], sizes = [2, 128], strides = [1, 1]} : vector<2x512xf32> to vector<2x128xf32>
    %403 = arith.negf %402 : vector<2x128xf32>
    %404 = math.exp %403 : vector<2x128xf32>
    %cst_108 = arith.constant 1.000000e+00 : f32
    %405 = vector.broadcast %cst_108 : f32 to vector<2x128xf32>
    %406 = arith.addf %405, %404 : vector<2x128xf32>
    %407 = arith.divf %405, %406 : vector<2x128xf32>
    %408 = vector.extract_strided_slice %401 {offsets = [0, 128], sizes = [2, 128], strides = [1, 1]} : vector<2x512xf32> to vector<2x128xf32>
    %409 = arith.negf %408 : vector<2x128xf32>
    %410 = math.exp %409 : vector<2x128xf32>
    %cst_109 = arith.constant 1.000000e+00 : f32
    %411 = vector.broadcast %cst_109 : f32 to vector<2x128xf32>
    %412 = arith.addf %411, %410 : vector<2x128xf32>
    %413 = arith.divf %411, %412 : vector<2x128xf32>
    %414 = vector.extract_strided_slice %401 {offsets = [0, 256], sizes = [2, 128], strides = [1, 1]} : vector<2x512xf32> to vector<2x128xf32>
    %415 = math.tanh %414 : vector<2x128xf32>
    %416 = vector.extract_strided_slice %401 {offsets = [0, 384], sizes = [2, 128], strides = [1, 1]} : vector<2x512xf32> to vector<2x128xf32>
    %417 = arith.negf %416 : vector<2x128xf32>
    %418 = math.exp %417 : vector<2x128xf32>
    %cst_110 = arith.constant 1.000000e+00 : f32
    %419 = vector.broadcast %cst_110 : f32 to vector<2x128xf32>
    %420 = arith.addf %419, %418 : vector<2x128xf32>
    %421 = arith.divf %419, %420 : vector<2x128xf32>
    %422 = arith.mulf %413, %395 : vector<2x128xf32>
    %423 = arith.mulf %407, %415 : vector<2x128xf32>
    %424 = arith.addf %422, %423 : vector<2x128xf32>
    %425 = math.tanh %424 : vector<2x128xf32>
    %426 = arith.mulf %421, %425 : vector<2x128xf32>
    %c8_111 = arith.constant 8 : index
    %c0_112 = arith.constant 0 : index
    %427 = vector.load %arg16[%c8_111, %c0_112] : memref<16x128xf32, #tpu.memory_space<vmem>>, vector<2x128xf32>
    tpu.vector_store %arg16[%c8_111, %c0_112], %426 {strides = array<i32>} : memref<16x128xf32, #tpu.memory_space<vmem>>, vector<2x128xf32>,
    %428 = vector.extract_strided_slice %279 {offsets = [10, 0], sizes = [2, 512], strides = [1, 1]} : vector<16x512xf32> to vector<2x512xf32>
    %cst_113 = arith.constant dense<0.000000e+00> : vector<2x512xf32>
    %429 = tpu.matmul %426, %280, %cst_113 {dimension_numbers = #tpu.dot_dimension_numbers<[1], [0], [0], [1], [0, 0, 1, 1], [], []>} : vector<2x128xf32>, vector<128x512xf32>, vector<2x512xf32> -> vector<2x512xf32>
    %430 = arith.addf %428, %429 : vector<2x512xf32>
    %431 = vector.extract_strided_slice %430 {offsets = [0, 0], sizes = [2, 128], strides = [1, 1]} : vector<2x512xf32> to vector<2x128xf32>
    %432 = arith.negf %431 : vector<2x128xf32>
    %433 = math.exp %432 : vector<2x128xf32>
    %cst_114 = arith.constant 1.000000e+00 : f32
    %434 = vector.broadcast %cst_114 : f32 to vector<2x128xf32>
    %435 = arith.addf %434, %433 : vector<2x128xf32>
    %436 = arith.divf %434, %435 : vector<2x128xf32>
    %437 = vector.extract_strided_slice %430 {offsets = [0, 128], sizes = [2, 128], strides = [1, 1]} : vector<2x512xf32> to vector<2x128xf32>
    %438 = arith.negf %437 : vector<2x128xf32>
    %439 = math.exp %438 : vector<2x128xf32>
    %cst_115 = arith.constant 1.000000e+00 : f32
    %440 = vector.broadcast %cst_115 : f32 to vector<2x128xf32>
    %441 = arith.addf %440, %439 : vector<2x128xf32>
    %442 = arith.divf %440, %441 : vector<2x128xf32>
    %443 = vector.extract_strided_slice %430 {offsets = [0, 256], sizes = [2, 128], strides = [1, 1]} : vector<2x512xf32> to vector<2x128xf32>
    %444 = math.tanh %443 : vector<2x128xf32>
    %445 = vector.extract_strided_slice %430 {offsets = [0, 384], sizes = [2, 128], strides = [1, 1]} : vector<2x512xf32> to vector<2x128xf32>
    %446 = arith.negf %445 : vector<2x128xf32>
    %447 = math.exp %446 : vector<2x128xf32>
    %cst_116 = arith.constant 1.000000e+00 : f32
    %448 = vector.broadcast %cst_116 : f32 to vector<2x128xf32>
    %449 = arith.addf %448, %447 : vector<2x128xf32>
    %450 = arith.divf %448, %449 : vector<2x128xf32>
    %451 = arith.mulf %442, %424 : vector<2x128xf32>
    %452 = arith.mulf %436, %444 : vector<2x128xf32>
    %453 = arith.addf %451, %452 : vector<2x128xf32>
    %454 = math.tanh %453 : vector<2x128xf32>
    %455 = arith.mulf %450, %454 : vector<2x128xf32>
    %c10_117 = arith.constant 10 : index
    %c0_118 = arith.constant 0 : index
    %456 = vector.load %arg16[%c10_117, %c0_118] : memref<16x128xf32, #tpu.memory_space<vmem>>, vector<2x128xf32>
    tpu.vector_store %arg16[%c10_117, %c0_118], %455 {strides = array<i32>} : memref<16x128xf32, #tpu.memory_space<vmem>>, vector<2x128xf32>,
    %457 = vector.extract_strided_slice %279 {offsets = [12, 0], sizes = [2, 512], strides = [1, 1]} : vector<16x512xf32> to vector<2x512xf32>
    %cst_119 = arith.constant dense<0.000000e+00> : vector<2x512xf32>
    %458 = tpu.matmul %455, %280, %cst_119 {dimension_numbers = #tpu.dot_dimension_numbers<[1], [0], [0], [1], [0, 0, 1, 1], [], []>} : vector<2x128xf32>, vector<128x512xf32>, vector<2x512xf32> -> vector<2x512xf32>
    %459 = arith.addf %457, %458 : vector<2x512xf32>
    %460 = vector.extract_strided_slice %459 {offsets = [0, 0], sizes = [2, 128], strides = [1, 1]} : vector<2x512xf32> to vector<2x128xf32>
    %461 = arith.negf %460 : vector<2x128xf32>
    %462 = math.exp %461 : vector<2x128xf32>
    %cst_120 = arith.constant 1.000000e+00 : f32
    %463 = vector.broadcast %cst_120 : f32 to vector<2x128xf32>
    %464 = arith.addf %463, %462 : vector<2x128xf32>
    %465 = arith.divf %463, %464 : vector<2x128xf32>
    %466 = vector.extract_strided_slice %459 {offsets = [0, 128], sizes = [2, 128], strides = [1, 1]} : vector<2x512xf32> to vector<2x128xf32>
    %467 = arith.negf %466 : vector<2x128xf32>
    %468 = math.exp %467 : vector<2x128xf32>
    %cst_121 = arith.constant 1.000000e+00 : f32
    %469 = vector.broadcast %cst_121 : f32 to vector<2x128xf32>
    %470 = arith.addf %469, %468 : vector<2x128xf32>
    %471 = arith.divf %469, %470 : vector<2x128xf32>
    %472 = vector.extract_strided_slice %459 {offsets = [0, 256], sizes = [2, 128], strides = [1, 1]} : vector<2x512xf32> to vector<2x128xf32>
    %473 = math.tanh %472 : vector<2x128xf32>
    %474 = vector.extract_strided_slice %459 {offsets = [0, 384], sizes = [2, 128], strides = [1, 1]} : vector<2x512xf32> to vector<2x128xf32>
    %475 = arith.negf %474 : vector<2x128xf32>
    %476 = math.exp %475 : vector<2x128xf32>
    %cst_122 = arith.constant 1.000000e+00 : f32
    %477 = vector.broadcast %cst_122 : f32 to vector<2x128xf32>
    %478 = arith.addf %477, %476 : vector<2x128xf32>
    %479 = arith.divf %477, %478 : vector<2x128xf32>
    %480 = arith.mulf %471, %453 : vector<2x128xf32>
    %481 = arith.mulf %465, %473 : vector<2x128xf32>
    %482 = arith.addf %480, %481 : vector<2x128xf32>
    %483 = math.tanh %482 : vector<2x128xf32>
    %484 = arith.mulf %479, %483 : vector<2x128xf32>
    %c12_123 = arith.constant 12 : index
    %c0_124 = arith.constant 0 : index
    %485 = vector.load %arg16[%c12_123, %c0_124] : memref<16x128xf32, #tpu.memory_space<vmem>>, vector<2x128xf32>
    tpu.vector_store %arg16[%c12_123, %c0_124], %484 {strides = array<i32>} : memref<16x128xf32, #tpu.memory_space<vmem>>, vector<2x128xf32>,
    %486 = vector.extract_strided_slice %279 {offsets = [14, 0], sizes = [2, 512], strides = [1, 1]} : vector<16x512xf32> to vector<2x512xf32>
    %cst_125 = arith.constant dense<0.000000e+00> : vector<2x512xf32>
    %487 = tpu.matmul %484, %280, %cst_125 {dimension_numbers = #tpu.dot_dimension_numbers<[1], [0], [0], [1], [0, 0, 1, 1], [], []>} : vector<2x128xf32>, vector<128x512xf32>, vector<2x512xf32> -> vector<2x512xf32>
    %488 = arith.addf %486, %487 : vector<2x512xf32>
    %489 = vector.extract_strided_slice %488 {offsets = [0, 0], sizes = [2, 128], strides = [1, 1]} : vector<2x512xf32> to vector<2x128xf32>
    %490 = arith.negf %489 : vector<2x128xf32>
    %491 = math.exp %490 : vector<2x128xf32>
    %cst_126 = arith.constant 1.000000e+00 : f32
    %492 = vector.broadcast %cst_126 : f32 to vector<2x128xf32>
    %493 = arith.addf %492, %491 : vector<2x128xf32>
    %494 = arith.divf %492, %493 : vector<2x128xf32>
    %495 = vector.extract_strided_slice %488 {offsets = [0, 128], sizes = [2, 128], strides = [1, 1]} : vector<2x512xf32> to vector<2x128xf32>
    %496 = arith.negf %495 : vector<2x128xf32>
    %497 = math.exp %496 : vector<2x128xf32>
    %cst_127 = arith.constant 1.000000e+00 : f32
    %498 = vector.broadcast %cst_127 : f32 to vector<2x128xf32>
    %499 = arith.addf %498, %497 : vector<2x128xf32>
    %500 = arith.divf %498, %499 : vector<2x128xf32>
    %501 = vector.extract_strided_slice %488 {offsets = [0, 256], sizes = [2, 128], strides = [1, 1]} : vector<2x512xf32> to vector<2x128xf32>
    %502 = math.tanh %501 : vector<2x128xf32>
    %503 = vector.extract_strided_slice %488 {offsets = [0, 384], sizes = [2, 128], strides = [1, 1]} : vector<2x512xf32> to vector<2x128xf32>
    %504 = arith.negf %503 : vector<2x128xf32>
    %505 = math.exp %504 : vector<2x128xf32>
    %cst_128 = arith.constant 1.000000e+00 : f32
    %506 = vector.broadcast %cst_128 : f32 to vector<2x128xf32>
    %507 = arith.addf %506, %505 : vector<2x128xf32>
    %508 = arith.divf %506, %507 : vector<2x128xf32>
    %509 = arith.mulf %500, %482 : vector<2x128xf32>
    %510 = arith.mulf %494, %502 : vector<2x128xf32>
    %511 = arith.addf %509, %510 : vector<2x128xf32>
    %512 = math.tanh %511 : vector<2x128xf32>
    %513 = arith.mulf %508, %512 : vector<2x128xf32>
    %c14_129 = arith.constant 14 : index
    %c0_130 = arith.constant 0 : index
    %514 = vector.load %arg16[%c14_129, %c0_130] : memref<16x128xf32, #tpu.memory_space<vmem>>, vector<2x128xf32>
    tpu.vector_store %arg16[%c14_129, %c0_130], %513 {strides = array<i32>} : memref<16x128xf32, #tpu.memory_space<vmem>>, vector<2x128xf32>,
    %c0_131 = arith.constant 0 : index
    %c0_132 = arith.constant 0 : index
    %515 = vector.load %arg16[%c0_131, %c0_132] : memref<16x128xf32, #tpu.memory_space<vmem>>, vector<16x128xf32>
    %c0_133 = arith.constant 0 : index
    %c0_134 = arith.constant 0 : index
    %516 = vector.load %arg12[%c0_133, %c0_134] : memref<128x128xf32, #tpu.memory_space<vmem>>, vector<128x128xf32>
    %cst_135 = arith.constant dense<0.000000e+00> : vector<16x128xf32>
    %517 = tpu.matmul %515, %516, %cst_135 {dimension_numbers = #tpu.dot_dimension_numbers<[1], [0], [0], [1], [0, 0, 1, 1], [], []>} : vector<16x128xf32>, vector<128x128xf32>, vector<16x128xf32> -> vector<16x128xf32>
    %c0_136 = arith.constant 0 : index
    %c0_137 = arith.constant 0 : index
    %518 = vector.load %arg13[%c0_136, %c0_137] : memref<1x128xf32, #tpu.memory_space<vmem>>, vector<1x128xf32>
    %519 = vector.broadcast %518 : vector<1x128xf32> to vector<16x128xf32>
    %520 = arith.addf %517, %519 : vector<16x128xf32>
    %521 = vector.extract_strided_slice %520 {offsets = [0, 0], sizes = [13, 128], strides = [1, 1]} : vector<16x128xf32> to vector<13x128xf32>
    %c0_138 = arith.constant 0 : index
    %c0_139 = arith.constant 0 : index
    %522 = vector.load %arg14[%c0_138, %c0_139] : memref<14x128xf32, #tpu.memory_space<vmem>>, vector<13x128xf32>
    tpu.vector_store %arg14[%c0_138, %c0_139], %521 {strides = array<i32>} : memref<14x128xf32, #tpu.memory_space<vmem>>, vector<13x128xf32>,
    %523 = vector.extract_strided_slice %520 {offsets = [14, 0], sizes = [1, 128], strides = [1, 1]} : vector<16x128xf32> to vector<1x128xf32>
    %c13 = arith.constant 13 : index
    %c0_140 = arith.constant 0 : index
    %524 = vector.load %arg14[%c13, %c0_140] : memref<14x128xf32, #tpu.memory_space<vmem>>, vector<1x128xf32>
    tpu.vector_store %arg14[%c13, %c0_140], %523 {strides = array<i32>} : memref<14x128xf32, #tpu.memory_space<vmem>>, vector<1x128xf32>,
    return
  }
}

</mosaic_0001>

<llo_original>
// kernel: tpu_custom_call.1
$region0: #{tpu_custom_call.1}
  #allocation0 [shape = 'u32[]', space=smem, size = 0x4, offset = 0x4, fixed_abs, tag = 'smem constant byte address 0x4 - core index']
  #allocation1 [shape = 'u32[144,128]{1,0:T(1,128)}', space=vmem, size = 0x12000, scoped, tag = 'internal scratch']
  #allocation2 [shape = 'f32[16,128]{1,0:T(8,128)}', space=vmem, size = 0x2000, scoped, tag = 'scratch operand']
  #allocation3 [shape = 'f32[16,128]{1,0:T(8,128)}', space=vmem, size = 0x2000, scoped, tag = 'scratch operand']
  %s0 = inlined_call_operand.hbm [shape: f32[2,1024], index: 0, kind: input, shape index: {}]
  %s1 = inlined_call_operand.hbm [shape: f32[1024,128], index: 1, kind: input, shape index: {}]
  %s2 = inlined_call_operand.vmem [shape: f32[1,128], index: 2, kind: input, shape index: {}]
  %s3 = inlined_call_operand.vmem [shape: f32[1,128], index: 3, kind: input, shape index: {}]
  %s4 = inlined_call_operand.hbm [shape: f32[1,128], index: 4, kind: input, shape index: {}]
  %s5 = inlined_call_operand.vmem [shape: f32[14,128], index: 5, kind: input, shape index: {}]
  %s6 = inlined_call_operand.hbm [shape: f32[128,512], index: 6, kind: input, shape index: {}]
  %s7 = inlined_call_operand.hbm [shape: f32[128,512], index: 7, kind: input, shape index: {}]
  %s8 = inlined_call_operand.vmem [shape: f32[1,512], index: 8, kind: input, shape index: {}]
  %s9 = inlined_call_operand.hbm [shape: f32[128,512], index: 9, kind: input, shape index: {}]
  %s10 = inlined_call_operand.hbm [shape: f32[128,512], index: 10, kind: input, shape index: {}]
  %s11 = inlined_call_operand.vmem [shape: f32[1,512], index: 11, kind: input, shape index: {}]
  %s12 = inlined_call_operand.hbm [shape: f32[128,128], index: 12, kind: input, shape index: {}]
  %s13 = inlined_call_operand.vmem [shape: f32[1,128], index: 13, kind: input, shape index: {}]
  %s14 = inlined_call_operand.hbm [shape: f32[14,128], index: 14, kind: output, shape index: {}]
  %s15 = sld [smem:[#allocation0]]
  $region98: #{tpu_custom_call.1} parent=0
    _
  %s17 = ssub.s32 1, %s15
  %s18 = scalar_select 0, %s17, %s15
  $region1: #{tpu_custom_call.1} parent=0
    #allocation4 [shape = 'u8[8192]{0}', space=vmem, size = 0x2000, scoped, tag = 'input window, operand 0, single buffered']
    #allocation5 [shape = 's32[1]{0}', space=sflag, size = 0x4, scoped, tag = 'scoped memory for tpu_custom_call.1']
    #allocation6 [shape = 's32[1]{0}', space=sflag, size = 0x4, scoped, tag = 'scoped memory for tpu_custom_call.1']
    #allocation7 [shape = 'u8[524288]{0}', space=vmem, size = 0x80000, scoped, tag = 'input window, operand 1, single buffered']
    #allocation8 [shape = 's32[1]{0}', space=sflag, size = 0x4, scoped, tag = 'scoped memory for tpu_custom_call.1']
    #allocation9 [shape = 'u8[512]{0}', space=vmem, size = 0x400, scoped, tag = 'input window, operand 4, single buffered']
    #allocation10 [shape = 'u8[262144]{0}', space=vmem, size = 0x40000, scoped, tag = 'input window, operand 6, single buffered']
    #allocation11 [shape = 's32[1]{0}', space=sflag, size = 0x4, scoped, tag = 'scoped memory for tpu_custom_call.1']
    #allocation12 [shape = 'u8[262144]{0}', space=vmem, size = 0x40000, scoped, tag = 'input window, operand 7, single buffered']
    #allocation13 [shape = 'u8[262144]{0}', space=vmem, size = 0x40000, scoped, tag = 'input window, operand 9, single buffered']
    #allocation14 [shape = 's32[1]{0}', space=sflag, size = 0x4, scoped, tag = 'scoped memory for tpu_custom_call.1']
    #allocation15 [shape = 'u8[262144]{0}', space=vmem, size = 0x40000, scoped, tag = 'input window, operand 10, single buffered']
    #allocation16 [shape = 'u8[65536]{0}', space=vmem, size = 0x10000, scoped, tag = 'input window, operand 12, single buffered']
    #allocation17 [shape = 's32[1]{0}', space=sflag, size = 0x4, scoped, tag = 'scoped memory for tpu_custom_call.1']
    #allocation18 [shape = 'u8[8192]{0}', space=vmem, size = 0x2000, scoped, tag = 'output window, operand 0, single buffered']
    %19 = vsyncpa [#allocation5], 0
    %20 = vsyncpa [#allocation8], 0
    %21 = vsyncpa [#allocation11], 0
    %22 = vsyncpa [#allocation14], 0
    %23 = vsyncpa [#allocation17], 0
    %24 = vsyncpa [#allocation6], 0
    // Predicated region
    $region2: #{tpu_custom_call.1} parent=1 // pred_check
      _
    $region3: #{tpu_custom_call.1} parent=1 // pred_check_branch
      %26 = sbr.rel (0) target = $region5
    $region4: #{tpu_custom_call.1} parent=1 // pred_region
      %s28 = ssub.s32 256, 256
      %29 = vsyncadd [#allocation5], %s28
      %s31 = sshll.u32 [#allocation4], 4
      %s32 = int_to_ptr.vmem [resolvable:$true] %s31
      %34 = dma.hbm_to_vmem [thread:$0]  %s0, 256, %s32, [#allocation5]
    $region5: #{tpu_custom_call.1} parent=1 // pred_fallthru
      _
    // Predicated region
    $region6: #{tpu_custom_call.1} parent=1 // pred_check
      _
    $region7: #{tpu_custom_call.1} parent=1 // pred_check_branch
      %36 = sbr.rel (0) target = $region9
    $region8: #{tpu_custom_call.1} parent=1 // pred_region
      %s38 = ssub.s32 16384, 16384
      %39 = vsyncadd [#allocation8], %s38
      %s40 = sshll.u32 [#allocation7], 4
      %s41 = int_to_ptr.vmem [resolvable:$true] %s40
      %46 = dma.hbm_to_vmem [thread:$0]  %s1, 16384, %s41, [#allocation8], 128, 128, 8
    $region9: #{tpu_custom_call.1} parent=1 // pred_fallthru
      _
    // Predicated region
    $region10: #{tpu_custom_call.1} parent=1 // pred_check
      _
    $region11: #{tpu_custom_call.1} parent=1 // pred_check_branch
      %48 = sbr.rel (0) target = $region13
    $region12: #{tpu_custom_call.1} parent=1 // pred_region
      _
    $region13: #{tpu_custom_call.1} parent=1 // pred_fallthru
      _
    // Predicated region
    $region14: #{tpu_custom_call.1} parent=1 // pred_check
      _
    $region15: #{tpu_custom_call.1} parent=1 // pred_check_branch
      %50 = sbr.rel (0) target = $region17
    $region16: #{tpu_custom_call.1} parent=1 // pred_region
      _
    $region17: #{tpu_custom_call.1} parent=1 // pred_fallthru
      _
    // Predicated region
    $region18: #{tpu_custom_call.1} parent=1 // pred_check
      _
    $region19: #{tpu_custom_call.1} parent=1 // pred_check_branch
      %52 = sbr.rel (0) target = $region21
    $region20: #{tpu_custom_call.1} parent=1 // pred_region
      %s54 = ssub.s32 16, 16
      %55 = vsyncadd [#allocation8], %s54
      %s57 = sshll.u32 [#allocation9], 4
      %s58 = int_to_ptr.vmem [resolvable:$true] %s57
      %60 = dma.hbm_to_vmem [thread:$0]  %s4, 16, %s58, [#allocation8]
    $region21: #{tpu_custom_call.1} parent=1 // pred_fallthru
      _
    // Predicated region
    $region22: #{tpu_custom_call.1} parent=1 // pred_check
      _
    $region23: #{tpu_custom_call.1} parent=1 // pred_check_branch
      %62 = sbr.rel (0) target = $region25
    $region24: #{tpu_custom_call.1} parent=1 // pred_region
      _
    $region25: #{tpu_custom_call.1} parent=1 // pred_fallthru
      _
    // Predicated region
    $region26: #{tpu_custom_call.1} parent=1 // pred_check
      _
    $region27: #{tpu_custom_call.1} parent=1 // pred_check_branch
      %64 = sbr.rel (0) target = $region29
    $region28: #{tpu_custom_call.1} parent=1 // pred_region
      %s66 = ssub.s32 8192, 8192
      %67 = vsyncadd [#allocation11], %s66
      %s68 = sshll.u32 [#allocation10], 4
      %s69 = int_to_ptr.vmem [resolvable:$true] %s68
      %74 = dma.hbm_to_vmem [thread:$0]  %s6, 8192, %s69, [#allocation11], 512, 512, 32
    $region29: #{tpu_custom_call.1} parent=1 // pred_fallthru
      _
    // Predicated region
    $region30: #{tpu_custom_call.1} parent=1 // pred_check
      _
    $region31: #{tpu_custom_call.1} parent=1 // pred_check_branch
      %76 = sbr.rel (0) target = $region33
    $region32: #{tpu_custom_call.1} parent=1 // pred_region
      %s78 = ssub.s32 8192, 8192
      %79 = vsyncadd [#allocation11], %s78
      %s80 = sshll.u32 [#allocation12], 4
      %s81 = int_to_ptr.vmem [resolvable:$true] %s80
      %86 = dma.hbm_to_vmem [thread:$0]  %s7, 8192, %s81, [#allocation11], 512, 512, 32
    $region33: #{tpu_custom_call.1} parent=1 // pred_fallthru
      _
    // Predicated region
    $region34: #{tpu_custom_call.1} parent=1 // pred_check
      _
    $region35: #{tpu_custom_call.1} parent=1 // pred_check_branch
      %88 = sbr.rel (0) target = $region37
    $region36: #{tpu_custom_call.1} parent=1 // pred_region
      _
    $region37: #{tpu_custom_call.1} parent=1 // pred_fallthru
      _
    // Predicated region
    $region38: #{tpu_custom_call.1} parent=1 // pred_check
      _
    $region39: #{tpu_custom_call.1} parent=1 // pred_check_branch
      %90 = sbr.rel (0) target = $region41
    $region40: #{tpu_custom_call.1} parent=1 // pred_region
      %s92 = ssub.s32 8192, 8192
      %93 = vsyncadd [#allocation14], %s92
      %s94 = sshll.u32 [#allocation13], 4
      %s95 = int_to_ptr.vmem [resolvable:$true] %s94
      %100 = dma.hbm_to_vmem [thread:$0]  %s9, 8192, %s95, [#allocation14], 512, 512, 32
    $region41: #{tpu_custom_call.1} parent=1 // pred_fallthru
      _
    // Predicated region
    $region42: #{tpu_custom_call.1} parent=1 // pred_check
      _
    $region43: #{tpu_custom_call.1} parent=1 // pred_check_branch
      %102 = sbr.rel (0) target = $region45
    $region44: #{tpu_custom_call.1} parent=1 // pred_region
      %s104 = ssub.s32 8192, 8192
      %105 = vsyncadd [#allocation14], %s104
      %s106 = sshll.u32 [#allocation15], 4
      %s107 = int_to_ptr.vmem [resolvable:$true] %s106
      %112 = dma.hbm_to_vmem [thread:$0]  %s10, 8192, %s107, [#allocation14], 512, 512, 32
    $region45: #{tpu_custom_call.1} parent=1 // pred_fallthru
      _
    // Predicated region
    $region46: #{tpu_custom_call.1} parent=1 // pred_check
      _
    $region47: #{tpu_custom_call.1} parent=1 // pred_check_branch
      %114 = sbr.rel (0) target = $region49
    $region48: #{tpu_custom_call.1} parent=1 // pred_region
      _
    $region49: #{tpu_custom_call.1} parent=1 // pred_fallthru
      _
    // Predicated region
    $region50: #{tpu_custom_call.1} parent=1 // pred_check
      _
    $region51: #{tpu_custom_call.1} parent=1 // pred_check_branch
      %116 = sbr.rel (0) target = $region53
    $region52: #{tpu_custom_call.1} parent=1 // pred_region
      %s118 = ssub.s32 2048, 2048
      %119 = vsyncadd [#allocation17], %s118
      %s120 = sshll.u32 [#allocation16], 4
      %s121 = int_to_ptr.vmem [resolvable:$true] %s120
      %126 = dma.hbm_to_vmem [thread:$0]  %s12, 2048, %s121, [#allocation17], 128, 128, 8
    $region53: #{tpu_custom_call.1} parent=1 // pred_fallthru
      _
    // Predicated region
    $region54: #{tpu_custom_call.1} parent=1 // pred_check
      _
    $region55: #{tpu_custom_call.1} parent=1 // pred_check_branch
      %128 = sbr.rel (0) target = $region57
    $region56: #{tpu_custom_call.1} parent=1 // pred_region
      _
    $region57: #{tpu_custom_call.1} parent=1 // pred_fallthru
      _
    // Predicated region
    $region58: #{tpu_custom_call.1} parent=1 // pred_check
      _
    $region59: #{tpu_custom_call.1} parent=1 // pred_check_branch
      %130 = sbr.rel (0) target = $region61
    $region60: #{tpu_custom_call.1} parent=1 // pred_region
      %131 = dma.done [#allocation5], 256
    $region61: #{tpu_custom_call.1} parent=1 // pred_fallthru
      _
    // Predicated region
    $region62: #{tpu_custom_call.1} parent=1 // pred_check
      _
    $region63: #{tpu_custom_call.1} parent=1 // pred_check_branch
      %133 = sbr.rel (0) target = $region65
    $region64: #{tpu_custom_call.1} parent=1 // pred_region
      %134 = dma.done [#allocation8], 16384
    $region65: #{tpu_custom_call.1} parent=1 // pred_fallthru
      _
    // Predicated region
    $region66: #{tpu_custom_call.1} parent=1 // pred_check
      _
    $region67: #{tpu_custom_call.1} parent=1 // pred_check_branch
      %136 = sbr.rel (0) target = $region69
    $region68: #{tpu_custom_call.1} parent=1 // pred_region
      %137 = dma.done [#allocation8], 16
    $region69: #{tpu_custom_call.1} parent=1 // pred_fallthru
      _
    // Predicated region
    $region70: #{tpu_custom_call.1} parent=1 // pred_check
      _
    $region71: #{tpu_custom_call.1} parent=1 // pred_check_branch
      %139 = sbr.rel (0) target = $region73
    $region72: #{tpu_custom_call.1} parent=1 // pred_region
      %140 = dma.done [#allocation11], 8192
    $region73: #{tpu_custom_call.1} parent=1 // pred_fallthru
      _
    // Predicated region
    $region74: #{tpu_custom_call.1} parent=1 // pred_check
      _
    $region75: #{tpu_custom_call.1} parent=1 // pred_check_branch
      %142 = sbr.rel (0) target = $region77
    $region76: #{tpu_custom_call.1} parent=1 // pred_region
      %143 = dma.done [#allocation11], 8192
    $region77: #{tpu_custom_call.1} parent=1 // pred_fallthru
      _
    // Predicated region
    $region78: #{tpu_custom_call.1} parent=1 // pred_check
      _
    $region79: #{tpu_custom_call.1} parent=1 // pred_check_branch
      %145 = sbr.rel (0) target = $region81
    $region80: #{tpu_custom_call.1} parent=1 // pred_region
      %146 = dma.done [#allocation14], 8192
    $region81: #{tpu_custom_call.1} parent=1 // pred_fallthru
      _
    // Predicated region
    $region82: #{tpu_custom_call.1} parent=1 // pred_check
      _
    $region83: #{tpu_custom_call.1} parent=1 // pred_check_branch
      %148 = sbr.rel (0) target = $region85
    $region84: #{tpu_custom_call.1} parent=1 // pred_region
      %149 = dma.done [#allocation14], 8192
    $region85: #{tpu_custom_call.1} parent=1 // pred_fallthru
      _
    // Predicated region
    $region86: #{tpu_custom_call.1} parent=1 // pred_check
      _
    $region87: #{tpu_custom_call.1} parent=1 // pred_check_branch
      %151 = sbr.rel (0) target = $region89
    $region88: #{tpu_custom_call.1} parent=1 // pred_region
      %152 = dma.done [#allocation17], 2048
    $region89: #{tpu_custom_call.1} parent=1 // pred_fallthru
      _
    %v153 = vld [vmem:[#allocation4] sm:$0xff]
    %v154 = vld [vmem:[#allocation4 + $0x8] sm:$0xff]
    %v155 = vld [vmem:[#allocation7] sm:$0xff]
    %v156 = vld [vmem:[#allocation7 + $0x8] sm:$0xff]
    %v157 = vld [vmem:[#allocation7 + $0x10] sm:$0xff]
    %v158 = vld [vmem:[#allocation7 + $0x18] sm:$0xff]
    %v159 = vld [vmem:[#allocation7 + $0x20] sm:$0xff]
    %v160 = vld [vmem:[#allocation7 + $0x28] sm:$0xff]
    %v161 = vld [vmem:[#allocation7 + $0x30] sm:$0xff]
    %v162 = vld [vmem:[#allocation7 + $0x38] sm:$0xff]
    %v163 = vld [vmem:[#allocation7 + $0x40] sm:$0xff]
    %v164 = vld [vmem:[#allocation7 + $0x48] sm:$0xff]
    %v165 = vld [vmem:[#allocation7 + $0x50] sm:$0xff]
    %v166 = vld [vmem:[#allocation7 + $0x58] sm:$0xff]
    %v167 = vld [vmem:[#allocation7 + $0x60] sm:$0xff]
    %v168 = vld [vmem:[#allocation7 + $0x68] sm:$0xff]
    %v169 = vld [vmem:[#allocation7 + $0x70] sm:$0xff]
    %v170 = vld [vmem:[#allocation7 + $0x78] sm:$0xff]
    %v171 = vld [vmem:[#allocation7 + $0x80] sm:$0xff]
    %v172 = vld [vmem:[#allocation7 + $0x88] sm:$0xff]
    %v173 = vld [vmem:[#allocation7 + $0x90] sm:$0xff]
    %v174 = vld [vmem:[#allocation7 + $0x98] sm:$0xff]
    %v175 = vld [vmem:[#allocation7 + $0xa0] sm:$0xff]
    %v176 = vld [vmem:[#allocation7 + $0xa8] sm:$0xff]
    %v177 = vld [vmem:[#allocation7 + $0xb0] sm:$0xff]
    %v178 = vld [vmem:[#allocation7 + $0xb8] sm:$0xff]
    %v179 = vld [vmem:[#allocation7 + $0xc0] sm:$0xff]
    %v180 = vld [vmem:[#allocation7 + $0xc8] sm:$0xff]
    %v181 = vld [vmem:[#allocation7 + $0xd0] sm:$0xff]
    %v182 = vld [vmem:[#allocation7 + $0xd8] sm:$0xff]
    %v183 = vld [vmem:[#allocation7 + $0xe0] sm:$0xff]
    %v184 = vld [vmem:[#allocation7 + $0xe8] sm:$0xff]
    %v185 = vld [vmem:[#allocation7 + $0xf0] sm:$0xff]
    %v186 = vld [vmem:[#allocation7 + $0xf8] sm:$0xff]
    %v187 = vld [vmem:[#allocation7 + $0x100] sm:$0xff]
    %v188 = vld [vmem:[#allocation7 + $0x108] sm:$0xff]
    %v189 = vld [vmem:[#allocation7 + $0x110] sm:$0xff]
    %v190 = vld [vmem:[#allocation7 + $0x118] sm:$0xff]
    %v191 = vld [vmem:[#allocation7 + $0x120] sm:$0xff]
    %v192 = vld [vmem:[#allocation7 + $0x128] sm:$0xff]
    %v193 = vld [vmem:[#allocation7 + $0x130] sm:$0xff]
    %v194 = vld [vmem:[#allocation7 + $0x138] sm:$0xff]
    %v195 = vld [vmem:[#allocation7 + $0x140] sm:$0xff]
    %v196 = vld [vmem:[#allocation7 + $0x148] sm:$0xff]
    %v197 = vld [vmem:[#allocation7 + $0x150] sm:$0xff]
    %v198 = vld [vmem:[#allocation7 + $0x158] sm:$0xff]
    %v199 = vld [vmem:[#allocation7 + $0x160] sm:$0xff]
    %v200 = vld [vmem:[#allocation7 + $0x168] sm:$0xff]
    %v201 = vld [vmem:[#allocation7 + $0x170] sm:$0xff]
    %v202 = vld [vmem:[#allocation7 + $0x178] sm:$0xff]
    %v203 = vld [vmem:[#allocation7 + $0x180] sm:$0xff]
    %v204 = vld [vmem:[#allocation7 + $0x188] sm:$0xff]
    %v205 = vld [vmem:[#allocation7 + $0x190] sm:$0xff]
    %v206 = vld [vmem:[#allocation7 + $0x198] sm:$0xff]
    %v207 = vld [vmem:[#allocation7 + $0x1a0] sm:$0xff]
    %v208 = vld [vmem:[#allocation7 + $0x1a8] sm:$0xff]
    %v209 = vld [vmem:[#allocation7 + $0x1b0] sm:$0xff]
    %v210 = vld [vmem:[#allocation7 + $0x1b8] sm:$0xff]
    %v211 = vld [vmem:[#allocation7 + $0x1c0] sm:$0xff]
    %v212 = vld [vmem:[#allocation7 + $0x1c8] sm:$0xff]
    %v213 = vld [vmem:[#allocation7 + $0x1d0] sm:$0xff]
    %v214 = vld [vmem:[#allocation7 + $0x1d8] sm:$0xff]
    %v215 = vld [vmem:[#allocation7 + $0x1e0] sm:$0xff]
    %v216 = vld [vmem:[#allocation7 + $0x1e8] sm:$0xff]
    %v217 = vld [vmem:[#allocation7 + $0x1f0] sm:$0xff]
    %v218 = vld [vmem:[#allocation7 + $0x1f8] sm:$0xff]
    %v219 = vld [vmem:[#allocation7 + $0x200] sm:$0xff]
    %v220 = vld [vmem:[#allocation7 + $0x208] sm:$0xff]
    %v221 = vld [vmem:[#allocation7 + $0x210] sm:$0xff]
    %v222 = vld [vmem:[#allocation7 + $0x218] sm:$0xff]
    %v223 = vld [vmem:[#allocation7 + $0x220] sm:$0xff]
    %v224 = vld [vmem:[#allocation7 + $0x228] sm:$0xff]
    %v225 = vld [vmem:[#allocation7 + $0x230] sm:$0xff]
    %v226 = vld [vmem:[#allocation7 + $0x238] sm:$0xff]
    %v227 = vld [vmem:[#allocation7 + $0x240] sm:$0xff]
    %v228 = vld [vmem:[#allocation7 + $0x248] sm:$0xff]
    %v229 = vld [vmem:[#allocation7 + $0x250] sm:$0xff]
    %v230 = vld [vmem:[#allocation7 + $0x258] sm:$0xff]
    %v231 = vld [vmem:[#allocation7 + $0x260] sm:$0xff]
    %v232 = vld [vmem:[#allocation7 + $0x268] sm:$0xff]
    %v233 = vld [vmem:[#allocation7 + $0x270] sm:$0xff]
    %v234 = vld [vmem:[#allocation7 + $0x278] sm:$0xff]
    %v235 = vld [vmem:[#allocation7 + $0x280] sm:$0xff]
    %v236 = vld [vmem:[#allocation7 + $0x288] sm:$0xff]
    %v237 = vld [vmem:[#allocation7 + $0x290] sm:$0xff]
    %v238 = vld [vmem:[#allocation7 + $0x298] sm:$0xff]
    %v239 = vld [vmem:[#allocation7 + $0x2a0] sm:$0xff]
    %v240 = vld [vmem:[#allocation7 + $0x2a8] sm:$0xff]
    %v241 = vld [vmem:[#allocation7 + $0x2b0] sm:$0xff]
    %v242 = vld [vmem:[#allocation7 + $0x2b8] sm:$0xff]
    %v243 = vld [vmem:[#allocation7 + $0x2c0] sm:$0xff]
    %v244 = vld [vmem:[#allocation7 + $0x2c8] sm:$0xff]
    %v245 = vld [vmem:[#allocation7 + $0x2d0] sm:$0xff]
    %v246 = vld [vmem:[#allocation7 + $0x2d8] sm:$0xff]
    %v247 = vld [vmem:[#allocation7 + $0x2e0] sm:$0xff]
    %v248 = vld [vmem:[#allocation7 + $0x2e8] sm:$0xff]
    %v249 = vld [vmem:[#allocation7 + $0x2f0] sm:$0xff]
    %v250 = vld [vmem:[#allocation7 + $0x2f8] sm:$0xff]
    %v251 = vld [vmem:[#allocation7 + $0x300] sm:$0xff]
    %v252 = vld [vmem:[#allocation7 + $0x308] sm:$0xff]
    %v253 = vld [vmem:[#allocation7 + $0x310] sm:$0xff]
    %v254 = vld [vmem:[#allocation7 + $0x318] sm:$0xff]
    %v255 = vld [vmem:[#allocation7 + $0x320] sm:$0xff]
    %v256 = vld [vmem:[#allocation7 + $0x328] sm:$0xff]
    %v257 = vld [vmem:[#allocation7 + $0x330] sm:$0xff]
    %v258 = vld [vmem:[#allocation7 + $0x338] sm:$0xff]
    %v259 = vld [vmem:[#allocation7 + $0x340] sm:$0xff]
    %v260 = vld [vmem:[#allocation7 + $0x348] sm:$0xff]
    %v261 = vld [vmem:[#allocation7 + $0x350] sm:$0xff]
    %v262 = vld [vmem:[#allocation7 + $0x358] sm:$0xff]
    %v263 = vld [vmem:[#allocation7 + $0x360] sm:$0xff]
    %v264 = vld [vmem:[#allocation7 + $0x368] sm:$0xff]
    %v265 = vld [vmem:[#allocation7 + $0x370] sm:$0xff]
    %v266 = vld [vmem:[#allocation7 + $0x378] sm:$0xff]
    %v267 = vld [vmem:[#allocation7 + $0x380] sm:$0xff]
    %v268 = vld [vmem:[#allocation7 + $0x388] sm:$0xff]
    %v269 = vld [vmem:[#allocation7 + $0x390] sm:$0xff]
    %v270 = vld [vmem:[#allocation7 + $0x398] sm:$0xff]
    %v271 = vld [vmem:[#allocation7 + $0x3a0] sm:$0xff]
    %v272 = vld [vmem:[#allocation7 + $0x3a8] sm:$0xff]
    %v273 = vld [vmem:[#allocation7 + $0x3b0] sm:$0xff]
    %v274 = vld [vmem:[#allocation7 + $0x3b8] sm:$0xff]
    %v275 = vld [vmem:[#allocation7 + $0x3c0] sm:$0xff]
    %v276 = vld [vmem:[#allocation7 + $0x3c8] sm:$0xff]
    %v277 = vld [vmem:[#allocation7 + $0x3d0] sm:$0xff]
    %v278 = vld [vmem:[#allocation7 + $0x3d8] sm:$0xff]
    %v279 = vld [vmem:[#allocation7 + $0x3e0] sm:$0xff]
    %v280 = vld [vmem:[#allocation7 + $0x3e8] sm:$0xff]
    %v281 = vld [vmem:[#allocation7 + $0x3f0] sm:$0xff]
    %v282 = vld [vmem:[#allocation7 + $0x3f8] sm:$0xff]
    %v283 = vld [vmem:[%s2] sm:$0x1]
    %v285 = vlaneseq
    %v286 = vshrl.u32 %v285, 7
    %v287 = vsub.s32 0, %v286
    %v288 = vrot.slane %v283, %v287
    %v292 = vcombine.high %v153, %v153
    %v294 = vunpack.c.l.s4 1983009808
    %v295 = vunpack.c.0.s8 %v294
    %v296 = vlaneseq
    %v297 = vshrl.u32 %v296, 7
    %v298 = vsub.s32 %v295, %v297
    %v299 = vrot.slane %v153, %v298
    %v301 = vunpack.c.l.s4 1983009808
    %v302 = vunpack.c.0.s8 %v301
    %v303 = vlaneseq
    %v304 = vshrl.u32 %v303, 7
    %v305 = vsub.s32 %v302, %v304
    %v306 = vrot.slane %v292, %v305
    %v307 = vcombine.high %v299, %v299
    %v308 = vcombine.high %v306, %v306
    %v309 = vcombine.high %v154, %v154
    %v311 = vunpack.c.l.s4 1983009808
    %v312 = vunpack.c.0.s8 %v311
    %v313 = vlaneseq
    %v314 = vshrl.u32 %v313, 7
    %v315 = vsub.s32 %v312, %v314
    %v316 = vrot.slane %v154, %v315
    %v318 = vunpack.c.l.s4 1983009808
    %v319 = vunpack.c.0.s8 %v318
    %v320 = vlaneseq
    %v321 = vshrl.u32 %v320, 7
    %v322 = vsub.s32 %v319, %v321
    %v323 = vrot.slane %v309, %v322
    %v324 = vcombine.high %v316, %v316
    %v325 = vcombine.high %v323, %v323
    %334 = vmatprep.subr.mxu0 0.0
    %335 = vmatpush1.msra.mxu0 %v155
    %336 = vmatprep.subr.mxu0 0.0
    %337 = vmatpush1.msra.mxu0 %v156
    %338 = vmatprep.subr.mxu0 0.0
    %339 = vmatpush1.msra.mxu0 %v157
    %340 = vmatprep.subr.mxu0 0.0
    %341 = vmatpush1.msra.mxu0 %v158
    %342 = vmatprep.subr.mxu0 0.0
    %343 = vmatpush1.msra.mxu0 %v159
    %344 = vmatprep.subr.mxu0 0.0
    %345 = vmatpush1.msra.mxu0 %v160
    %346 = vmatprep.subr.mxu0 0.0
    %347 = vmatpush1.msra.mxu0 %v161
    %348 = vmatprep.subr.mxu0 0.0
    %349 = vmatpush1.msra.mxu0 %v162
    %350 = vmatprep.subr.mxu0 0.0
    %351 = vmatpush1.msra.mxu0 %v163
    %352 = vmatprep.subr.mxu0 0.0
    %353 = vmatpush1.msra.mxu0 %v164
    %354 = vmatprep.subr.mxu0 0.0
    %355 = vmatpush1.msra.mxu0 %v165
    %356 = vmatprep.subr.mxu0 0.0
    %357 = vmatpush1.msra.mxu0 %v166
    %358 = vmatprep.subr.mxu0 0.0
    %359 = vmatpush1.msra.mxu0 %v167
    %360 = vmatprep.subr.mxu0 0.0
    %361 = vmatpush1.msra.mxu0 %v168
    %362 = vmatprep.subr.mxu0 0.0
    %363 = vmatpush1.msra.mxu0 %v169
    %364 = vmatprep.subr.mxu0 0.0
    %365 = vmatpush1.msra.mxu0 %v170
    %366 = vmatprep.subr.mxu0 0.0
    %367 = vmatpush1.msra.mxu0 %v171
    %368 = vmatprep.subr.mxu0 0.0
    %369 = vmatpush1.msra.mxu0 %v172
    %370 = vmatprep.subr.mxu0 0.0
    %371 = vmatpush1.msra.mxu0 %v173
    %372 = vmatprep.subr.mxu0 0.0
    %373 = vmatpush1.msra.mxu0 %v174
    %374 = vmatprep.subr.mxu0 0.0
    %375 = vmatpush1.msra.mxu0 %v175
    %376 = vmatprep.subr.mxu0 0.0
    %377 = vmatpush1.msra.mxu0 %v176
    %378 = vmatprep.subr.mxu0 0.0
    %379 = vmatpush1.msra.mxu0 %v177
    %380 = vmatprep.subr.mxu0 0.0
    %381 = vmatpush1.msra.mxu0 %v178
    %382 = vmatprep.subr.mxu0 0.0
    %383 = vmatpush1.msra.mxu0 %v179
    %384 = vmatprep.subr.mxu0 0.0
    %385 = vmatpush1.msra.mxu0 %v180
    %386 = vmatprep.subr.mxu0 0.0
    %387 = vmatpush1.msra.mxu0 %v181
    %388 = vmatprep.subr.mxu0 0.0
    %389 = vmatpush1.msra.mxu0 %v182
    %390 = vmatprep.subr.mxu0 0.0
    %391 = vmatpush1.msra.mxu0 %v183
    %392 = vmatprep.subr.mxu0 0.0
    %393 = vmatpush1.msra.mxu0 %v184
    %394 = vmatprep.subr.mxu0 0.0
    %395 = vmatpush1.msra.mxu0 %v185
    %396 = vmatprep.subr.mxu0 0.0
    %397 = vmatpush1.msra.mxu0 %v186
    %398 = vmatprep.mubr.f32.mxu0 %v307
    %399 = vmatmul.mubr.f32.gmra.mrb[0].mxu0 %v299
    %v400 = vpop.f32.mrb[0].mxu0
    %v401 = vadd.f32 %v288, %v400
    %v402 = vpop.f32.mrb[0].mxu0
    %403 = vdwg.mxu0
    %404 = vmatprep.subr.mxu0 0.0
    %405 = vmatpush1.msra.mxu0 %v187
    %406 = vmatprep.subr.mxu0 0.0
    %407 = vmatpush1.msra.mxu0 %v188
    %408 = vmatprep.subr.mxu0 0.0
    %409 = vmatpush1.msra.mxu0 %v189
    %410 = vmatprep.subr.mxu0 0.0
    %411 = vmatpush1.msra.mxu0 %v190
    %412 = vmatprep.subr.mxu0 0.0
    %413 = vmatpush1.msra.mxu0 %v191
    %414 = vmatprep.subr.mxu0 0.0
    %415 = vmatpush1.msra.mxu0 %v192
    %416 = vmatprep.subr.mxu0 0.0
    %417 = vmatpush1.msra.mxu0 %v193
    %418 = vmatprep.subr.mxu0 0.0
    %419 = vmatpush1.msra.mxu0 %v194
    %420 = vmatprep.subr.mxu0 0.0
    %421 = vmatpush1.msra.mxu0 %v195
    %422 = vmatprep.subr.mxu0 0.0
    %423 = vmatpush1.msra.mxu0 %v196
    %424 = vmatprep.subr.mxu0 0.0
    %425 = vmatpush1.msra.mxu0 %v197
    %426 = vmatprep.subr.mxu0 0.0
    %427 = vmatpush1.msra.mxu0 %v198
    %428 = vmatprep.subr.mxu0 0.0
    %429 = vmatpush1.msra.mxu0 %v199
    %430 = vmatprep.subr.mxu0 0.0
    %431 = vmatpush1.msra.mxu0 %v200
    %432 = vmatprep.subr.mxu0 0.0
    %433 = vmatpush1.msra.mxu0 %v201
    %434 = vmatprep.subr.mxu0 0.0
    %435 = vmatpush1.msra.mxu0 %v202
    %436 = vmatprep.subr.mxu0 0.0
    %437 = vmatpush1.msra.mxu0 %v203
    %438 = vmatprep.subr.mxu0 0.0
    %439 = vmatpush1.msra.mxu0 %v204
    %440 = vmatprep.subr.mxu0 0.0
    %441 = vmatpush1.msra.mxu0 %v205
    %442 = vmatprep.subr.mxu0 0.0
    %443 = vmatpush1.msra.mxu0 %v206
    %444 = vmatprep.subr.mxu0 0.0
    %445 = vmatpush1.msra.mxu0 %v207
    %446 = vmatprep.subr.mxu0 0.0
    %447 = vmatpush1.msra.mxu0 %v208
    %448 = vmatprep.subr.mxu0 0.0
    %449 = vmatpush1.msra.mxu0 %v209
    %450 = vmatprep.subr.mxu0 0.0
    %451 = vmatpush1.msra.mxu0 %v210
    %452 = vmatprep.subr.mxu0 0.0
    %453 = vmatpush1.msra.mxu0 %v211
    %454 = vmatprep.subr.mxu0 0.0
    %455 = vmatpush1.msra.mxu0 %v212
    %456 = vmatprep.subr.mxu0 0.0
    %457 = vmatpush1.msra.mxu0 %v213
    %458 = vmatprep.subr.mxu0 0.0
    %459 = vmatpush1.msra.mxu0 %v214
    %460 = vmatprep.subr.mxu0 0.0
    %461 = vmatpush1.msra.mxu0 %v215
    %462 = vmatprep.subr.mxu0 0.0
    %463 = vmatpush1.msra.mxu0 %v216
    %464 = vmatprep.subr.mxu0 0.0
    %465 = vmatpush1.msra.mxu0 %v217
    %466 = vmatprep.subr.mxu0 0.0
    %467 = vmatpush1.msra.mxu0 %v218
    %468 = vmatprep.mubr.f32.mxu0 %v308
    %469 = vmatmul.mubr.f32.gmra.mrb[0].mxu0 %v306
    %v470 = vpop.f32.mrb[0].mxu0
    %v471 = vadd.f32 %v401, %v470
    %v472 = vpop.f32.mrb[0].mxu0
    %473 = vdwg.mxu0
    %474 = vmatprep.subr.mxu0 0.0
    %475 = vmatpush1.msra.mxu0 %v219
    %476 = vmatprep.subr.mxu0 0.0
    %477 = vmatpush1.msra.mxu0 %v220
    %478 = vmatprep.subr.mxu0 0.0
    %479 = vmatpush1.msra.mxu0 %v221
    %480 = vmatprep.subr.mxu0 0.0
    %481 = vmatpush1.msra.mxu0 %v222
    %482 = vmatprep.subr.mxu0 0.0
    %483 = vmatpush1.msra.mxu0 %v223
    %484 = vmatprep.subr.mxu0 0.0
    %485 = vmatpush1.msra.mxu0 %v224
    %486 = vmatprep.subr.mxu0 0.0
    %487 = vmatpush1.msra.mxu0 %v225
    %488 = vmatprep.subr.mxu0 0.0
    %489 = vmatpush1.msra.mxu0 %v226
    %490 = vmatprep.subr.mxu0 0.0
    %491 = vmatpush1.msra.mxu0 %v227
    %492 = vmatprep.subr.mxu0 0.0
    %493 = vmatpush1.msra.mxu0 %v228
    %494 = vmatprep.subr.mxu0 0.0
    %495 = vmatpush1.msra.mxu0 %v229
    %496 = vmatprep.subr.mxu0 0.0
    %497 = vmatpush1.msra.mxu0 %v230
    %498 = vmatprep.subr.mxu0 0.0
    %499 = vmatpush1.msra.mxu0 %v231
    %500 = vmatprep.subr.mxu0 0.0
    %501 = vmatpush1.msra.mxu0 %v232
    %502 = vmatprep.subr.mxu0 0.0
    %503 = vmatpush1.msra.mxu0 %v233
    %504 = vmatprep.subr.mxu0 0.0
    %505 = vmatpush1.msra.mxu0 %v234
    %506 = vmatprep.subr.mxu0 0.0
    %507 = vmatpush1.msra.mxu0 %v235
    %508 = vmatprep.subr.mxu0 0.0
    %509 = vmatpush1.msra.mxu0 %v236
    %510 = vmatprep.subr.mxu0 0.0
    %511 = vmatpush1.msra.mxu0 %v237
    %512 = vmatprep.subr.mxu0 0.0
    %513 = vmatpush1.msra.mxu0 %v238
    %514 = vmatprep.subr.mxu0 0.0
    %515 = vmatpush1.msra.mxu0 %v239
    %516 = vmatprep.subr.mxu0 0.0
    %517 = vmatpush1.msra.mxu0 %v240
    %518 = vmatprep.subr.mxu0 0.0
    %519 = vmatpush1.msra.mxu0 %v241
    %520 = vmatprep.subr.mxu0 0.0
    %521 = vmatpush1.msra.mxu0 %v242
    %522 = vmatprep.subr.mxu0 0.0
    %523 = vmatpush1.msra.mxu0 %v243
    %524 = vmatprep.subr.mxu0 0.0
    %525 = vmatpush1.msra.mxu0 %v244
    %526 = vmatprep.subr.mxu0 0.0
    %527 = vmatpush1.msra.mxu0 %v245
    %528 = vmatprep.subr.mxu0 0.0
    %529 = vmatpush1.msra.mxu0 %v246
    %530 = vmatprep.subr.mxu0 0.0
    %531 = vmatpush1.msra.mxu0 %v247
    %532 = vmatprep.subr.mxu0 0.0
    %533 = vmatpush1.msra.mxu0 %v248
    %534 = vmatprep.subr.mxu0 0.0
    %535 = vmatpush1.msra.mxu0 %v249
    %536 = vmatprep.subr.mxu0 0.0
    %537 = vmatpush1.msra.mxu0 %v250
    %538 = vmatprep.mubr.f32.mxu0 %v324
    %539 = vmatmul.mubr.f32.gmra.mrb[0].mxu0 %v316
    %v540 = vpop.f32.mrb[0].mxu0
    %v541 = vadd.f32 %v471, %v540
    %v542 = vpop.f32.mrb[0].mxu0
    %543 = vdwg.mxu0
    %544 = vmatprep.subr.mxu0 0.0
    %545 = vmatpush1.msra.mxu0 %v251
    %546 = vmatprep.subr.mxu0 0.0
    %547 = vmatpush1.msra.mxu0 %v252
    %548 = vmatprep.subr.mxu0 0.0
    %549 = vmatpush1.msra.mxu0 %v253
    %550 = vmatprep.subr.mxu0 0.0
    %551 = vmatpush1.msra.mxu0 %v254
    %552 = vmatprep.subr.mxu0 0.0
    %553 = vmatpush1.msra.mxu0 %v255
    %554 = vmatprep.subr.mxu0 0.0
    %555 = vmatpush1.msra.mxu0 %v256
    %556 = vmatprep.subr.mxu0 0.0
    %557 = vmatpush1.msra.mxu0 %v257
    %558 = vmatprep.subr.mxu0 0.0
    %559 = vmatpush1.msra.mxu0 %v258
    %560 = vmatprep.subr.mxu0 0.0
    %561 = vmatpush1.msra.mxu0 %v259
    %562 = vmatprep.subr.mxu0 0.0
    %563 = vmatpush1.msra.mxu0 %v260
    %564 = vmatprep.subr.mxu0 0.0
    %565 = vmatpush1.msra.mxu0 %v261
    %566 = vmatprep.subr.mxu0 0.0
    %567 = vmatpush1.msra.mxu0 %v262
    %568 = vmatprep.subr.mxu0 0.0
    %569 = vmatpush1.msra.mxu0 %v263
    %570 = vmatprep.subr.mxu0 0.0
    %571 = vmatpush1.msra.mxu0 %v264
    %572 = vmatprep.subr.mxu0 0.0
    %573 = vmatpush1.msra.mxu0 %v265
    %574 = vmatprep.subr.mxu0 0.0
    %575 = vmatpush1.msra.mxu0 %v266
    %576 = vmatprep.subr.mxu0 0.0
    %577 = vmatpush1.msra.mxu0 %v267
    %578 = vmatprep.subr.mxu0 0.0
    %579 = vmatpush1.msra.mxu0 %v268
    %580 = vmatprep.subr.mxu0 0.0
    %581 = vmatpush1.msra.mxu0 %v269
    %582 = vmatprep.subr.mxu0 0.0
    %583 = vmatpush1.msra.mxu0 %v270
    %584 = vmatprep.subr.mxu0 0.0
    %585 = vmatpush1.msra.mxu0 %v271
    %586 = vmatprep.subr.mxu0 0.0
    %587 = vmatpush1.msra.mxu0 %v272
    %588 = vmatprep.subr.mxu0 0.0
    %589 = vmatpush1.msra.mxu0 %v273
    %590 = vmatprep.subr.mxu0 0.0
    %591 = vmatpush1.msra.mxu0 %v274
    %592 = vmatprep.subr.mxu0 0.0
    %593 = vmatpush1.msra.mxu0 %v275
    %594 = vmatprep.subr.mxu0 0.0
    %595 = vmatpush1.msra.mxu0 %v276
    %596 = vmatprep.subr.mxu0 0.0
    %597 = vmatpush1.msra.mxu0 %v277
    %598 = vmatprep.subr.mxu0 0.0
    %599 = vmatpush1.msra.mxu0 %v278
    %600 = vmatprep.subr.mxu0 0.0
    %601 = vmatpush1.msra.mxu0 %v279
    %602 = vmatprep.subr.mxu0 0.0
    %603 = vmatpush1.msra.mxu0 %v280
    %604 = vmatprep.subr.mxu0 0.0
    %605 = vmatpush1.msra.mxu0 %v281
    %606 = vmatprep.subr.mxu0 0.0
    %607 = vmatpush1.msra.mxu0 %v282
    %608 = vmatprep.mubr.f32.mxu0 %v325
    %609 = vmatmul.mubr.f32.gmra.mrb[0].mxu0 %v323
    %v610 = vpop.f32.mrb[0].mxu0
    %v611 = vadd.f32 %v541, %v610
    %v612 = vpop.f32.mrb[0].mxu0
    %613 = vdwg.mxu0
    %vm614 = vcmask 1041408
    %v615 = vsel %vm614, %v611, 0.0
    %v616 = vrot.slane %v615, 4
    %v617 = vadd.f32 %v615, %v616
    %v618 = vrot.slane %v617, 2
    %v619 = vadd.f32 %v617, %v618
    %v620 = vrot.slane %v619, 1
    %v621 = vadd.f32 %v619, %v620
    %v622 = vrcp.pop 2.0
    %v623 = vmul.f32 %v621, %v622
    %v624 = vsub.f32 %v611, %v623
    %v625 = vmul.f32 %v624, %v624
    %v626 = vsel %vm614, %v625, 0.0
    %v627 = vrot.slane %v626, 4
    %v628 = vadd.f32 %v626, %v627
    %v629 = vrot.slane %v628, 2
    %v630 = vadd.f32 %v628, %v629
    %v631 = vrot.slane %v630, 1
    %v632 = vadd.f32 %v630, %v631
    %v633 = vmul.f32 %v632, %v622
    %v634 = vadd.f32 %v633, 1e-05
    %v635 = vrsqrt.pop %v634
    %v636 = vmul.f32 %v624, %v635
    %v637 = vld [vmem:[%s3] sm:$0x1]
    %v639 = vlaneseq
    %v640 = vshrl.u32 %v639, 7
    %v641 = vsub.s32 0, %v640
    %v642 = vrot.slane %v637, %v641
    %v644 = vmul.f32 %v636, %v642
    %v645 = vld [vmem:[#allocation9] sm:$0x1]
    %v647 = vlaneseq
    %v648 = vshrl.u32 %v647, 7
    %v649 = vsub.s32 0, %v648
    %v650 = vrot.slane %v645, %v649
    %v652 = vadd.f32 %v644, %v650
    %653 = vst [vmem:[#allocation2] sm:$0x3] %v652
    %v654 = vld [vmem:[%s5] sm:$0xff]
    %v655 = vld [vmem:[%s5 + $0x8] sm:$0x3f]
    %656 = vst [vmem:[#allocation2 + $0x2] sm:$0xff] %v654
    %657 = vst [vmem:[#allocation2 + $0xa] sm:$0x3f] %v655
    %v658 = vld [vmem:[#allocation2] sm:$0xff]
    %v659 = vld [vmem:[#allocation2 + $0x8] sm:$0xff]
    %v660 = vld [vmem:[#allocation10] sm:$0xff]
    %v661 = vld [vmem:[#allocation10 + $0x8] sm:$0xff]
    %v662 = vld [vmem:[#allocation10 + $0x10] sm:$0xff]
    %v663 = vld [vmem:[#allocation10 + $0x18] sm:$0xff]
    %v664 = vld [vmem:[#allocation10 + $0x20] sm:$0xff]
    %v665 = vld [vmem:[#allocation10 + $0x28] sm:$0xff]
    %v666 = vld [vmem:[#allocation10 + $0x30] sm:$0xff]
    %v667 = vld [vmem:[#allocation10 + $0x38] sm:$0xff]
    %v668 = vld [vmem:[#allocation10 + $0x40] sm:$0xff]
    %v669 = vld [vmem:[#allocation10 + $0x48] sm:$0xff]
    %v670 = vld [vmem:[#allocation10 + $0x50] sm:$0xff]
    %v671 = vld [vmem:[#allocation10 + $0x58] sm:$0xff]
    %v672 = vld [vmem:[#allocation10 + $0x60] sm:$0xff]
    %v673 = vld [vmem:[#allocation10 + $0x68] sm:$0xff]
    %v674 = vld [vmem:[#allocation10 + $0x70] sm:$0xff]
    %v675 = vld [vmem:[#allocation10 + $0x78] sm:$0xff]
    %v676 = vld [vmem:[#allocation10 + $0x80] sm:$0xff]
    %v677 = vld [vmem:[#allocation10 + $0x88] sm:$0xff]
    %v678 = vld [vmem:[#allocation10 + $0x90] sm:$0xff]
    %v679 = vld [vmem:[#allocation10 + $0x98] sm:$0xff]
    %v680 = vld [vmem:[#allocation10 + $0xa0] sm:$0xff]
    %v681 = vld [vmem:[#allocation10 + $0xa8] sm:$0xff]
    %v682 = vld [vmem:[#allocation10 + $0xb0] sm:$0xff]
    %v683 = vld [vmem:[#allocation10 + $0xb8] sm:$0xff]
    %v684 = vld [vmem:[#allocation10 + $0xc0] sm:$0xff]
    %v685 = vld [vmem:[#allocation10 + $0xc8] sm:$0xff]
    %v686 = vld [vmem:[#allocation10 + $0xd0] sm:$0xff]
    %v687 = vld [vmem:[#allocation10 + $0xd8] sm:$0xff]
    %v688 = vld [vmem:[#allocation10 + $0xe0] sm:$0xff]
    %v689 = vld [vmem:[#allocation10 + $0xe8] sm:$0xff]
    %v690 = vld [vmem:[#allocation10 + $0xf0] sm:$0xff]
    %v691 = vld [vmem:[#allocation10 + $0xf8] sm:$0xff]
    %v692 = vld [vmem:[#allocation10 + $0x100] sm:$0xff]
    %v693 = vld [vmem:[#allocation10 + $0x108] sm:$0xff]
    %v694 = vld [vmem:[#allocation10 + $0x110] sm:$0xff]
    %v695 = vld [vmem:[#allocation10 + $0x118] sm:$0xff]
    %v696 = vld [vmem:[#allocation10 + $0x120] sm:$0xff]
    %v697 = vld [vmem:[#allocation10 + $0x128] sm:$0xff]
    %v698 = vld [vmem:[#allocation10 + $0x130] sm:$0xff]
    %v699 = vld [vmem:[#allocation10 + $0x138] sm:$0xff]
    %v700 = vld [vmem:[#allocation10 + $0x140] sm:$0xff]
    %v701 = vld [vmem:[#allocation10 + $0x148] sm:$0xff]
    %v702 = vld [vmem:[#allocation10 + $0x150] sm:$0xff]
    %v703 = vld [vmem:[#allocation10 + $0x158] sm:$0xff]
    %v704 = vld [vmem:[#allocation10 + $0x160] sm:$0xff]
    %v705 = vld [vmem:[#allocation10 + $0x168] sm:$0xff]
    %v706 = vld [vmem:[#allocation10 + $0x170] sm:$0xff]
    %v707 = vld [vmem:[#allocation10 + $0x178] sm:$0xff]
    %v708 = vld [vmem:[#allocation10 + $0x180] sm:$0xff]
    %v709 = vld [vmem:[#allocation10 + $0x188] sm:$0xff]
    %v710 = vld [vmem:[#allocation10 + $0x190] sm:$0xff]
    %v711 = vld [vmem:[#allocation10 + $0x198] sm:$0xff]
    %v712 = vld [vmem:[#allocation10 + $0x1a0] sm:$0xff]
    %v713 = vld [vmem:[#allocation10 + $0x1a8] sm:$0xff]
    %v714 = vld [vmem:[#allocation10 + $0x1b0] sm:$0xff]
    %v715 = vld [vmem:[#allocation10 + $0x1b8] sm:$0xff]
    %v716 = vld [vmem:[#allocation10 + $0x1c0] sm:$0xff]
    %v717 = vld [vmem:[#allocation10 + $0x1c8] sm:$0xff]
    %v718 = vld [vmem:[#allocation10 + $0x1d0] sm:$0xff]
    %v719 = vld [vmem:[#allocation10 + $0x1d8] sm:$0xff]
    %v720 = vld [vmem:[#allocation10 + $0x1e0] sm:$0xff]
    %v721 = vld [vmem:[#allocation10 + $0x1e8] sm:$0xff]
    %v722 = vld [vmem:[#allocation10 + $0x1f0] sm:$0xff]
    %v723 = vld [vmem:[#allocation10 + $0x1f8] sm:$0xff]
    %v724 = vld [vmem:[%s8] sm:$0xf]
    %v726 = vlaneseq
    %v727 = vshrl.u32 %v726, 7
    %v728 = vsub.s32 0, %v727
    %v729 = vrot.slane %v724, %v728
    %v730 = vlaneseq
    %v731 = vshrl.u32 %v730, 7
    %v732 = vsub.s32 1, %v731
    %v733 = vrot.slane %v724, %v732
    %v734 = vlaneseq
    %v735 = vshrl.u32 %v734, 7
    %v736 = vsub.s32 2, %v735
    %v737 = vrot.slane %v724, %v736
    %v738 = vlaneseq
    %v739 = vshrl.u32 %v738, 7
    %v740 = vsub.s32 3, %v739
    %v741 = vrot.slane %v724, %v740
    %746 = vmatprep.subr.mxu0 %v661
    %747 = vmatpush1.msra.mxu0 %v660
    %748 = vmatprep.subr.mxu0 %v665
    %749 = vmatpush1.msra.mxu0 %v664
    %750 = vmatprep.subr.mxu0 %v669
    %751 = vmatpush1.msra.mxu0 %v668
    %752 = vmatprep.subr.mxu0 %v673
    %753 = vmatpush1.msra.mxu0 %v672
    %754 = vmatprep.subr.mxu0 %v677
    %755 = vmatpush1.msra.mxu0 %v676
    %756 = vmatprep.subr.mxu0 %v681
    %757 = vmatpush1.msra.mxu0 %v680
    %758 = vmatprep.subr.mxu0 %v685
    %759 = vmatpush1.msra.mxu0 %v684
    %760 = vmatprep.subr.mxu0 %v689
    %761 = vmatpush1.msra.mxu0 %v688
    %762 = vmatprep.subr.mxu0 %v693
    %763 = vmatpush1.msra.mxu0 %v692
    %764 = vmatprep.subr.mxu0 %v697
    %765 = vmatpush1.msra.mxu0 %v696
    %766 = vmatprep.subr.mxu0 %v701
    %767 = vmatpush1.msra.mxu0 %v700
    %768 = vmatprep.subr.mxu0 %v705
    %769 = vmatpush1.msra.mxu0 %v704
    %770 = vmatprep.subr.mxu0 %v709
    %771 = vmatpush1.msra.mxu0 %v708
    %772 = vmatprep.subr.mxu0 %v713
    %773 = vmatpush1.msra.mxu0 %v712
    %774 = vmatprep.subr.mxu0 %v717
    %775 = vmatpush1.msra.mxu0 %v716
    %776 = vmatprep.subr.mxu0 %v721
    %777 = vmatpush1.msra.mxu0 %v720
    %778 = vmatprep.subr.mxu0 0.0
    %779 = vmatpush1.msra.mxu0 0.0
    %780 = vmatprep.subr.mxu0 0.0
    %781 = vmatpush1.msra.mxu0 0.0
    %782 = vmatprep.subr.mxu0 0.0
    %783 = vmatpush1.msra.mxu0 0.0
    %784 = vmatprep.subr.mxu0 0.0
    %785 = vmatpush1.msra.mxu0 0.0
    %786 = vmatprep.subr.mxu0 0.0
    %787 = vmatpush1.msra.mxu0 0.0
    %788 = vmatprep.subr.mxu0 0.0
    %789 = vmatpush1.msra.mxu0 0.0
    %790 = vmatprep.subr.mxu0 0.0
    %791 = vmatpush1.msra.mxu0 0.0
    %792 = vmatprep.subr.mxu0 0.0
    %793 = vmatpush1.msra.mxu0 0.0
    %794 = vmatprep.subr.mxu0 0.0
    %795 = vmatpush1.msra.mxu0 0.0
    %796 = vmatprep.subr.mxu0 0.0
    %797 = vmatpush1.msra.mxu0 0.0
    %798 = vmatprep.subr.mxu0 0.0
    %799 = vmatpush1.msra.mxu0 0.0
    %800 = vmatprep.subr.mxu0 0.0
    %801 = vmatpush1.msra.mxu0 0.0
    %802 = vmatprep.subr.mxu0 0.0
    %803 = vmatpush1.msra.mxu0 0.0
    %804 = vmatprep.subr.mxu0 0.0
    %805 = vmatpush1.msra.mxu0 0.0
    %806 = vmatprep.subr.mxu0 0.0
    %807 = vmatpush1.msra.mxu0 0.0
    %808 = vmatprep.subr.mxu0 0.0
    %809 = vmatpush1.msra.mxu0 0.0
    %810 = vmatprep.mubr.f32.mxu0 0.0
    %811 = vmatmul.mubr.f32.gmra.mrb[0].mxu0 %v658
    %v812 = vpop.f32.mrb[0].mxu0
    %v813 = vadd.f32 %v729, %v812
    %v814 = vpop.f32.mrb[0].mxu0
    %v815 = vadd.f32 %v733, %v814
    %816 = vmatprep.mubr.f32.mxu0 0.0
    %817 = vmatmul.mubr.f32.gmra.mrb[0].mxu0 %v659
    %v818 = vpop.f32.mrb[0].mxu0
    %v819 = vadd.f32 %v729, %v818
    %v820 = vpop.f32.mrb[0].mxu0
    %v821 = vadd.f32 %v733, %v820
    %822 = vdwg.mxu0
    %823 = vmatprep.subr.mxu0 %v663
    %824 = vmatpush1.msra.mxu0 %v662
    %825 = vmatprep.subr.mxu0 %v667
    %826 = vmatpush1.msra.mxu0 %v666
    %827 = vmatprep.subr.mxu0 %v671
    %828 = vmatpush1.msra.mxu0 %v670
    %829 = vmatprep.subr.mxu0 %v675
    %830 = vmatpush1.msra.mxu0 %v674
    %831 = vmatprep.subr.mxu0 %v679
    %832 = vmatpush1.msra.mxu0 %v678
    %833 = vmatprep.subr.mxu0 %v683
    %834 = vmatpush1.msra.mxu0 %v682
    %835 = vmatprep.subr.mxu0 %v687
    %836 = vmatpush1.msra.mxu0 %v686
    %837 = vmatprep.subr.mxu0 %v691
    %838 = vmatpush1.msra.mxu0 %v690
    %839 = vmatprep.subr.mxu0 %v695
    %840 = vmatpush1.msra.mxu0 %v694
    %841 = vmatprep.subr.mxu0 %v699
    %842 = vmatpush1.msra.mxu0 %v698
    %843 = vmatprep.subr.mxu0 %v703
    %844 = vmatpush1.msra.mxu0 %v702
    %845 = vmatprep.subr.mxu0 %v707
    %846 = vmatpush1.msra.mxu0 %v706
    %847 = vmatprep.subr.mxu0 %v711
    %848 = vmatpush1.msra.mxu0 %v710
    %849 = vmatprep.subr.mxu0 %v715
    %850 = vmatpush1.msra.mxu0 %v714
    %851 = vmatprep.subr.mxu0 %v719
    %852 = vmatpush1.msra.mxu0 %v718
    %853 = vmatprep.subr.mxu0 %v723
    %854 = vmatpush1.msra.mxu0 %v722
    %855 = vmatprep.subr.mxu0 0.0
    %856 = vmatpush1.msra.mxu0 0.0
    %857 = vmatprep.subr.mxu0 0.0
    %858 = vmatpush1.msra.mxu0 0.0
    %859 = vmatprep.subr.mxu0 0.0
    %860 = vmatpush1.msra.mxu0 0.0
    %861 = vmatprep.subr.mxu0 0.0
    %862 = vmatpush1.msra.mxu0 0.0
    %863 = vmatprep.subr.mxu0 0.0
    %864 = vmatpush1.msra.mxu0 0.0
    %865 = vmatprep.subr.mxu0 0.0
    %866 = vmatpush1.msra.mxu0 0.0
    %867 = vmatprep.subr.mxu0 0.0
    %868 = vmatpush1.msra.mxu0 0.0
    %869 = vmatprep.subr.mxu0 0.0
    %870 = vmatpush1.msra.mxu0 0.0
    %871 = vmatprep.subr.mxu0 0.0
    %872 = vmatpush1.msra.mxu0 0.0
    %873 = vmatprep.subr.mxu0 0.0
    %874 = vmatpush1.msra.mxu0 0.0
    %875 = vmatprep.subr.mxu0 0.0
    %876 = vmatpush1.msra.mxu0 0.0
    %877 = vmatprep.subr.mxu0 0.0
    %878 = vmatpush1.msra.mxu0 0.0
    %879 = vmatprep.subr.mxu0 0.0
    %880 = vmatpush1.msra.mxu0 0.0
    %881 = vmatprep.subr.mxu0 0.0
    %882 = vmatpush1.msra.mxu0 0.0
    %883 = vmatprep.subr.mxu0 0.0
    %884 = vmatpush1.msra.mxu0 0.0
    %885 = vmatprep.subr.mxu0 0.0
    %886 = vmatpush1.msra.mxu0 0.0
    %887 = vmatprep.mubr.f32.mxu0 0.0
    %888 = vmatmul.mubr.f32.gmra.mrb[0].mxu0 %v658
    %v889 = vpop.f32.mrb[0].mxu0
    %v890 = vadd.f32 %v737, %v889
    %v891 = vpop.f32.mrb[0].mxu0
    %v892 = vadd.f32 %v741, %v891
    %893 = vmatprep.mubr.f32.mxu0 0.0
    %894 = vmatmul.mubr.f32.gmra.mrb[0].mxu0 %v659
    %v895 = vpop.f32.mrb[0].mxu0
    %v896 = vadd.f32 %v737, %v895
    %v897 = vpop.f32.mrb[0].mxu0
    %v898 = vadd.f32 %v741, %v897
    %899 = vdwg.mxu0
    %v900 = vld [vmem:[#allocation12] sm:$0xff]
    %v901 = vld [vmem:[#allocation12 + $0x8] sm:$0xff]
    %v902 = vld [vmem:[#allocation12 + $0x10] sm:$0xff]
    %v903 = vld [vmem:[#allocation12 + $0x18] sm:$0xff]
    %v904 = vld [vmem:[#allocation12 + $0x20] sm:$0xff]
    %v905 = vld [vmem:[#allocation12 + $0x28] sm:$0xff]
    %v906 = vld [vmem:[#allocation12 + $0x30] sm:$0xff]
    %v907 = vld [vmem:[#allocation12 + $0x38] sm:$0xff]
    %v908 = vld [vmem:[#allocation12 + $0x40] sm:$0xff]
    %v909 = vld [vmem:[#allocation12 + $0x48] sm:$0xff]
    %v910 = vld [vmem:[#allocation12 + $0x50] sm:$0xff]
    %v911 = vld [vmem:[#allocation12 + $0x58] sm:$0xff]
    %v912 = vld [vmem:[#allocation12 + $0x60] sm:$0xff]
    %v913 = vld [vmem:[#allocation12 + $0x68] sm:$0xff]
    %v914 = vld [vmem:[#allocation12 + $0x70] sm:$0xff]
    %v915 = vld [vmem:[#allocation12 + $0x78] sm:$0xff]
    %v916 = vld [vmem:[#allocation12 + $0x80] sm:$0xff]
    %v917 = vld [vmem:[#allocation12 + $0x88] sm:$0xff]
    %v918 = vld [vmem:[#allocation12 + $0x90] sm:$0xff]
    %v919 = vld [vmem:[#allocation12 + $0x98] sm:$0xff]
    %v920 = vld [vmem:[#allocation12 + $0xa0] sm:$0xff]
    %v921 = vld [vmem:[#allocation12 + $0xa8] sm:$0xff]
    %v922 = vld [vmem:[#allocation12 + $0xb0] sm:$0xff]
    %v923 = vld [vmem:[#allocation12 + $0xb8] sm:$0xff]
    %v924 = vld [vmem:[#allocation12 + $0xc0] sm:$0xff]
    %v925 = vld [vmem:[#allocation12 + $0xc8] sm:$0xff]
    %v926 = vld [vmem:[#allocation12 + $0xd0] sm:$0xff]
    %v927 = vld [vmem:[#allocation12 + $0xd8] sm:$0xff]
    %v928 = vld [vmem:[#allocation12 + $0xe0] sm:$0xff]
    %v929 = vld [vmem:[#allocation12 + $0xe8] sm:$0xff]
    %v930 = vld [vmem:[#allocation12 + $0xf0] sm:$0xff]
    %v931 = vld [vmem:[#allocation12 + $0xf8] sm:$0xff]
    %v932 = vld [vmem:[#allocation12 + $0x100] sm:$0xff]
    %v933 = vld [vmem:[#allocation12 + $0x108] sm:$0xff]
    %v934 = vld [vmem:[#allocation12 + $0x110] sm:$0xff]
    %v935 = vld [vmem:[#allocation12 + $0x118] sm:$0xff]
    %v936 = vld [vmem:[#allocation12 + $0x120] sm:$0xff]
    %v937 = vld [vmem:[#allocation12 + $0x128] sm:$0xff]
    %v938 = vld [vmem:[#allocation12 + $0x130] sm:$0xff]
    %v939 = vld [vmem:[#allocation12 + $0x138] sm:$0xff]
    %v940 = vld [vmem:[#allocation12 + $0x140] sm:$0xff]
    %v941 = vld [vmem:[#allocation12 + $0x148] sm:$0xff]
    %v942 = vld [vmem:[#allocation12 + $0x150] sm:$0xff]
    %v943 = vld [vmem:[#allocation12 + $0x158] sm:$0xff]
    %v944 = vld [vmem:[#allocation12 + $0x160] sm:$0xff]
    %v945 = vld [vmem:[#allocation12 + $0x168] sm:$0xff]
    %v946 = vld [vmem:[#allocation12 + $0x170] sm:$0xff]
    %v947 = vld [vmem:[#allocation12 + $0x178] sm:$0xff]
    %v948 = vld [vmem:[#allocation12 + $0x180] sm:$0xff]
    %v949 = vld [vmem:[#allocation12 + $0x188] sm:$0xff]
    %v950 = vld [vmem:[#allocation12 + $0x190] sm:$0xff]
    %v951 = vld [vmem:[#allocation12 + $0x198] sm:$0xff]
    %v952 = vld [vmem:[#allocation12 + $0x1a0] sm:$0xff]
    %v953 = vld [vmem:[#allocation12 + $0x1a8] sm:$0xff]
    %v954 = vld [vmem:[#allocation12 + $0x1b0] sm:$0xff]
    %v955 = vld [vmem:[#allocation12 + $0x1b8] sm:$0xff]
    %v956 = vld [vmem:[#allocation12 + $0x1c0] sm:$0xff]
    %v957 = vld [vmem:[#allocation12 + $0x1c8] sm:$0xff]
    %v958 = vld [vmem:[#allocation12 + $0x1d0] sm:$0xff]
    %v959 = vld [vmem:[#allocation12 + $0x1d8] sm:$0xff]
    %v960 = vld [vmem:[#allocation12 + $0x1e0] sm:$0xff]
    %v961 = vld [vmem:[#allocation12 + $0x1e8] sm:$0xff]
    %v962 = vld [vmem:[#allocation12 + $0x1f0] sm:$0xff]
    %v963 = vld [vmem:[#allocation12 + $0x1f8] sm:$0xff]
    %964 = vmatprep.subr.mxu0 %v901
    %965 = vmatpush1.msra.mxu0 %v900
    %966 = vmatprep.subr.mxu0 %v905
    %967 = vmatpush1.msra.mxu0 %v904
    %968 = vmatprep.subr.mxu0 %v909
    %969 = vmatpush1.msra.mxu0 %v908
    %970 = vmatprep.subr.mxu0 %v913
    %971 = vmatpush1.msra.mxu0 %v912
    %972 = vmatprep.subr.mxu0 %v917
    %973 = vmatpush1.msra.mxu0 %v916
    %974 = vmatprep.subr.mxu0 %v921
    %975 = vmatpush1.msra.mxu0 %v920
    %976 = vmatprep.subr.mxu0 %v925
    %977 = vmatpush1.msra.mxu0 %v924
    %978 = vmatprep.subr.mxu0 %v929
    %979 = vmatpush1.msra.mxu0 %v928
    %980 = vmatprep.subr.mxu0 %v933
    %981 = vmatpush1.msra.mxu0 %v932
    %982 = vmatprep.subr.mxu0 %v937
    %983 = vmatpush1.msra.mxu0 %v936
    %984 = vmatprep.subr.mxu0 %v941
    %985 = vmatpush1.msra.mxu0 %v940
    %986 = vmatprep.subr.mxu0 %v945
    %987 = vmatpush1.msra.mxu0 %v944
    %988 = vmatprep.subr.mxu0 %v949
    %989 = vmatpush1.msra.mxu0 %v948
    %990 = vmatprep.subr.mxu0 %v953
    %991 = vmatpush1.msra.mxu0 %v952
    %992 = vmatprep.subr.mxu0 %v957
    %993 = vmatpush1.msra.mxu0 %v956
    %994 = vmatprep.subr.mxu0 %v961
    %995 = vmatpush1.msra.mxu0 %v960
    %996 = vmatprep.subr.mxu0 0.0
    %997 = vmatpush1.msra.mxu0 0.0
    %998 = vmatprep.subr.mxu0 0.0
    %999 = vmatpush1.msra.mxu0 0.0
    %1000 = vmatprep.subr.mxu0 0.0
    %1001 = vmatpush1.msra.mxu0 0.0
    %1002 = vmatprep.subr.mxu0 0.0
    %1003 = vmatpush1.msra.mxu0 0.0
    %1004 = vmatprep.subr.mxu0 0.0
    %1005 = vmatpush1.msra.mxu0 0.0
    %1006 = vmatprep.subr.mxu0 0.0
    %1007 = vmatpush1.msra.mxu0 0.0
    %1008 = vmatprep.subr.mxu0 0.0
    %1009 = vmatpush1.msra.mxu0 0.0
    %1010 = vmatprep.subr.mxu0 0.0
    %1011 = vmatpush1.msra.mxu0 0.0
    %1012 = vmatprep.subr.mxu0 0.0
    %1013 = vmatpush1.msra.mxu0 0.0
    %1014 = vmatprep.subr.mxu0 0.0
    %1015 = vmatpush1.msra.mxu0 0.0
    %1016 = vmatprep.subr.mxu0 0.0
    %1017 = vmatpush1.msra.mxu0 0.0
    %1018 = vmatprep.subr.mxu0 0.0
    %1019 = vmatpush1.msra.mxu0 0.0
    %1020 = vmatprep.subr.mxu0 0.0
    %1021 = vmatpush1.msra.mxu0 0.0
    %1022 = vmatprep.subr.mxu0 0.0
    %1023 = vmatpush1.msra.mxu0 0.0
    %1024 = vmatprep.subr.mxu0 0.0
    %1025 = vmatpush1.msra.mxu0 0.0
    %1026 = vmatprep.subr.mxu0 0.0
    %1027 = vmatpush1.msra.mxu0 0.0
    %1028 = vmatprep.mubr.f32.mxu0 0.0
    %1029 = vmatmul.mubr.f32.gmra.mrb[0].mxu0 0.0
    %v1030 = vpop.f32.mrb[0].mxu0
    %v1031 = vadd.f32 0.0, %v1030
    %v1032 = vpop.f32.mrb[0].mxu0
    %v1033 = vadd.f32 0.0, %v1032
    %1034 = vdwg.mxu0
    %1035 = vmatprep.subr.mxu0 %v903
    %1036 = vmatpush1.msra.mxu0 %v902
    %1037 = vmatprep.subr.mxu0 %v907
    %1038 = vmatpush1.msra.mxu0 %v906
    %1039 = vmatprep.subr.mxu0 %v911
    %1040 = vmatpush1.msra.mxu0 %v910
    %1041 = vmatprep.subr.mxu0 %v915
    %1042 = vmatpush1.msra.mxu0 %v914
    %1043 = vmatprep.subr.mxu0 %v919
    %1044 = vmatpush1.msra.mxu0 %v918
    %1045 = vmatprep.subr.mxu0 %v923
    %1046 = vmatpush1.msra.mxu0 %v922
    %1047 = vmatprep.subr.mxu0 %v927
    %1048 = vmatpush1.msra.mxu0 %v926
    %1049 = vmatprep.subr.mxu0 %v931
    %1050 = vmatpush1.msra.mxu0 %v930
    %1051 = vmatprep.subr.mxu0 %v935
    %1052 = vmatpush1.msra.mxu0 %v934
    %1053 = vmatprep.subr.mxu0 %v939
    %1054 = vmatpush1.msra.mxu0 %v938
    %1055 = vmatprep.subr.mxu0 %v943
    %1056 = vmatpush1.msra.mxu0 %v942
    %1057 = vmatprep.subr.mxu0 %v947
    %1058 = vmatpush1.msra.mxu0 %v946
    %1059 = vmatprep.subr.mxu0 %v951
    %1060 = vmatpush1.msra.mxu0 %v950
    %1061 = vmatprep.subr.mxu0 %v955
    %1062 = vmatpush1.msra.mxu0 %v954
    %1063 = vmatprep.subr.mxu0 %v959
    %1064 = vmatpush1.msra.mxu0 %v958
    %1065 = vmatprep.subr.mxu0 %v963
    %1066 = vmatpush1.msra.mxu0 %v962
    %1067 = vmatprep.subr.mxu0 0.0
    %1068 = vmatpush1.msra.mxu0 0.0
    %1069 = vmatprep.subr.mxu0 0.0
    %1070 = vmatpush1.msra.mxu0 0.0
    %1071 = vmatprep.subr.mxu0 0.0
    %1072 = vmatpush1.msra.mxu0 0.0
    %1073 = vmatprep.subr.mxu0 0.0
    %1074 = vmatpush1.msra.mxu0 0.0
    %1075 = vmatprep.subr.mxu0 0.0
    %1076 = vmatpush1.msra.mxu0 0.0
    %1077 = vmatprep.subr.mxu0 0.0
    %1078 = vmatpush1.msra.mxu0 0.0
    %1079 = vmatprep.subr.mxu0 0.0
    %1080 = vmatpush1.msra.mxu0 0.0
    %1081 = vmatprep.subr.mxu0 0.0
    %1082 = vmatpush1.msra.mxu0 0.0
    %1083 = vmatprep.subr.mxu0 0.0
    %1084 = vmatpush1.msra.mxu0 0.0
    %1085 = vmatprep.subr.mxu0 0.0
    %1086 = vmatpush1.msra.mxu0 0.0
    %1087 = vmatprep.subr.mxu0 0.0
    %1088 = vmatpush1.msra.mxu0 0.0
    %1089 = vmatprep.subr.mxu0 0.0
    %1090 = vmatpush1.msra.mxu0 0.0
    %1091 = vmatprep.subr.mxu0 0.0
    %1092 = vmatpush1.msra.mxu0 0.0
    %1093 = vmatprep.subr.mxu0 0.0
    %1094 = vmatpush1.msra.mxu0 0.0
    %1095 = vmatprep.subr.mxu0 0.0
    %1096 = vmatpush1.msra.mxu0 0.0
    %1097 = vmatprep.subr.mxu0 0.0
    %1098 = vmatpush1.msra.mxu0 0.0
    %1099 = vmatprep.mubr.f32.mxu0 0.0
    %1100 = vmatmul.mubr.f32.gmra.mrb[0].mxu0 0.0
    %v1101 = vpop.f32.mrb[0].mxu0
    %v1102 = vadd.f32 0.0, %v1101
    %v1103 = vpop.f32.mrb[0].mxu0
    %v1104 = vadd.f32 0.0, %v1103
    %1105 = vdwg.mxu0
    %v1106 = vadd.f32 %v813, %v1031
    %v1107 = vadd.f32 %v815, %v1033
    %v1108 = vadd.f32 %v890, %v1102
    %v1109 = vadd.f32 %v892, %v1104
    %v1110 = vxor.u32 %v1106, 2147483648
    %v1111 = vmul.f32 %v1110, 1.442695
    %v1112 = vpow.pop %v1111
    %v1113 = vadd.f32 %v1112, 1.0
    %v1114 = vrcp.pop %v1113
    %v1115 = vmul.f32 1.0, %v1114
    %v1116 = vxor.u32 %v1107, 2147483648
    %v1117 = vmul.f32 %v1116, 1.442695
    %v1118 = vpow.pop %v1117
    %v1119 = vadd.f32 %v1118, 1.0
    %v1120 = vrcp.pop %v1119
    %v1121 = vmul.f32 1.0, %v1120
    %v1122 = vtanh.pop %v1108
    %v1123 = vxor.u32 %v1109, 2147483648
    %v1124 = vmul.f32 %v1123, 1.442695
    %v1125 = vpow.pop %v1124
    %v1126 = vadd.f32 %v1125, 1.0
    %v1127 = vrcp.pop %v1126
    %v1128 = vmul.f32 1.0, %v1127
    %v1129 = vmul.f32 %v1121, 0.0
    %v1130 = vmul.f32 %v1115, %v1122
    %v1131 = vadd.f32 %v1129, %v1130
    %v1132 = vtanh.pop %v1131
    %v1133 = vmul.f32 %v1128, %v1132
    %1134 = vst [vmem:[#allocation3] sm:$0x3] %v1133
    %1135 = vmatprep.subr.mxu0 %v901
    %1136 = vmatpush1.msra.mxu0 %v900
    %1137 = vmatprep.subr.mxu0 %v905
    %1138 = vmatpush1.msra.mxu0 %v904
    %1139 = vmatprep.subr.mxu0 %v909
    %1140 = vmatpush1.msra.mxu0 %v908
    %1141 = vmatprep.subr.mxu0 %v913
    %1142 = vmatpush1.msra.mxu0 %v912
    %1143 = vmatprep.subr.mxu0 %v917
    %1144 = vmatpush1.msra.mxu0 %v916
    %1145 = vmatprep.subr.mxu0 %v921
    %1146 = vmatpush1.msra.mxu0 %v920
    %1147 = vmatprep.subr.mxu0 %v925
    %1148 = vmatpush1.msra.mxu0 %v924
    %1149 = vmatprep.subr.mxu0 %v929
    %1150 = vmatpush1.msra.mxu0 %v928
    %1151 = vmatprep.subr.mxu0 %v933
    %1152 = vmatpush1.msra.mxu0 %v932
    %1153 = vmatprep.subr.mxu0 %v937
    %1154 = vmatpush1.msra.mxu0 %v936
    %1155 = vmatprep.subr.mxu0 %v941
    %1156 = vmatpush1.msra.mxu0 %v940
    %1157 = vmatprep.subr.mxu0 %v945
    %1158 = vmatpush1.msra.mxu0 %v944
    %1159 = vmatprep.subr.mxu0 %v949
    %1160 = vmatpush1.msra.mxu0 %v948
    %1161 = vmatprep.subr.mxu0 %v953
    %1162 = vmatpush1.msra.mxu0 %v952
    %1163 = vmatprep.subr.mxu0 %v957
    %1164 = vmatpush1.msra.mxu0 %v956
    %1165 = vmatprep.subr.mxu0 %v961
    %1166 = vmatpush1.msra.mxu0 %v960
    %1167 = vmatprep.subr.mxu0 0.0
    %1168 = vmatpush1.msra.mxu0 0.0
    %1169 = vmatprep.subr.mxu0 0.0
    %1170 = vmatpush1.msra.mxu0 0.0
    %1171 = vmatprep.subr.mxu0 0.0
    %1172 = vmatpush1.msra.mxu0 0.0
    %1173 = vmatprep.subr.mxu0 0.0
    %1174 = vmatpush1.msra.mxu0 0.0
    %1175 = vmatprep.subr.mxu0 0.0
    %1176 = vmatpush1.msra.mxu0 0.0
    %1177 = vmatprep.subr.mxu0 0.0
    %1178 = vmatpush1.msra.mxu0 0.0
    %1179 = vmatprep.subr.mxu0 0.0
    %1180 = vmatpush1.msra.mxu0 0.0
    %1181 = vmatprep.subr.mxu0 0.0
    %1182 = vmatpush1.msra.mxu0 0.0
    %1183 = vmatprep.subr.mxu0 0.0
    %1184 = vmatpush1.msra.mxu0 0.0
    %1185 = vmatprep.subr.mxu0 0.0
    %1186 = vmatpush1.msra.mxu0 0.0
    %1187 = vmatprep.subr.mxu0 0.0
    %1188 = vmatpush1.msra.mxu0 0.0
    %1189 = vmatprep.subr.mxu0 0.0
    %1190 = vmatpush1.msra.mxu0 0.0
    %1191 = vmatprep.subr.mxu0 0.0
    %1192 = vmatpush1.msra.mxu0 0.0
    %1193 = vmatprep.subr.mxu0 0.0
    %1194 = vmatpush1.msra.mxu0 0.0
    %1195 = vmatprep.subr.mxu0 0.0
    %1196 = vmatpush1.msra.mxu0 0.0
    %1197 = vmatprep.subr.mxu0 0.0
    %1198 = vmatpush1.msra.mxu0 0.0
    %1199 = vmatprep.mubr.f32.mxu0 0.0
    %1200 = vmatmul.mubr.f32.gmra.mrb[0].mxu0 %v1133
    %v1201 = vpop.f32.mrb[0].mxu0
    %v1202 = vadd.f32 0.0, %v1201
    %v1203 = vpop.f32.mrb[0].mxu0
    %v1204 = vadd.f32 0.0, %v1203
    %1205 = vdwg.mxu0
    %1206 = vmatprep.subr.mxu0 %v903
    %1207 = vmatpush1.msra.mxu0 %v902
    %1208 = vmatprep.subr.mxu0 %v907
    %1209 = vmatpush1.msra.mxu0 %v906
    %1210 = vmatprep.subr.mxu0 %v911
    %1211 = vmatpush1.msra.mxu0 %v910
    %1212 = vmatprep.subr.mxu0 %v915
    %1213 = vmatpush1.msra.mxu0 %v914
    %1214 = vmatprep.subr.mxu0 %v919
    %1215 = vmatpush1.msra.mxu0 %v918
    %1216 = vmatprep.subr.mxu0 %v923
    %1217 = vmatpush1.msra.mxu0 %v922
    %1218 = vmatprep.subr.mxu0 %v927
    %1219 = vmatpush1.msra.mxu0 %v926
    %1220 = vmatprep.subr.mxu0 %v931
    %1221 = vmatpush1.msra.mxu0 %v930
    %1222 = vmatprep.subr.mxu0 %v935
    %1223 = vmatpush1.msra.mxu0 %v934
    %1224 = vmatprep.subr.mxu0 %v939
    %1225 = vmatpush1.msra.mxu0 %v938
    %1226 = vmatprep.subr.mxu0 %v943
    %1227 = vmatpush1.msra.mxu0 %v942
    %1228 = vmatprep.subr.mxu0 %v947
    %1229 = vmatpush1.msra.mxu0 %v946
    %1230 = vmatprep.subr.mxu0 %v951
    %1231 = vmatpush1.msra.mxu0 %v950
    %1232 = vmatprep.subr.mxu0 %v955
    %1233 = vmatpush1.msra.mxu0 %v954
    %1234 = vmatprep.subr.mxu0 %v959
    %1235 = vmatpush1.msra.mxu0 %v958
    %1236 = vmatprep.subr.mxu0 %v963
    %1237 = vmatpush1.msra.mxu0 %v962
    %1238 = vmatprep.subr.mxu0 0.0
    %1239 = vmatpush1.msra.mxu0 0.0
    %1240 = vmatprep.subr.mxu0 0.0
    %1241 = vmatpush1.msra.mxu0 0.0
    %1242 = vmatprep.subr.mxu0 0.0
    %1243 = vmatpush1.msra.mxu0 0.0
    %1244 = vmatprep.subr.mxu0 0.0
    %1245 = vmatpush1.msra.mxu0 0.0
    %1246 = vmatprep.subr.mxu0 0.0
    %1247 = vmatpush1.msra.mxu0 0.0
    %1248 = vmatprep.subr.mxu0 0.0
    %1249 = vmatpush1.msra.mxu0 0.0
    %1250 = vmatprep.subr.mxu0 0.0
    %1251 = vmatpush1.msra.mxu0 0.0
    %1252 = vmatprep.subr.mxu0 0.0
    %1253 = vmatpush1.msra.mxu0 0.0
    %1254 = vmatprep.subr.mxu0 0.0
    %1255 = vmatpush1.msra.mxu0 0.0
    %1256 = vmatprep.subr.mxu0 0.0
    %1257 = vmatpush1.msra.mxu0 0.0
    %1258 = vmatprep.subr.mxu0 0.0
    %1259 = vmatpush1.msra.mxu0 0.0
    %1260 = vmatprep.subr.mxu0 0.0
    %1261 = vmatpush1.msra.mxu0 0.0
    %1262 = vmatprep.subr.mxu0 0.0
    %1263 = vmatpush1.msra.mxu0 0.0
    %1264 = vmatprep.subr.mxu0 0.0
    %1265 = vmatpush1.msra.mxu0 0.0
    %1266 = vmatprep.subr.mxu0 0.0
    %1267 = vmatpush1.msra.mxu0 0.0
    %1268 = vmatprep.subr.mxu0 0.0
    %1269 = vmatpush1.msra.mxu0 0.0
    %1270 = vmatprep.mubr.f32.mxu0 0.0
    %1271 = vmatmul.mubr.f32.gmra.mrb[0].mxu0 %v1133
    %v1272 = vpop.f32.mrb[0].mxu0
    %v1273 = vadd.f32 0.0, %v1272
    %v1274 = vpop.f32.mrb[0].mxu0
    %v1275 = vadd.f32 0.0, %v1274
    %1276 = vdwg.mxu0
    %v1281 = vrot.slane %v1202, 6
    %v1282 = vrot.slane %v1204, 6
    %v1283 = vrot.slane %v1273, 6
    %v1284 = vrot.slane %v1275, 6
    %v1289 = vadd.f32 %v813, %v1281
    %v1290 = vadd.f32 %v815, %v1282
    %v1291 = vadd.f32 %v890, %v1283
    %v1292 = vadd.f32 %v892, %v1284
    %v1293 = vxor.u32 %v1289, 2147483648
    %v1294 = vmul.f32 %v1293, 1.442695
    %v1295 = vpow.pop %v1294
    %v1296 = vadd.f32 %v1295, 1.0
    %v1297 = vrcp.pop %v1296
    %v1298 = vmul.f32 1.0, %v1297
    %v1299 = vxor.u32 %v1290, 2147483648
    %v1300 = vmul.f32 %v1299, 1.442695
    %v1301 = vpow.pop %v1300
    %v1302 = vadd.f32 %v1301, 1.0
    %v1303 = vrcp.pop %v1302
    %v1304 = vmul.f32 1.0, %v1303
    %v1305 = vtanh.pop %v1291
    %v1306 = vxor.u32 %v1292, 2147483648
    %v1307 = vmul.f32 %v1306, 1.442695
    %v1308 = vpow.pop %v1307
    %v1309 = vadd.f32 %v1308, 1.0
    %v1310 = vrcp.pop %v1309
    %v1311 = vmul.f32 1.0, %v1310
    %v1313 = vrot.slane %v1131, 6
    %v1315 = vmul.f32 %v1304, %v1313
    %v1316 = vmul.f32 %v1298, %v1305
    %v1317 = vadd.f32 %v1315, %v1316
    %v1318 = vtanh.pop %v1317
    %v1319 = vmul.f32 %v1311, %v1318
    %1320 = vst [vmem:[#allocation3] sm:$0xc] %v1319
    %v1322 = vrot.slane %v1319, 2
    %1324 = vmatprep.subr.mxu0 %v901
    %1325 = vmatpush1.msra.mxu0 %v900
    %1326 = vmatprep.subr.mxu0 %v905
    %1327 = vmatpush1.msra.mxu0 %v904
    %1328 = vmatprep.subr.mxu0 %v909
    %1329 = vmatpush1.msra.mxu0 %v908
    %1330 = vmatprep.subr.mxu0 %v913
    %1331 = vmatpush1.msra.mxu0 %v912
    %1332 = vmatprep.subr.mxu0 %v917
    %1333 = vmatpush1.msra.mxu0 %v916
    %1334 = vmatprep.subr.mxu0 %v921
    %1335 = vmatpush1.msra.mxu0 %v920
    %1336 = vmatprep.subr.mxu0 %v925
    %1337 = vmatpush1.msra.mxu0 %v924
    %1338 = vmatprep.subr.mxu0 %v929
    %1339 = vmatpush1.msra.mxu0 %v928
    %1340 = vmatprep.subr.mxu0 %v933
    %1341 = vmatpush1.msra.mxu0 %v932
    %1342 = vmatprep.subr.mxu0 %v937
    %1343 = vmatpush1.msra.mxu0 %v936
    %1344 = vmatprep.subr.mxu0 %v941
    %1345 = vmatpush1.msra.mxu0 %v940
    %1346 = vmatprep.subr.mxu0 %v945
    %1347 = vmatpush1.msra.mxu0 %v944
    %1348 = vmatprep.subr.mxu0 %v949
    %1349 = vmatpush1.msra.mxu0 %v948
    %1350 = vmatprep.subr.mxu0 %v953
    %1351 = vmatpush1.msra.mxu0 %v952
    %1352 = vmatprep.subr.mxu0 %v957
    %1353 = vmatpush1.msra.mxu0 %v956
    %1354 = vmatprep.subr.mxu0 %v961
    %1355 = vmatpush1.msra.mxu0 %v960
    %1356 = vmatprep.subr.mxu0 0.0
    %1357 = vmatpush1.msra.mxu0 0.0
    %1358 = vmatprep.subr.mxu0 0.0
    %1359 = vmatpush1.msra.mxu0 0.0
    %1360 = vmatprep.subr.mxu0 0.0
    %1361 = vmatpush1.msra.mxu0 0.0
    %1362 = vmatprep.subr.mxu0 0.0
    %1363 = vmatpush1.msra.mxu0 0.0
    %1364 = vmatprep.subr.mxu0 0.0
    %1365 = vmatpush1.msra.mxu0 0.0
    %1366 = vmatprep.subr.mxu0 0.0
    %1367 = vmatpush1.msra.mxu0 0.0
    %1368 = vmatprep.subr.mxu0 0.0
    %1369 = vmatpush1.msra.mxu0 0.0
    %1370 = vmatprep.subr.mxu0 0.0
    %1371 = vmatpush1.msra.mxu0 0.0
    %1372 = vmatprep.subr.mxu0 0.0
    %1373 = vmatpush1.msra.mxu0 0.0
    %1374 = vmatprep.subr.mxu0 0.0
    %1375 = vmatpush1.msra.mxu0 0.0
    %1376 = vmatprep.subr.mxu0 0.0
    %1377 = vmatpush1.msra.mxu0 0.0
    %1378 = vmatprep.subr.mxu0 0.0
    %1379 = vmatpush1.msra.mxu0 0.0
    %1380 = vmatprep.subr.mxu0 0.0
    %1381 = vmatpush1.msra.mxu0 0.0
    %1382 = vmatprep.subr.mxu0 0.0
    %1383 = vmatpush1.msra.mxu0 0.0
    %1384 = vmatprep.subr.mxu0 0.0
    %1385 = vmatpush1.msra.mxu0 0.0
    %1386 = vmatprep.subr.mxu0 0.0
    %1387 = vmatpush1.msra.mxu0 0.0
    %1388 = vmatprep.mubr.f32.mxu0 0.0
    %1389 = vmatmul.mubr.f32.gmra.mrb[0].mxu0 %v1322
    %v1390 = vpop.f32.mrb[0].mxu0
    %v1391 = vadd.f32 0.0, %v1390
    %v1392 = vpop.f32.mrb[0].mxu0
    %v1393 = vadd.f32 0.0, %v1392
    %1394 = vdwg.mxu0
    %1395 = vmatprep.subr.mxu0 %v903
    %1396 = vmatpush1.msra.mxu0 %v902
    %1397 = vmatprep.subr.mxu0 %v907
    %1398 = vmatpush1.msra.mxu0 %v906
    %1399 = vmatprep.subr.mxu0 %v911
    %1400 = vmatpush1.msra.mxu0 %v910
    %1401 = vmatprep.subr.mxu0 %v915
    %1402 = vmatpush1.msra.mxu0 %v914
    %1403 = vmatprep.subr.mxu0 %v919
    %1404 = vmatpush1.msra.mxu0 %v918
    %1405 = vmatprep.subr.mxu0 %v923
    %1406 = vmatpush1.msra.mxu0 %v922
    %1407 = vmatprep.subr.mxu0 %v927
    %1408 = vmatpush1.msra.mxu0 %v926
    %1409 = vmatprep.subr.mxu0 %v931
    %1410 = vmatpush1.msra.mxu0 %v930
    %1411 = vmatprep.subr.mxu0 %v935
    %1412 = vmatpush1.msra.mxu0 %v934
    %1413 = vmatprep.subr.mxu0 %v939
    %1414 = vmatpush1.msra.mxu0 %v938
    %1415 = vmatprep.subr.mxu0 %v943
    %1416 = vmatpush1.msra.mxu0 %v942
    %1417 = vmatprep.subr.mxu0 %v947
    %1418 = vmatpush1.msra.mxu0 %v946
    %1419 = vmatprep.subr.mxu0 %v951
    %1420 = vmatpush1.msra.mxu0 %v950
    %1421 = vmatprep.subr.mxu0 %v955
    %1422 = vmatpush1.msra.mxu0 %v954
    %1423 = vmatprep.subr.mxu0 %v959
    %1424 = vmatpush1.msra.mxu0 %v958
    %1425 = vmatprep.subr.mxu0 %v963
    %1426 = vmatpush1.msra.mxu0 %v962
    %1427 = vmatprep.subr.mxu0 0.0
    %1428 = vmatpush1.msra.mxu0 0.0
    %1429 = vmatprep.subr.mxu0 0.0
    %1430 = vmatpush1.msra.mxu0 0.0
    %1431 = vmatprep.subr.mxu0 0.0
    %1432 = vmatpush1.msra.mxu0 0.0
    %1433 = vmatprep.subr.mxu0 0.0
    %1434 = vmatpush1.msra.mxu0 0.0
    %1435 = vmatprep.subr.mxu0 0.0
    %1436 = vmatpush1.msra.mxu0 0.0
    %1437 = vmatprep.subr.mxu0 0.0
    %1438 = vmatpush1.msra.mxu0 0.0
    %1439 = vmatprep.subr.mxu0 0.0
    %1440 = vmatpush1.msra.mxu0 0.0
    %1441 = vmatprep.subr.mxu0 0.0
    %1442 = vmatpush1.msra.mxu0 0.0
    %1443 = vmatprep.subr.mxu0 0.0
    %1444 = vmatpush1.msra.mxu0 0.0
    %1445 = vmatprep.subr.mxu0 0.0
    %1446 = vmatpush1.msra.mxu0 0.0
    %1447 = vmatprep.subr.mxu0 0.0
    %1448 = vmatpush1.msra.mxu0 0.0
    %1449 = vmatprep.subr.mxu0 0.0
    %1450 = vmatpush1.msra.mxu0 0.0
    %1451 = vmatprep.subr.mxu0 0.0
    %1452 = vmatpush1.msra.mxu0 0.0
    %1453 = vmatprep.subr.mxu0 0.0
    %1454 = vmatpush1.msra.mxu0 0.0
    %1455 = vmatprep.subr.mxu0 0.0
    %1456 = vmatpush1.msra.mxu0 0.0
    %1457 = vmatprep.subr.mxu0 0.0
    %1458 = vmatpush1.msra.mxu0 0.0
    %1459 = vmatprep.mubr.f32.mxu0 0.0
    %1460 = vmatmul.mubr.f32.gmra.mrb[0].mxu0 %v1322
    %v1461 = vpop.f32.mrb[0].mxu0
    %v1462 = vadd.f32 0.0, %v1461
    %v1463 = vpop.f32.mrb[0].mxu0
    %v1464 = vadd.f32 0.0, %v1463
    %1465 = vdwg.mxu0
    %v1470 = vrot.slane %v1391, 4
    %v1471 = vrot.slane %v1393, 4
    %v1472 = vrot.slane %v1462, 4
    %v1473 = vrot.slane %v1464, 4
    %v1478 = vadd.f32 %v813, %v1470
    %v1479 = vadd.f32 %v815, %v1471
    %v1480 = vadd.f32 %v890, %v1472
    %v1481 = vadd.f32 %v892, %v1473
    %v1482 = vxor.u32 %v1478, 2147483648
    %v1483 = vmul.f32 %v1482, 1.442695
    %v1484 = vpow.pop %v1483
    %v1485 = vadd.f32 %v1484, 1.0
    %v1486 = vrcp.pop %v1485
    %v1487 = vmul.f32 1.0, %v1486
    %v1488 = vxor.u32 %v1479, 2147483648
    %v1489 = vmul.f32 %v1488, 1.442695
    %v1490 = vpow.pop %v1489
    %v1491 = vadd.f32 %v1490, 1.0
    %v1492 = vrcp.pop %v1491
    %v1493 = vmul.f32 1.0, %v1492
    %v1494 = vtanh.pop %v1480
    %v1495 = vxor.u32 %v1481, 2147483648
    %v1496 = vmul.f32 %v1495, 1.442695
    %v1497 = vpow.pop %v1496
    %v1498 = vadd.f32 %v1497, 1.0
    %v1499 = vrcp.pop %v1498
    %v1500 = vmul.f32 1.0, %v1499
    %v1502 = vrot.slane %v1317, 6
    %v1504 = vmul.f32 %v1493, %v1502
    %v1505 = vmul.f32 %v1487, %v1494
    %v1506 = vadd.f32 %v1504, %v1505
    %v1507 = vtanh.pop %v1506
    %v1508 = vmul.f32 %v1500, %v1507
    %1509 = vst [vmem:[#allocation3] sm:$0x30] %v1508
    %v1511 = vrot.slane %v1508, 4
    %1513 = vmatprep.subr.mxu0 %v901
    %1514 = vmatpush1.msra.mxu0 %v900
    %1515 = vmatprep.subr.mxu0 %v905
    %1516 = vmatpush1.msra.mxu0 %v904
    %1517 = vmatprep.subr.mxu0 %v909
    %1518 = vmatpush1.msra.mxu0 %v908
    %1519 = vmatprep.subr.mxu0 %v913
    %1520 = vmatpush1.msra.mxu0 %v912
    %1521 = vmatprep.subr.mxu0 %v917
    %1522 = vmatpush1.msra.mxu0 %v916
    %1523 = vmatprep.subr.mxu0 %v921
    %1524 = vmatpush1.msra.mxu0 %v920
    %1525 = vmatprep.subr.mxu0 %v925
    %1526 = vmatpush1.msra.mxu0 %v924
    %1527 = vmatprep.subr.mxu0 %v929
    %1528 = vmatpush1.msra.mxu0 %v928
    %1529 = vmatprep.subr.mxu0 %v933
    %1530 = vmatpush1.msra.mxu0 %v932
    %1531 = vmatprep.subr.mxu0 %v937
    %1532 = vmatpush1.msra.mxu0 %v936
    %1533 = vmatprep.subr.mxu0 %v941
    %1534 = vmatpush1.msra.mxu0 %v940
    %1535 = vmatprep.subr.mxu0 %v945
    %1536 = vmatpush1.msra.mxu0 %v944
    %1537 = vmatprep.subr.mxu0 %v949
    %1538 = vmatpush1.msra.mxu0 %v948
    %1539 = vmatprep.subr.mxu0 %v953
    %1540 = vmatpush1.msra.mxu0 %v952
    %1541 = vmatprep.subr.mxu0 %v957
    %1542 = vmatpush1.msra.mxu0 %v956
    %1543 = vmatprep.subr.mxu0 %v961
    %1544 = vmatpush1.msra.mxu0 %v960
    %1545 = vmatprep.subr.mxu0 0.0
    %1546 = vmatpush1.msra.mxu0 0.0
    %1547 = vmatprep.subr.mxu0 0.0
    %1548 = vmatpush1.msra.mxu0 0.0
    %1549 = vmatprep.subr.mxu0 0.0
    %1550 = vmatpush1.msra.mxu0 0.0
    %1551 = vmatprep.subr.mxu0 0.0
    %1552 = vmatpush1.msra.mxu0 0.0
    %1553 = vmatprep.subr.mxu0 0.0
    %1554 = vmatpush1.msra.mxu0 0.0
    %1555 = vmatprep.subr.mxu0 0.0
    %1556 = vmatpush1.msra.mxu0 0.0
    %1557 = vmatprep.subr.mxu0 0.0
    %1558 = vmatpush1.msra.mxu0 0.0
    %1559 = vmatprep.subr.mxu0 0.0
    %1560 = vmatpush1.msra.mxu0 0.0
    %1561 = vmatprep.subr.mxu0 0.0
    %1562 = vmatpush1.msra.mxu0 0.0
    %1563 = vmatprep.subr.mxu0 0.0
    %1564 = vmatpush1.msra.mxu0 0.0
    %1565 = vmatprep.subr.mxu0 0.0
    %1566 = vmatpush1.msra.mxu0 0.0
    %1567 = vmatprep.subr.mxu0 0.0
    %1568 = vmatpush1.msra.mxu0 0.0
    %1569 = vmatprep.subr.mxu0 0.0
    %1570 = vmatpush1.msra.mxu0 0.0
    %1571 = vmatprep.subr.mxu0 0.0
    %1572 = vmatpush1.msra.mxu0 0.0
    %1573 = vmatprep.subr.mxu0 0.0
    %1574 = vmatpush1.msra.mxu0 0.0
    %1575 = vmatprep.subr.mxu0 0.0
    %1576 = vmatpush1.msra.mxu0 0.0
    %1577 = vmatprep.mubr.f32.mxu0 0.0
    %1578 = vmatmul.mubr.f32.gmra.mrb[0].mxu0 %v1511
    %v1579 = vpop.f32.mrb[0].mxu0
    %v1580 = vadd.f32 0.0, %v1579
    %v1581 = vpop.f32.mrb[0].mxu0
    %v1582 = vadd.f32 0.0, %v1581
    %1583 = vdwg.mxu0
    %1584 = vmatprep.subr.mxu0 %v903
    %1585 = vmatpush1.msra.mxu0 %v902
    %1586 = vmatprep.subr.mxu0 %v907
    %1587 = vmatpush1.msra.mxu0 %v906
    %1588 = vmatprep.subr.mxu0 %v911
    %1589 = vmatpush1.msra.mxu0 %v910
    %1590 = vmatprep.subr.mxu0 %v915
    %1591 = vmatpush1.msra.mxu0 %v914
    %1592 = vmatprep.subr.mxu0 %v919
    %1593 = vmatpush1.msra.mxu0 %v918
    %1594 = vmatprep.subr.mxu0 %v923
    %1595 = vmatpush1.msra.mxu0 %v922
    %1596 = vmatprep.subr.mxu0 %v927
    %1597 = vmatpush1.msra.mxu0 %v926
    %1598 = vmatprep.subr.mxu0 %v931
    %1599 = vmatpush1.msra.mxu0 %v930
    %1600 = vmatprep.subr.mxu0 %v935
    %1601 = vmatpush1.msra.mxu0 %v934
    %1602 = vmatprep.subr.mxu0 %v939
    %1603 = vmatpush1.msra.mxu0 %v938
    %1604 = vmatprep.subr.mxu0 %v943
    %1605 = vmatpush1.msra.mxu0 %v942
    %1606 = vmatprep.subr.mxu0 %v947
    %1607 = vmatpush1.msra.mxu0 %v946
    %1608 = vmatprep.subr.mxu0 %v951
    %1609 = vmatpush1.msra.mxu0 %v950
    %1610 = vmatprep.subr.mxu0 %v955
    %1611 = vmatpush1.msra.mxu0 %v954
    %1612 = vmatprep.subr.mxu0 %v959
    %1613 = vmatpush1.msra.mxu0 %v958
    %1614 = vmatprep.subr.mxu0 %v963
    %1615 = vmatpush1.msra.mxu0 %v962
    %1616 = vmatprep.subr.mxu0 0.0
    %1617 = vmatpush1.msra.mxu0 0.0
    %1618 = vmatprep.subr.mxu0 0.0
    %1619 = vmatpush1.msra.mxu0 0.0
    %1620 = vmatprep.subr.mxu0 0.0
    %1621 = vmatpush1.msra.mxu0 0.0
    %1622 = vmatprep.subr.mxu0 0.0
    %1623 = vmatpush1.msra.mxu0 0.0
    %1624 = vmatprep.subr.mxu0 0.0
    %1625 = vmatpush1.msra.mxu0 0.0
    %1626 = vmatprep.subr.mxu0 0.0
    %1627 = vmatpush1.msra.mxu0 0.0
    %1628 = vmatprep.subr.mxu0 0.0
    %1629 = vmatpush1.msra.mxu0 0.0
    %1630 = vmatprep.subr.mxu0 0.0
    %1631 = vmatpush1.msra.mxu0 0.0
    %1632 = vmatprep.subr.mxu0 0.0
    %1633 = vmatpush1.msra.mxu0 0.0
    %1634 = vmatprep.subr.mxu0 0.0
    %1635 = vmatpush1.msra.mxu0 0.0
    %1636 = vmatprep.subr.mxu0 0.0
    %1637 = vmatpush1.msra.mxu0 0.0
    %1638 = vmatprep.subr.mxu0 0.0
    %1639 = vmatpush1.msra.mxu0 0.0
    %1640 = vmatprep.subr.mxu0 0.0
    %1641 = vmatpush1.msra.mxu0 0.0
    %1642 = vmatprep.subr.mxu0 0.0
    %1643 = vmatpush1.msra.mxu0 0.0
    %1644 = vmatprep.subr.mxu0 0.0
    %1645 = vmatpush1.msra.mxu0 0.0
    %1646 = vmatprep.subr.mxu0 0.0
    %1647 = vmatpush1.msra.mxu0 0.0
    %1648 = vmatprep.mubr.f32.mxu0 0.0
    %1649 = vmatmul.mubr.f32.gmra.mrb[0].mxu0 %v1511
    %v1650 = vpop.f32.mrb[0].mxu0
    %v1651 = vadd.f32 0.0, %v1650
    %v1652 = vpop.f32.mrb[0].mxu0
    %v1653 = vadd.f32 0.0, %v1652
    %1654 = vdwg.mxu0
    %v1659 = vrot.slane %v1580, 2
    %v1660 = vrot.slane %v1582, 2
    %v1661 = vrot.slane %v1651, 2
    %v1662 = vrot.slane %v1653, 2
    %v1667 = vadd.f32 %v813, %v1659
    %v1668 = vadd.f32 %v815, %v1660
    %v1669 = vadd.f32 %v890, %v1661
    %v1670 = vadd.f32 %v892, %v1662
    %v1671 = vxor.u32 %v1667, 2147483648
    %v1672 = vmul.f32 %v1671, 1.442695
    %v1673 = vpow.pop %v1672
    %v1674 = vadd.f32 %v1673, 1.0
    %v1675 = vrcp.pop %v1674
    %v1676 = vmul.f32 1.0, %v1675
    %v1677 = vxor.u32 %v1668, 2147483648
    %v1678 = vmul.f32 %v1677, 1.442695
    %v1679 = vpow.pop %v1678
    %v1680 = vadd.f32 %v1679, 1.0
    %v1681 = vrcp.pop %v1680
    %v1682 = vmul.f32 1.0, %v1681
    %v1683 = vtanh.pop %v1669
    %v1684 = vxor.u32 %v1670, 2147483648
    %v1685 = vmul.f32 %v1684, 1.442695
    %v1686 = vpow.pop %v1685
    %v1687 = vadd.f32 %v1686, 1.0
    %v1688 = vrcp.pop %v1687
    %v1689 = vmul.f32 1.0, %v1688
    %v1691 = vrot.slane %v1506, 6
    %v1693 = vmul.f32 %v1682, %v1691
    %v1694 = vmul.f32 %v1676, %v1683
    %v1695 = vadd.f32 %v1693, %v1694
    %v1696 = vtanh.pop %v1695
    %v1697 = vmul.f32 %v1689, %v1696
    %1698 = vst [vmem:[#allocation3] sm:$0xc0] %v1697
    %v1700 = vrot.slane %v1697, 6
    %1702 = vmatprep.subr.mxu0 %v901
    %1703 = vmatpush1.msra.mxu0 %v900
    %1704 = vmatprep.subr.mxu0 %v905
    %1705 = vmatpush1.msra.mxu0 %v904
    %1706 = vmatprep.subr.mxu0 %v909
    %1707 = vmatpush1.msra.mxu0 %v908
    %1708 = vmatprep.subr.mxu0 %v913
    %1709 = vmatpush1.msra.mxu0 %v912
    %1710 = vmatprep.subr.mxu0 %v917
    %1711 = vmatpush1.msra.mxu0 %v916
    %1712 = vmatprep.subr.mxu0 %v921
    %1713 = vmatpush1.msra.mxu0 %v920
    %1714 = vmatprep.subr.mxu0 %v925
    %1715 = vmatpush1.msra.mxu0 %v924
    %1716 = vmatprep.subr.mxu0 %v929
    %1717 = vmatpush1.msra.mxu0 %v928
    %1718 = vmatprep.subr.mxu0 %v933
    %1719 = vmatpush1.msra.mxu0 %v932
    %1720 = vmatprep.subr.mxu0 %v937
    %1721 = vmatpush1.msra.mxu0 %v936
    %1722 = vmatprep.subr.mxu0 %v941
    %1723 = vmatpush1.msra.mxu0 %v940
    %1724 = vmatprep.subr.mxu0 %v945
    %1725 = vmatpush1.msra.mxu0 %v944
    %1726 = vmatprep.subr.mxu0 %v949
    %1727 = vmatpush1.msra.mxu0 %v948
    %1728 = vmatprep.subr.mxu0 %v953
    %1729 = vmatpush1.msra.mxu0 %v952
    %1730 = vmatprep.subr.mxu0 %v957
    %1731 = vmatpush1.msra.mxu0 %v956
    %1732 = vmatprep.subr.mxu0 %v961
    %1733 = vmatpush1.msra.mxu0 %v960
    %1734 = vmatprep.subr.mxu0 0.0
    %1735 = vmatpush1.msra.mxu0 0.0
    %1736 = vmatprep.subr.mxu0 0.0
    %1737 = vmatpush1.msra.mxu0 0.0
    %1738 = vmatprep.subr.mxu0 0.0
    %1739 = vmatpush1.msra.mxu0 0.0
    %1740 = vmatprep.subr.mxu0 0.0
    %1741 = vmatpush1.msra.mxu0 0.0
    %1742 = vmatprep.subr.mxu0 0.0
    %1743 = vmatpush1.msra.mxu0 0.0
    %1744 = vmatprep.subr.mxu0 0.0
    %1745 = vmatpush1.msra.mxu0 0.0
    %1746 = vmatprep.subr.mxu0 0.0
    %1747 = vmatpush1.msra.mxu0 0.0
    %1748 = vmatprep.subr.mxu0 0.0
    %1749 = vmatpush1.msra.mxu0 0.0
    %1750 = vmatprep.subr.mxu0 0.0
    %1751 = vmatpush1.msra.mxu0 0.0
    %1752 = vmatprep.subr.mxu0 0.0
    %1753 = vmatpush1.msra.mxu0 0.0
    %1754 = vmatprep.subr.mxu0 0.0
    %1755 = vmatpush1.msra.mxu0 0.0
    %1756 = vmatprep.subr.mxu0 0.0
    %1757 = vmatpush1.msra.mxu0 0.0
    %1758 = vmatprep.subr.mxu0 0.0
    %1759 = vmatpush1.msra.mxu0 0.0
    %1760 = vmatprep.subr.mxu0 0.0
    %1761 = vmatpush1.msra.mxu0 0.0
    %1762 = vmatprep.subr.mxu0 0.0
    %1763 = vmatpush1.msra.mxu0 0.0
    %1764 = vmatprep.subr.mxu0 0.0
    %1765 = vmatpush1.msra.mxu0 0.0
    %1766 = vmatprep.mubr.f32.mxu0 0.0
    %1767 = vmatmul.mubr.f32.gmra.mrb[0].mxu0 %v1700
    %v1768 = vpop.f32.mrb[0].mxu0
    %v1769 = vadd.f32 0.0, %v1768
    %v1770 = vpop.f32.mrb[0].mxu0
    %v1771 = vadd.f32 0.0, %v1770
    %1772 = vdwg.mxu0
    %1773 = vmatprep.subr.mxu0 %v903
    %1774 = vmatpush1.msra.mxu0 %v902
    %1775 = vmatprep.subr.mxu0 %v907
    %1776 = vmatpush1.msra.mxu0 %v906
    %1777 = vmatprep.subr.mxu0 %v911
    %1778 = vmatpush1.msra.mxu0 %v910
    %1779 = vmatprep.subr.mxu0 %v915
    %1780 = vmatpush1.msra.mxu0 %v914
    %1781 = vmatprep.subr.mxu0 %v919
    %1782 = vmatpush1.msra.mxu0 %v918
    %1783 = vmatprep.subr.mxu0 %v923
    %1784 = vmatpush1.msra.mxu0 %v922
    %1785 = vmatprep.subr.mxu0 %v927
    %1786 = vmatpush1.msra.mxu0 %v926
    %1787 = vmatprep.subr.mxu0 %v931
    %1788 = vmatpush1.msra.mxu0 %v930
    %1789 = vmatprep.subr.mxu0 %v935
    %1790 = vmatpush1.msra.mxu0 %v934
    %1791 = vmatprep.subr.mxu0 %v939
    %1792 = vmatpush1.msra.mxu0 %v938
    %1793 = vmatprep.subr.mxu0 %v943
    %1794 = vmatpush1.msra.mxu0 %v942
    %1795 = vmatprep.subr.mxu0 %v947
    %1796 = vmatpush1.msra.mxu0 %v946
    %1797 = vmatprep.subr.mxu0 %v951
    %1798 = vmatpush1.msra.mxu0 %v950
    %1799 = vmatprep.subr.mxu0 %v955
    %1800 = vmatpush1.msra.mxu0 %v954
    %1801 = vmatprep.subr.mxu0 %v959
    %1802 = vmatpush1.msra.mxu0 %v958
    %1803 = vmatprep.subr.mxu0 %v963
    %1804 = vmatpush1.msra.mxu0 %v962
    %1805 = vmatprep.subr.mxu0 0.0
    %1806 = vmatpush1.msra.mxu0 0.0
    %1807 = vmatprep.subr.mxu0 0.0
    %1808 = vmatpush1.msra.mxu0 0.0
    %1809 = vmatprep.subr.mxu0 0.0
    %1810 = vmatpush1.msra.mxu0 0.0
    %1811 = vmatprep.subr.mxu0 0.0
    %1812 = vmatpush1.msra.mxu0 0.0
    %1813 = vmatprep.subr.mxu0 0.0
    %1814 = vmatpush1.msra.mxu0 0.0
    %1815 = vmatprep.subr.mxu0 0.0
    %1816 = vmatpush1.msra.mxu0 0.0
    %1817 = vmatprep.subr.mxu0 0.0
    %1818 = vmatpush1.msra.mxu0 0.0
    %1819 = vmatprep.subr.mxu0 0.0
    %1820 = vmatpush1.msra.mxu0 0.0
    %1821 = vmatprep.subr.mxu0 0.0
    %1822 = vmatpush1.msra.mxu0 0.0
    %1823 = vmatprep.subr.mxu0 0.0
    %1824 = vmatpush1.msra.mxu0 0.0
    %1825 = vmatprep.subr.mxu0 0.0
    %1826 = vmatpush1.msra.mxu0 0.0
    %1827 = vmatprep.subr.mxu0 0.0
    %1828 = vmatpush1.msra.mxu0 0.0
    %1829 = vmatprep.subr.mxu0 0.0
    %1830 = vmatpush1.msra.mxu0 0.0
    %1831 = vmatprep.subr.mxu0 0.0
    %1832 = vmatpush1.msra.mxu0 0.0
    %1833 = vmatprep.subr.mxu0 0.0
    %1834 = vmatpush1.msra.mxu0 0.0
    %1835 = vmatprep.subr.mxu0 0.0
    %1836 = vmatpush1.msra.mxu0 0.0
    %1837 = vmatprep.mubr.f32.mxu0 0.0
    %1838 = vmatmul.mubr.f32.gmra.mrb[0].mxu0 %v1700
    %v1839 = vpop.f32.mrb[0].mxu0
    %v1840 = vadd.f32 0.0, %v1839
    %v1841 = vpop.f32.mrb[0].mxu0
    %v1842 = vadd.f32 0.0, %v1841
    %1843 = vdwg.mxu0
    %v1844 = vadd.f32 %v819, %v1769
    %v1845 = vadd.f32 %v821, %v1771
    %v1846 = vadd.f32 %v896, %v1840
    %v1847 = vadd.f32 %v898, %v1842
    %v1848 = vxor.u32 %v1844, 2147483648
    %v1849 = vmul.f32 %v1848, 1.442695
    %v1850 = vpow.pop %v1849
    %v1851 = vadd.f32 %v1850, 1.0
    %v1852 = vrcp.pop %v1851
    %v1853 = vmul.f32 1.0, %v1852
    %v1854 = vxor.u32 %v1845, 2147483648
    %v1855 = vmul.f32 %v1854, 1.442695
    %v1856 = vpow.pop %v1855
    %v1857 = vadd.f32 %v1856, 1.0
    %v1858 = vrcp.pop %v1857
    %v1859 = vmul.f32 1.0, %v1858
    %v1860 = vtanh.pop %v1846
    %v1861 = vxor.u32 %v1847, 2147483648
    %v1862 = vmul.f32 %v1861, 1.442695
    %v1863 = vpow.pop %v1862
    %v1864 = vadd.f32 %v1863, 1.0
    %v1865 = vrcp.pop %v1864
    %v1866 = vmul.f32 1.0, %v1865
    %v1868 = vrot.slane %v1695, 6
    %v1870 = vmul.f32 %v1859, %v1868
    %v1871 = vmul.f32 %v1853, %v1860
    %v1872 = vadd.f32 %v1870, %v1871
    %v1873 = vtanh.pop %v1872
    %v1874 = vmul.f32 %v1866, %v1873
    %1875 = vst [vmem:[#allocation3 + $0x8] sm:$0x3] %v1874
    %1876 = vmatprep.subr.mxu0 %v901
    %1877 = vmatpush1.msra.mxu0 %v900
    %1878 = vmatprep.subr.mxu0 %v905
    %1879 = vmatpush1.msra.mxu0 %v904
    %1880 = vmatprep.subr.mxu0 %v909
    %1881 = vmatpush1.msra.mxu0 %v908
    %1882 = vmatprep.subr.mxu0 %v913
    %1883 = vmatpush1.msra.mxu0 %v912
    %1884 = vmatprep.subr.mxu0 %v917
    %1885 = vmatpush1.msra.mxu0 %v916
    %1886 = vmatprep.subr.mxu0 %v921
    %1887 = vmatpush1.msra.mxu0 %v920
    %1888 = vmatprep.subr.mxu0 %v925
    %1889 = vmatpush1.msra.mxu0 %v924
    %1890 = vmatprep.subr.mxu0 %v929
    %1891 = vmatpush1.msra.mxu0 %v928
    %1892 = vmatprep.subr.mxu0 %v933
    %1893 = vmatpush1.msra.mxu0 %v932
    %1894 = vmatprep.subr.mxu0 %v937
    %1895 = vmatpush1.msra.mxu0 %v936
    %1896 = vmatprep.subr.mxu0 %v941
    %1897 = vmatpush1.msra.mxu0 %v940
    %1898 = vmatprep.subr.mxu0 %v945
    %1899 = vmatpush1.msra.mxu0 %v944
    %1900 = vmatprep.subr.mxu0 %v949
    %1901 = vmatpush1.msra.mxu0 %v948
    %1902 = vmatprep.subr.mxu0 %v953
    %1903 = vmatpush1.msra.mxu0 %v952
    %1904 = vmatprep.subr.mxu0 %v957
    %1905 = vmatpush1.msra.mxu0 %v956
    %1906 = vmatprep.subr.mxu0 %v961
    %1907 = vmatpush1.msra.mxu0 %v960
    %1908 = vmatprep.subr.mxu0 0.0
    %1909 = vmatpush1.msra.mxu0 0.0
    %1910 = vmatprep.subr.mxu0 0.0
    %1911 = vmatpush1.msra.mxu0 0.0
    %1912 = vmatprep.subr.mxu0 0.0
    %1913 = vmatpush1.msra.mxu0 0.0
    %1914 = vmatprep.subr.mxu0 0.0
    %1915 = vmatpush1.msra.mxu0 0.0
    %1916 = vmatprep.subr.mxu0 0.0
    %1917 = vmatpush1.msra.mxu0 0.0
    %1918 = vmatprep.subr.mxu0 0.0
    %1919 = vmatpush1.msra.mxu0 0.0
    %1920 = vmatprep.subr.mxu0 0.0
    %1921 = vmatpush1.msra.mxu0 0.0
    %1922 = vmatprep.subr.mxu0 0.0
    %1923 = vmatpush1.msra.mxu0 0.0
    %1924 = vmatprep.subr.mxu0 0.0
    %1925 = vmatpush1.msra.mxu0 0.0
    %1926 = vmatprep.subr.mxu0 0.0
    %1927 = vmatpush1.msra.mxu0 0.0
    %1928 = vmatprep.subr.mxu0 0.0
    %1929 = vmatpush1.msra.mxu0 0.0
    %1930 = vmatprep.subr.mxu0 0.0
    %1931 = vmatpush1.msra.mxu0 0.0
    %1932 = vmatprep.subr.mxu0 0.0
    %1933 = vmatpush1.msra.mxu0 0.0
    %1934 = vmatprep.subr.mxu0 0.0
    %1935 = vmatpush1.msra.mxu0 0.0
    %1936 = vmatprep.subr.mxu0 0.0
    %1937 = vmatpush1.msra.mxu0 0.0
    %1938 = vmatprep.subr.mxu0 0.0
    %1939 = vmatpush1.msra.mxu0 0.0
    %1940 = vmatprep.mubr.f32.mxu0 0.0
    %1941 = vmatmul.mubr.f32.gmra.mrb[0].mxu0 %v1874
    %v1942 = vpop.f32.mrb[0].mxu0
    %v1943 = vadd.f32 0.0, %v1942
    %v1944 = vpop.f32.mrb[0].mxu0
    %v1945 = vadd.f32 0.0, %v1944
    %1946 = vdwg.mxu0
    %1947 = vmatprep.subr.mxu0 %v903
    %1948 = vmatpush1.msra.mxu0 %v902
    %1949 = vmatprep.subr.mxu0 %v907
    %1950 = vmatpush1.msra.mxu0 %v906
    %1951 = vmatprep.subr.mxu0 %v911
    %1952 = vmatpush1.msra.mxu0 %v910
    %1953 = vmatprep.subr.mxu0 %v915
    %1954 = vmatpush1.msra.mxu0 %v914
    %1955 = vmatprep.subr.mxu0 %v919
    %1956 = vmatpush1.msra.mxu0 %v918
    %1957 = vmatprep.subr.mxu0 %v923
    %1958 = vmatpush1.msra.mxu0 %v922
    %1959 = vmatprep.subr.mxu0 %v927
    %1960 = vmatpush1.msra.mxu0 %v926
    %1961 = vmatprep.subr.mxu0 %v931
    %1962 = vmatpush1.msra.mxu0 %v930
    %1963 = vmatprep.subr.mxu0 %v935
    %1964 = vmatpush1.msra.mxu0 %v934
    %1965 = vmatprep.subr.mxu0 %v939
    %1966 = vmatpush1.msra.mxu0 %v938
    %1967 = vmatprep.subr.mxu0 %v943
    %1968 = vmatpush1.msra.mxu0 %v942
    %1969 = vmatprep.subr.mxu0 %v947
    %1970 = vmatpush1.msra.mxu0 %v946
    %1971 = vmatprep.subr.mxu0 %v951
    %1972 = vmatpush1.msra.mxu0 %v950
    %1973 = vmatprep.subr.mxu0 %v955
    %1974 = vmatpush1.msra.mxu0 %v954
    %1975 = vmatprep.subr.mxu0 %v959
    %1976 = vmatpush1.msra.mxu0 %v958
    %1977 = vmatprep.subr.mxu0 %v963
    %1978 = vmatpush1.msra.mxu0 %v962
    %1979 = vmatprep.subr.mxu0 0.0
    %1980 = vmatpush1.msra.mxu0 0.0
    %1981 = vmatprep.subr.mxu0 0.0
    %1982 = vmatpush1.msra.mxu0 0.0
    %1983 = vmatprep.subr.mxu0 0.0
    %1984 = vmatpush1.msra.mxu0 0.0
    %1985 = vmatprep.subr.mxu0 0.0
    %1986 = vmatpush1.msra.mxu0 0.0
    %1987 = vmatprep.subr.mxu0 0.0
    %1988 = vmatpush1.msra.mxu0 0.0
    %1989 = vmatprep.subr.mxu0 0.0
    %1990 = vmatpush1.msra.mxu0 0.0
    %1991 = vmatprep.subr.mxu0 0.0
    %1992 = vmatpush1.msra.mxu0 0.0
    %1993 = vmatprep.subr.mxu0 0.0
    %1994 = vmatpush1.msra.mxu0 0.0
    %1995 = vmatprep.subr.mxu0 0.0
    %1996 = vmatpush1.msra.mxu0 0.0
    %1997 = vmatprep.subr.mxu0 0.0
    %1998 = vmatpush1.msra.mxu0 0.0
    %1999 = vmatprep.subr.mxu0 0.0
    %2000 = vmatpush1.msra.mxu0 0.0
    %2001 = vmatprep.subr.mxu0 0.0
    %2002 = vmatpush1.msra.mxu0 0.0
    %2003 = vmatprep.subr.mxu0 0.0
    %2004 = vmatpush1.msra.mxu0 0.0
    %2005 = vmatprep.subr.mxu0 0.0
    %2006 = vmatpush1.msra.mxu0 0.0
    %2007 = vmatprep.subr.mxu0 0.0
    %2008 = vmatpush1.msra.mxu0 0.0
    %2009 = vmatprep.subr.mxu0 0.0
    %2010 = vmatpush1.msra.mxu0 0.0
    %2011 = vmatprep.mubr.f32.mxu0 0.0
    %2012 = vmatmul.mubr.f32.gmra.mrb[0].mxu0 %v1874
    %v2013 = vpop.f32.mrb[0].mxu0
    %v2014 = vadd.f32 0.0, %v2013
    %v2015 = vpop.f32.mrb[0].mxu0
    %v2016 = vadd.f32 0.0, %v2015
    %2017 = vdwg.mxu0
    %v2022 = vrot.slane %v1943, 6
    %v2023 = vrot.slane %v1945, 6
    %v2024 = vrot.slane %v2014, 6
    %v2025 = vrot.slane %v2016, 6
    %v2030 = vadd.f32 %v819, %v2022
    %v2031 = vadd.f32 %v821, %v2023
    %v2032 = vadd.f32 %v896, %v2024
    %v2033 = vadd.f32 %v898, %v2025
    %v2034 = vxor.u32 %v2030, 2147483648
    %v2035 = vmul.f32 %v2034, 1.442695
    %v2036 = vpow.pop %v2035
    %v2037 = vadd.f32 %v2036, 1.0
    %v2038 = vrcp.pop %v2037
    %v2039 = vmul.f32 1.0, %v2038
    %v2040 = vxor.u32 %v2031, 2147483648
    %v2041 = vmul.f32 %v2040, 1.442695
    %v2042 = vpow.pop %v2041
    %v2043 = vadd.f32 %v2042, 1.0
    %v2044 = vrcp.pop %v2043
    %v2045 = vmul.f32 1.0, %v2044
    %v2046 = vtanh.pop %v2032
    %v2047 = vxor.u32 %v2033, 2147483648
    %v2048 = vmul.f32 %v2047, 1.442695
    %v2049 = vpow.pop %v2048
    %v2050 = vadd.f32 %v2049, 1.0
    %v2051 = vrcp.pop %v2050
    %v2052 = vmul.f32 1.0, %v2051
    %v2054 = vrot.slane %v1872, 6
    %v2056 = vmul.f32 %v2045, %v2054
    %v2057 = vmul.f32 %v2039, %v2046
    %v2058 = vadd.f32 %v2056, %v2057
    %v2059 = vtanh.pop %v2058
    %v2060 = vmul.f32 %v2052, %v2059
    %2061 = vst [vmem:[#allocation3 + $0x8] sm:$0xc] %v2060
    %v2063 = vrot.slane %v2060, 2
    %2065 = vmatprep.subr.mxu0 %v901
    %2066 = vmatpush1.msra.mxu0 %v900
    %2067 = vmatprep.subr.mxu0 %v905
    %2068 = vmatpush1.msra.mxu0 %v904
    %2069 = vmatprep.subr.mxu0 %v909
    %2070 = vmatpush1.msra.mxu0 %v908
    %2071 = vmatprep.subr.mxu0 %v913
    %2072 = vmatpush1.msra.mxu0 %v912
    %2073 = vmatprep.subr.mxu0 %v917
    %2074 = vmatpush1.msra.mxu0 %v916
    %2075 = vmatprep.subr.mxu0 %v921
    %2076 = vmatpush1.msra.mxu0 %v920
    %2077 = vmatprep.subr.mxu0 %v925
    %2078 = vmatpush1.msra.mxu0 %v924
    %2079 = vmatprep.subr.mxu0 %v929
    %2080 = vmatpush1.msra.mxu0 %v928
    %2081 = vmatprep.subr.mxu0 %v933
    %2082 = vmatpush1.msra.mxu0 %v932
    %2083 = vmatprep.subr.mxu0 %v937
    %2084 = vmatpush1.msra.mxu0 %v936
    %2085 = vmatprep.subr.mxu0 %v941
    %2086 = vmatpush1.msra.mxu0 %v940
    %2087 = vmatprep.subr.mxu0 %v945
    %2088 = vmatpush1.msra.mxu0 %v944
    %2089 = vmatprep.subr.mxu0 %v949
    %2090 = vmatpush1.msra.mxu0 %v948
    %2091 = vmatprep.subr.mxu0 %v953
    %2092 = vmatpush1.msra.mxu0 %v952
    %2093 = vmatprep.subr.mxu0 %v957
    %2094 = vmatpush1.msra.mxu0 %v956
    %2095 = vmatprep.subr.mxu0 %v961
    %2096 = vmatpush1.msra.mxu0 %v960
    %2097 = vmatprep.subr.mxu0 0.0
    %2098 = vmatpush1.msra.mxu0 0.0
    %2099 = vmatprep.subr.mxu0 0.0
    %2100 = vmatpush1.msra.mxu0 0.0
    %2101 = vmatprep.subr.mxu0 0.0
    %2102 = vmatpush1.msra.mxu0 0.0
    %2103 = vmatprep.subr.mxu0 0.0
    %2104 = vmatpush1.msra.mxu0 0.0
    %2105 = vmatprep.subr.mxu0 0.0
    %2106 = vmatpush1.msra.mxu0 0.0
    %2107 = vmatprep.subr.mxu0 0.0
    %2108 = vmatpush1.msra.mxu0 0.0
    %2109 = vmatprep.subr.mxu0 0.0
    %2110 = vmatpush1.msra.mxu0 0.0
    %2111 = vmatprep.subr.mxu0 0.0
    %2112 = vmatpush1.msra.mxu0 0.0
    %2113 = vmatprep.subr.mxu0 0.0
    %2114 = vmatpush1.msra.mxu0 0.0
    %2115 = vmatprep.subr.mxu0 0.0
    %2116 = vmatpush1.msra.mxu0 0.0
    %2117 = vmatprep.subr.mxu0 0.0
    %2118 = vmatpush1.msra.mxu0 0.0
    %2119 = vmatprep.subr.mxu0 0.0
    %2120 = vmatpush1.msra.mxu0 0.0
    %2121 = vmatprep.subr.mxu0 0.0
    %2122 = vmatpush1.msra.mxu0 0.0
    %2123 = vmatprep.subr.mxu0 0.0
    %2124 = vmatpush1.msra.mxu0 0.0
    %2125 = vmatprep.subr.mxu0 0.0
    %2126 = vmatpush1.msra.mxu0 0.0
    %2127 = vmatprep.subr.mxu0 0.0
    %2128 = vmatpush1.msra.mxu0 0.0
    %2129 = vmatprep.mubr.f32.mxu0 0.0
    %2130 = vmatmul.mubr.f32.gmra.mrb[0].mxu0 %v2063
    %v2131 = vpop.f32.mrb[0].mxu0
    %v2132 = vadd.f32 0.0, %v2131
    %v2133 = vpop.f32.mrb[0].mxu0
    %v2134 = vadd.f32 0.0, %v2133
    %2135 = vdwg.mxu0
    %2136 = vmatprep.subr.mxu0 %v903
    %2137 = vmatpush1.msra.mxu0 %v902
    %2138 = vmatprep.subr.mxu0 %v907
    %2139 = vmatpush1.msra.mxu0 %v906
    %2140 = vmatprep.subr.mxu0 %v911
    %2141 = vmatpush1.msra.mxu0 %v910
    %2142 = vmatprep.subr.mxu0 %v915
    %2143 = vmatpush1.msra.mxu0 %v914
    %2144 = vmatprep.subr.mxu0 %v919
    %2145 = vmatpush1.msra.mxu0 %v918
    %2146 = vmatprep.subr.mxu0 %v923
    %2147 = vmatpush1.msra.mxu0 %v922
    %2148 = vmatprep.subr.mxu0 %v927
    %2149 = vmatpush1.msra.mxu0 %v926
    %2150 = vmatprep.subr.mxu0 %v931
    %2151 = vmatpush1.msra.mxu0 %v930
    %2152 = vmatprep.subr.mxu0 %v935
    %2153 = vmatpush1.msra.mxu0 %v934
    %2154 = vmatprep.subr.mxu0 %v939
    %2155 = vmatpush1.msra.mxu0 %v938
    %2156 = vmatprep.subr.mxu0 %v943
    %2157 = vmatpush1.msra.mxu0 %v942
    %2158 = vmatprep.subr.mxu0 %v947
    %2159 = vmatpush1.msra.mxu0 %v946
    %2160 = vmatprep.subr.mxu0 %v951
    %2161 = vmatpush1.msra.mxu0 %v950
    %2162 = vmatprep.subr.mxu0 %v955
    %2163 = vmatpush1.msra.mxu0 %v954
    %2164 = vmatprep.subr.mxu0 %v959
    %2165 = vmatpush1.msra.mxu0 %v958
    %2166 = vmatprep.subr.mxu0 %v963
    %2167 = vmatpush1.msra.mxu0 %v962
    %2168 = vmatprep.subr.mxu0 0.0
    %2169 = vmatpush1.msra.mxu0 0.0
    %2170 = vmatprep.subr.mxu0 0.0
    %2171 = vmatpush1.msra.mxu0 0.0
    %2172 = vmatprep.subr.mxu0 0.0
    %2173 = vmatpush1.msra.mxu0 0.0
    %2174 = vmatprep.subr.mxu0 0.0
    %2175 = vmatpush1.msra.mxu0 0.0
    %2176 = vmatprep.subr.mxu0 0.0
    %2177 = vmatpush1.msra.mxu0 0.0
    %2178 = vmatprep.subr.mxu0 0.0
    %2179 = vmatpush1.msra.mxu0 0.0
    %2180 = vmatprep.subr.mxu0 0.0
    %2181 = vmatpush1.msra.mxu0 0.0
    %2182 = vmatprep.subr.mxu0 0.0
    %2183 = vmatpush1.msra.mxu0 0.0
    %2184 = vmatprep.subr.mxu0 0.0
    %2185 = vmatpush1.msra.mxu0 0.0
    %2186 = vmatprep.subr.mxu0 0.0
    %2187 = vmatpush1.msra.mxu0 0.0
    %2188 = vmatprep.subr.mxu0 0.0
    %2189 = vmatpush1.msra.mxu0 0.0
    %2190 = vmatprep.subr.mxu0 0.0
    %2191 = vmatpush1.msra.mxu0 0.0
    %2192 = vmatprep.subr.mxu0 0.0
    %2193 = vmatpush1.msra.mxu0 0.0
    %2194 = vmatprep.subr.mxu0 0.0
    %2195 = vmatpush1.msra.mxu0 0.0
    %2196 = vmatprep.subr.mxu0 0.0
    %2197 = vmatpush1.msra.mxu0 0.0
    %2198 = vmatprep.subr.mxu0 0.0
    %2199 = vmatpush1.msra.mxu0 0.0
    %2200 = vmatprep.mubr.f32.mxu0 0.0
    %2201 = vmatmul.mubr.f32.gmra.mrb[0].mxu0 %v2063
    %v2202 = vpop.f32.mrb[0].mxu0
    %v2203 = vadd.f32 0.0, %v2202
    %v2204 = vpop.f32.mrb[0].mxu0
    %v2205 = vadd.f32 0.0, %v2204
    %2206 = vdwg.mxu0
    %v2211 = vrot.slane %v2132, 4
    %v2212 = vrot.slane %v2134, 4
    %v2213 = vrot.slane %v2203, 4
    %v2214 = vrot.slane %v2205, 4
    %v2219 = vadd.f32 %v819, %v2211
    %v2220 = vadd.f32 %v821, %v2212
    %v2221 = vadd.f32 %v896, %v2213
    %v2222 = vadd.f32 %v898, %v2214
    %v2223 = vxor.u32 %v2219, 2147483648
    %v2224 = vmul.f32 %v2223, 1.442695
    %v2225 = vpow.pop %v2224
    %v2226 = vadd.f32 %v2225, 1.0
    %v2227 = vrcp.pop %v2226
    %v2228 = vmul.f32 1.0, %v2227
    %v2229 = vxor.u32 %v2220, 2147483648
    %v2230 = vmul.f32 %v2229, 1.442695
    %v2231 = vpow.pop %v2230
    %v2232 = vadd.f32 %v2231, 1.0
    %v2233 = vrcp.pop %v2232
    %v2234 = vmul.f32 1.0, %v2233
    %v2235 = vtanh.pop %v2221
    %v2236 = vxor.u32 %v2222, 2147483648
    %v2237 = vmul.f32 %v2236, 1.442695
    %v2238 = vpow.pop %v2237
    %v2239 = vadd.f32 %v2238, 1.0
    %v2240 = vrcp.pop %v2239
    %v2241 = vmul.f32 1.0, %v2240
    %v2243 = vrot.slane %v2058, 6
    %v2245 = vmul.f32 %v2234, %v2243
    %v2246 = vmul.f32 %v2228, %v2235
    %v2247 = vadd.f32 %v2245, %v2246
    %v2248 = vtanh.pop %v2247
    %v2249 = vmul.f32 %v2241, %v2248
    %2250 = vst [vmem:[#allocation3 + $0x8] sm:$0x30] %v2249
    %v2252 = vrot.slane %v2249, 4
    %2254 = vmatprep.subr.mxu0 %v901
    %2255 = vmatpush1.msra.mxu0 %v900
    %2256 = vmatprep.subr.mxu0 %v905
    %2257 = vmatpush1.msra.mxu0 %v904
    %2258 = vmatprep.subr.mxu0 %v909
    %2259 = vmatpush1.msra.mxu0 %v908
    %2260 = vmatprep.subr.mxu0 %v913
    %2261 = vmatpush1.msra.mxu0 %v912
    %2262 = vmatprep.subr.mxu0 %v917
    %2263 = vmatpush1.msra.mxu0 %v916
    %2264 = vmatprep.subr.mxu0 %v921
    %2265 = vmatpush1.msra.mxu0 %v920
    %2266 = vmatprep.subr.mxu0 %v925
    %2267 = vmatpush1.msra.mxu0 %v924
    %2268 = vmatprep.subr.mxu0 %v929
    %2269 = vmatpush1.msra.mxu0 %v928
    %2270 = vmatprep.subr.mxu0 %v933
    %2271 = vmatpush1.msra.mxu0 %v932
    %2272 = vmatprep.subr.mxu0 %v937
    %2273 = vmatpush1.msra.mxu0 %v936
    %2274 = vmatprep.subr.mxu0 %v941
    %2275 = vmatpush1.msra.mxu0 %v940
    %2276 = vmatprep.subr.mxu0 %v945
    %2277 = vmatpush1.msra.mxu0 %v944
    %2278 = vmatprep.subr.mxu0 %v949
    %2279 = vmatpush1.msra.mxu0 %v948
    %2280 = vmatprep.subr.mxu0 %v953
    %2281 = vmatpush1.msra.mxu0 %v952
    %2282 = vmatprep.subr.mxu0 %v957
    %2283 = vmatpush1.msra.mxu0 %v956
    %2284 = vmatprep.subr.mxu0 %v961
    %2285 = vmatpush1.msra.mxu0 %v960
    %2286 = vmatprep.subr.mxu0 0.0
    %2287 = vmatpush1.msra.mxu0 0.0
    %2288 = vmatprep.subr.mxu0 0.0
    %2289 = vmatpush1.msra.mxu0 0.0
    %2290 = vmatprep.subr.mxu0 0.0
    %2291 = vmatpush1.msra.mxu0 0.0
    %2292 = vmatprep.subr.mxu0 0.0
    %2293 = vmatpush1.msra.mxu0 0.0
    %2294 = vmatprep.subr.mxu0 0.0
    %2295 = vmatpush1.msra.mxu0 0.0
    %2296 = vmatprep.subr.mxu0 0.0
    %2297 = vmatpush1.msra.mxu0 0.0
    %2298 = vmatprep.subr.mxu0 0.0
    %2299 = vmatpush1.msra.mxu0 0.0
    %2300 = vmatprep.subr.mxu0 0.0
    %2301 = vmatpush1.msra.mxu0 0.0
    %2302 = vmatprep.subr.mxu0 0.0
    %2303 = vmatpush1.msra.mxu0 0.0
    %2304 = vmatprep.subr.mxu0 0.0
    %2305 = vmatpush1.msra.mxu0 0.0
    %2306 = vmatprep.subr.mxu0 0.0
    %2307 = vmatpush1.msra.mxu0 0.0
    %2308 = vmatprep.subr.mxu0 0.0
    %2309 = vmatpush1.msra.mxu0 0.0
    %2310 = vmatprep.subr.mxu0 0.0
    %2311 = vmatpush1.msra.mxu0 0.0
    %2312 = vmatprep.subr.mxu0 0.0
    %2313 = vmatpush1.msra.mxu0 0.0
    %2314 = vmatprep.subr.mxu0 0.0
    %2315 = vmatpush1.msra.mxu0 0.0
    %2316 = vmatprep.subr.mxu0 0.0
    %2317 = vmatpush1.msra.mxu0 0.0
    %2318 = vmatprep.mubr.f32.mxu0 0.0
    %2319 = vmatmul.mubr.f32.gmra.mrb[0].mxu0 %v2252
    %v2320 = vpop.f32.mrb[0].mxu0
    %v2321 = vadd.f32 0.0, %v2320
    %v2322 = vpop.f32.mrb[0].mxu0
    %v2323 = vadd.f32 0.0, %v2322
    %2324 = vdwg.mxu0
    %2325 = vmatprep.subr.mxu0 %v903
    %2326 = vmatpush1.msra.mxu0 %v902
    %2327 = vmatprep.subr.mxu0 %v907
    %2328 = vmatpush1.msra.mxu0 %v906
    %2329 = vmatprep.subr.mxu0 %v911
    %2330 = vmatpush1.msra.mxu0 %v910
    %2331 = vmatprep.subr.mxu0 %v915
    %2332 = vmatpush1.msra.mxu0 %v914
    %2333 = vmatprep.subr.mxu0 %v919
    %2334 = vmatpush1.msra.mxu0 %v918
    %2335 = vmatprep.subr.mxu0 %v923
    %2336 = vmatpush1.msra.mxu0 %v922
    %2337 = vmatprep.subr.mxu0 %v927
    %2338 = vmatpush1.msra.mxu0 %v926
    %2339 = vmatprep.subr.mxu0 %v931
    %2340 = vmatpush1.msra.mxu0 %v930
    %2341 = vmatprep.subr.mxu0 %v935
    %2342 = vmatpush1.msra.mxu0 %v934
    %2343 = vmatprep.subr.mxu0 %v939
    %2344 = vmatpush1.msra.mxu0 %v938
    %2345 = vmatprep.subr.mxu0 %v943
    %2346 = vmatpush1.msra.mxu0 %v942
    %2347 = vmatprep.subr.mxu0 %v947
    %2348 = vmatpush1.msra.mxu0 %v946
    %2349 = vmatprep.subr.mxu0 %v951
    %2350 = vmatpush1.msra.mxu0 %v950
    %2351 = vmatprep.subr.mxu0 %v955
    %2352 = vmatpush1.msra.mxu0 %v954
    %2353 = vmatprep.subr.mxu0 %v959
    %2354 = vmatpush1.msra.mxu0 %v958
    %2355 = vmatprep.subr.mxu0 %v963
    %2356 = vmatpush1.msra.mxu0 %v962
    %2357 = vmatprep.subr.mxu0 0.0
    %2358 = vmatpush1.msra.mxu0 0.0
    %2359 = vmatprep.subr.mxu0 0.0
    %2360 = vmatpush1.msra.mxu0 0.0
    %2361 = vmatprep.subr.mxu0 0.0
    %2362 = vmatpush1.msra.mxu0 0.0
    %2363 = vmatprep.subr.mxu0 0.0
    %2364 = vmatpush1.msra.mxu0 0.0
    %2365 = vmatprep.subr.mxu0 0.0
    %2366 = vmatpush1.msra.mxu0 0.0
    %2367 = vmatprep.subr.mxu0 0.0
    %2368 = vmatpush1.msra.mxu0 0.0
    %2369 = vmatprep.subr.mxu0 0.0
    %2370 = vmatpush1.msra.mxu0 0.0
    %2371 = vmatprep.subr.mxu0 0.0
    %2372 = vmatpush1.msra.mxu0 0.0
    %2373 = vmatprep.subr.mxu0 0.0
    %2374 = vmatpush1.msra.mxu0 0.0
    %2375 = vmatprep.subr.mxu0 0.0
    %2376 = vmatpush1.msra.mxu0 0.0
    %2377 = vmatprep.subr.mxu0 0.0
    %2378 = vmatpush1.msra.mxu0 0.0
    %2379 = vmatprep.subr.mxu0 0.0
    %2380 = vmatpush1.msra.mxu0 0.0
    %2381 = vmatprep.subr.mxu0 0.0
    %2382 = vmatpush1.msra.mxu0 0.0
    %2383 = vmatprep.subr.mxu0 0.0
    %2384 = vmatpush1.msra.mxu0 0.0
    %2385 = vmatprep.subr.mxu0 0.0
    %2386 = vmatpush1.msra.mxu0 0.0
    %2387 = vmatprep.subr.mxu0 0.0
    %2388 = vmatpush1.msra.mxu0 0.0
    %2389 = vmatprep.mubr.f32.mxu0 0.0
    %2390 = vmatmul.mubr.f32.gmra.mrb[0].mxu0 %v2252
    %v2391 = vpop.f32.mrb[0].mxu0
    %v2392 = vadd.f32 0.0, %v2391
    %v2393 = vpop.f32.mrb[0].mxu0
    %v2394 = vadd.f32 0.0, %v2393
    %2395 = vdwg.mxu0
    %v2400 = vrot.slane %v2321, 2
    %v2401 = vrot.slane %v2323, 2
    %v2402 = vrot.slane %v2392, 2
    %v2403 = vrot.slane %v2394, 2
    %v2408 = vadd.f32 %v819, %v2400
    %v2409 = vadd.f32 %v821, %v2401
    %v2410 = vadd.f32 %v896, %v2402
    %v2411 = vadd.f32 %v898, %v2403
    %v2412 = vxor.u32 %v2408, 2147483648
    %v2413 = vmul.f32 %v2412, 1.442695
    %v2414 = vpow.pop %v2413
    %v2415 = vadd.f32 %v2414, 1.0
    %v2416 = vrcp.pop %v2415
    %v2417 = vmul.f32 1.0, %v2416
    %v2418 = vxor.u32 %v2409, 2147483648
    %v2419 = vmul.f32 %v2418, 1.442695
    %v2420 = vpow.pop %v2419
    %v2421 = vadd.f32 %v2420, 1.0
    %v2422 = vrcp.pop %v2421
    %v2423 = vmul.f32 1.0, %v2422
    %v2424 = vtanh.pop %v2410
    %v2425 = vxor.u32 %v2411, 2147483648
    %v2426 = vmul.f32 %v2425, 1.442695
    %v2427 = vpow.pop %v2426
    %v2428 = vadd.f32 %v2427, 1.0
    %v2429 = vrcp.pop %v2428
    %v2430 = vmul.f32 1.0, %v2429
    %v2432 = vrot.slane %v2247, 6
    %v2434 = vmul.f32 %v2423, %v2432
    %v2435 = vmul.f32 %v2417, %v2424
    %v2436 = vadd.f32 %v2434, %v2435
    %v2437 = vtanh.pop %v2436
    %v2438 = vmul.f32 %v2430, %v2437
    %2439 = vst [vmem:[#allocation3 + $0x8] sm:$0xc0] %v2438
    %v2440 = vld [vmem:[#allocation3] sm:$0xff]
    %v2441 = vld [vmem:[#allocation3 + $0x8] sm:$0xff]
    %v2442 = vld [vmem:[#allocation13] sm:$0xff]
    %v2443 = vld [vmem:[#allocation13 + $0x8] sm:$0xff]
    %v2444 = vld [vmem:[#allocation13 + $0x10] sm:$0xff]
    %v2445 = vld [vmem:[#allocation13 + $0x18] sm:$0xff]
    %v2446 = vld [vmem:[#allocation13 + $0x20] sm:$0xff]
    %v2447 = vld [vmem:[#allocation13 + $0x28] sm:$0xff]
    %v2448 = vld [vmem:[#allocation13 + $0x30] sm:$0xff]
    %v2449 = vld [vmem:[#allocation13 + $0x38] sm:$0xff]
    %v2450 = vld [vmem:[#allocation13 + $0x40] sm:$0xff]
    %v2451 = vld [vmem:[#allocation13 + $0x48] sm:$0xff]
    %v2452 = vld [vmem:[#allocation13 + $0x50] sm:$0xff]
    %v2453 = vld [vmem:[#allocation13 + $0x58] sm:$0xff]
    %v2454 = vld [vmem:[#allocation13 + $0x60] sm:$0xff]
    %v2455 = vld [vmem:[#allocation13 + $0x68] sm:$0xff]
    %v2456 = vld [vmem:[#allocation13 + $0x70] sm:$0xff]
    %v2457 = vld [vmem:[#allocation13 + $0x78] sm:$0xff]
    %v2458 = vld [vmem:[#allocation13 + $0x80] sm:$0xff]
    %v2459 = vld [vmem:[#allocation13 + $0x88] sm:$0xff]
    %v2460 = vld [vmem:[#allocation13 + $0x90] sm:$0xff]
    %v2461 = vld [vmem:[#allocation13 + $0x98] sm:$0xff]
    %v2462 = vld [vmem:[#allocation13 + $0xa0] sm:$0xff]
    %v2463 = vld [vmem:[#allocation13 + $0xa8] sm:$0xff]
    %v2464 = vld [vmem:[#allocation13 + $0xb0] sm:$0xff]
    %v2465 = vld [vmem:[#allocation13 + $0xb8] sm:$0xff]
    %v2466 = vld [vmem:[#allocation13 + $0xc0] sm:$0xff]
    %v2467 = vld [vmem:[#allocation13 + $0xc8] sm:$0xff]
    %v2468 = vld [vmem:[#allocation13 + $0xd0] sm:$0xff]
    %v2469 = vld [vmem:[#allocation13 + $0xd8] sm:$0xff]
    %v2470 = vld [vmem:[#allocation13 + $0xe0] sm:$0xff]
    %v2471 = vld [vmem:[#allocation13 + $0xe8] sm:$0xff]
    %v2472 = vld [vmem:[#allocation13 + $0xf0] sm:$0xff]
    %v2473 = vld [vmem:[#allocation13 + $0xf8] sm:$0xff]
    %v2474 = vld [vmem:[#allocation13 + $0x100] sm:$0xff]
    %v2475 = vld [vmem:[#allocation13 + $0x108] sm:$0xff]
    %v2476 = vld [vmem:[#allocation13 + $0x110] sm:$0xff]
    %v2477 = vld [vmem:[#allocation13 + $0x118] sm:$0xff]
    %v2478 = vld [vmem:[#allocation13 + $0x120] sm:$0xff]
    %v2479 = vld [vmem:[#allocation13 + $0x128] sm:$0xff]
    %v2480 = vld [vmem:[#allocation13 + $0x130] sm:$0xff]
    %v2481 = vld [vmem:[#allocation13 + $0x138] sm:$0xff]
    %v2482 = vld [vmem:[#allocation13 + $0x140] sm:$0xff]
    %v2483 = vld [vmem:[#allocation13 + $0x148] sm:$0xff]
    %v2484 = vld [vmem:[#allocation13 + $0x150] sm:$0xff]
    %v2485 = vld [vmem:[#allocation13 + $0x158] sm:$0xff]
    %v2486 = vld [vmem:[#allocation13 + $0x160] sm:$0xff]
    %v2487 = vld [vmem:[#allocation13 + $0x168] sm:$0xff]
    %v2488 = vld [vmem:[#allocation13 + $0x170] sm:$0xff]
    %v2489 = vld [vmem:[#allocation13 + $0x178] sm:$0xff]
    %v2490 = vld [vmem:[#allocation13 + $0x180] sm:$0xff]
    %v2491 = vld [vmem:[#allocation13 + $0x188] sm:$0xff]
    %v2492 = vld [vmem:[#allocation13 + $0x190] sm:$0xff]
    %v2493 = vld [vmem:[#allocation13 + $0x198] sm:$0xff]
    %v2494 = vld [vmem:[#allocation13 + $0x1a0] sm:$0xff]
    %v2495 = vld [vmem:[#allocation13 + $0x1a8] sm:$0xff]
    %v2496 = vld [vmem:[#allocation13 + $0x1b0] sm:$0xff]
    %v2497 = vld [vmem:[#allocation13 + $0x1b8] sm:$0xff]
    %v2498 = vld [vmem:[#allocation13 + $0x1c0] sm:$0xff]
    %v2499 = vld [vmem:[#allocation13 + $0x1c8] sm:$0xff]
    %v2500 = vld [vmem:[#allocation13 + $0x1d0] sm:$0xff]
    %v2501 = vld [vmem:[#allocation13 + $0x1d8] sm:$0xff]
    %v2502 = vld [vmem:[#allocation13 + $0x1e0] sm:$0xff]
    %v2503 = vld [vmem:[#allocation13 + $0x1e8] sm:$0xff]
    %v2504 = vld [vmem:[#allocation13 + $0x1f0] sm:$0xff]
    %v2505 = vld [vmem:[#allocation13 + $0x1f8] sm:$0xff]
    %v2506 = vld [vmem:[%s11] sm:$0xf]
    %v2508 = vlaneseq
    %v2509 = vshrl.u32 %v2508, 7
    %v2510 = vsub.s32 0, %v2509
    %v2511 = vrot.slane %v2506, %v2510
    %v2512 = vlaneseq
    %v2513 = vshrl.u32 %v2512, 7
    %v2514 = vsub.s32 1, %v2513
    %v2515 = vrot.slane %v2506, %v2514
    %v2516 = vlaneseq
    %v2517 = vshrl.u32 %v2516, 7
    %v2518 = vsub.s32 2, %v2517
    %v2519 = vrot.slane %v2506, %v2518
    %v2520 = vlaneseq
    %v2521 = vshrl.u32 %v2520, 7
    %v2522 = vsub.s32 3, %v2521
    %v2523 = vrot.slane %v2506, %v2522
    %2528 = vmatprep.subr.mxu0 %v2443
    %2529 = vmatpush1.msra.mxu0 %v2442
    %2530 = vmatprep.subr.mxu0 %v2447
    %2531 = vmatpush1.msra.mxu0 %v2446
    %2532 = vmatprep.subr.mxu0 %v2451
    %2533 = vmatpush1.msra.mxu0 %v2450
    %2534 = vmatprep.subr.mxu0 %v2455
    %2535 = vmatpush1.msra.mxu0 %v2454
    %2536 = vmatprep.subr.mxu0 %v2459
    %2537 = vmatpush1.msra.mxu0 %v2458
    %2538 = vmatprep.subr.mxu0 %v2463
    %2539 = vmatpush1.msra.mxu0 %v2462
    %2540 = vmatprep.subr.mxu0 %v2467
    %2541 = vmatpush1.msra.mxu0 %v2466
    %2542 = vmatprep.subr.mxu0 %v2471
    %2543 = vmatpush1.msra.mxu0 %v2470
    %2544 = vmatprep.subr.mxu0 %v2475
    %2545 = vmatpush1.msra.mxu0 %v2474
    %2546 = vmatprep.subr.mxu0 %v2479
    %2547 = vmatpush1.msra.mxu0 %v2478
    %2548 = vmatprep.subr.mxu0 %v2483
    %2549 = vmatpush1.msra.mxu0 %v2482
    %2550 = vmatprep.subr.mxu0 %v2487
    %2551 = vmatpush1.msra.mxu0 %v2486
    %2552 = vmatprep.subr.mxu0 %v2491
    %2553 = vmatpush1.msra.mxu0 %v2490
    %2554 = vmatprep.subr.mxu0 %v2495
    %2555 = vmatpush1.msra.mxu0 %v2494
    %2556 = vmatprep.subr.mxu0 %v2499
    %2557 = vmatpush1.msra.mxu0 %v2498
    %2558 = vmatprep.subr.mxu0 %v2503
    %2559 = vmatpush1.msra.mxu0 %v2502
    %2560 = vmatprep.subr.mxu0 0.0
    %2561 = vmatpush1.msra.mxu0 0.0
    %2562 = vmatprep.subr.mxu0 0.0
    %2563 = vmatpush1.msra.mxu0 0.0
    %2564 = vmatprep.subr.mxu0 0.0
    %2565 = vmatpush1.msra.mxu0 0.0
    %2566 = vmatprep.subr.mxu0 0.0
    %2567 = vmatpush1.msra.mxu0 0.0
    %2568 = vmatprep.subr.mxu0 0.0
    %2569 = vmatpush1.msra.mxu0 0.0
    %2570 = vmatprep.subr.mxu0 0.0
    %2571 = vmatpush1.msra.mxu0 0.0
    %2572 = vmatprep.subr.mxu0 0.0
    %2573 = vmatpush1.msra.mxu0 0.0
    %2574 = vmatprep.subr.mxu0 0.0
    %2575 = vmatpush1.msra.mxu0 0.0
    %2576 = vmatprep.subr.mxu0 0.0
    %2577 = vmatpush1.msra.mxu0 0.0
    %2578 = vmatprep.subr.mxu0 0.0
    %2579 = vmatpush1.msra.mxu0 0.0
    %2580 = vmatprep.subr.mxu0 0.0
    %2581 = vmatpush1.msra.mxu0 0.0
    %2582 = vmatprep.subr.mxu0 0.0
    %2583 = vmatpush1.msra.mxu0 0.0
    %2584 = vmatprep.subr.mxu0 0.0
    %2585 = vmatpush1.msra.mxu0 0.0
    %2586 = vmatprep.subr.mxu0 0.0
    %2587 = vmatpush1.msra.mxu0 0.0
    %2588 = vmatprep.subr.mxu0 0.0
    %2589 = vmatpush1.msra.mxu0 0.0
    %2590 = vmatprep.subr.mxu0 0.0
    %2591 = vmatpush1.msra.mxu0 0.0
    %2592 = vmatprep.mubr.f32.mxu0 0.0
    %2593 = vmatmul.mubr.f32.gmra.mrb[0].mxu0 %v2440
    %v2594 = vpop.f32.mrb[0].mxu0
    %v2595 = vadd.f32 %v2511, %v2594
    %v2596 = vpop.f32.mrb[0].mxu0
    %v2597 = vadd.f32 %v2515, %v2596
    %2598 = vmatprep.mubr.f32.mxu0 0.0
    %2599 = vmatmul.mubr.f32.gmra.mrb[0].mxu0 %v2441
    %v2600 = vpop.f32.mrb[0].mxu0
    %v2601 = vadd.f32 %v2511, %v2600
    %v2602 = vpop.f32.mrb[0].mxu0
    %v2603 = vadd.f32 %v2515, %v2602
    %2604 = vdwg.mxu0
    %2605 = vmatprep.subr.mxu0 %v2445
    %2606 = vmatpush1.msra.mxu0 %v2444
    %2607 = vmatprep.subr.mxu0 %v2449
    %2608 = vmatpush1.msra.mxu0 %v2448
    %2609 = vmatprep.subr.mxu0 %v2453
    %2610 = vmatpush1.msra.mxu0 %v2452
    %2611 = vmatprep.subr.mxu0 %v2457
    %2612 = vmatpush1.msra.mxu0 %v2456
    %2613 = vmatprep.subr.mxu0 %v2461
    %2614 = vmatpush1.msra.mxu0 %v2460
    %2615 = vmatprep.subr.mxu0 %v2465
    %2616 = vmatpush1.msra.mxu0 %v2464
    %2617 = vmatprep.subr.mxu0 %v2469
    %2618 = vmatpush1.msra.mxu0 %v2468
    %2619 = vmatprep.subr.mxu0 %v2473
    %2620 = vmatpush1.msra.mxu0 %v2472
    %2621 = vmatprep.subr.mxu0 %v2477
    %2622 = vmatpush1.msra.mxu0 %v2476
    %2623 = vmatprep.subr.mxu0 %v2481
    %2624 = vmatpush1.msra.mxu0 %v2480
    %2625 = vmatprep.subr.mxu0 %v2485
    %2626 = vmatpush1.msra.mxu0 %v2484
    %2627 = vmatprep.subr.mxu0 %v2489
    %2628 = vmatpush1.msra.mxu0 %v2488
    %2629 = vmatprep.subr.mxu0 %v2493
    %2630 = vmatpush1.msra.mxu0 %v2492
    %2631 = vmatprep.subr.mxu0 %v2497
    %2632 = vmatpush1.msra.mxu0 %v2496
    %2633 = vmatprep.subr.mxu0 %v2501
    %2634 = vmatpush1.msra.mxu0 %v2500
    %2635 = vmatprep.subr.mxu0 %v2505
    %2636 = vmatpush1.msra.mxu0 %v2504
    %2637 = vmatprep.subr.mxu0 0.0
    %2638 = vmatpush1.msra.mxu0 0.0
    %2639 = vmatprep.subr.mxu0 0.0
    %2640 = vmatpush1.msra.mxu0 0.0
    %2641 = vmatprep.subr.mxu0 0.0
    %2642 = vmatpush1.msra.mxu0 0.0
    %2643 = vmatprep.subr.mxu0 0.0
    %2644 = vmatpush1.msra.mxu0 0.0
    %2645 = vmatprep.subr.mxu0 0.0
    %2646 = vmatpush1.msra.mxu0 0.0
    %2647 = vmatprep.subr.mxu0 0.0
    %2648 = vmatpush1.msra.mxu0 0.0
    %2649 = vmatprep.subr.mxu0 0.0
    %2650 = vmatpush1.msra.mxu0 0.0
    %2651 = vmatprep.subr.mxu0 0.0
    %2652 = vmatpush1.msra.mxu0 0.0
    %2653 = vmatprep.subr.mxu0 0.0
    %2654 = vmatpush1.msra.mxu0 0.0
    %2655 = vmatprep.subr.mxu0 0.0
    %2656 = vmatpush1.msra.mxu0 0.0
    %2657 = vmatprep.subr.mxu0 0.0
    %2658 = vmatpush1.msra.mxu0 0.0
    %2659 = vmatprep.subr.mxu0 0.0
    %2660 = vmatpush1.msra.mxu0 0.0
    %2661 = vmatprep.subr.mxu0 0.0
    %2662 = vmatpush1.msra.mxu0 0.0
    %2663 = vmatprep.subr.mxu0 0.0
    %2664 = vmatpush1.msra.mxu0 0.0
    %2665 = vmatprep.subr.mxu0 0.0
    %2666 = vmatpush1.msra.mxu0 0.0
    %2667 = vmatprep.subr.mxu0 0.0
    %2668 = vmatpush1.msra.mxu0 0.0
    %2669 = vmatprep.mubr.f32.mxu0 0.0
    %2670 = vmatmul.mubr.f32.gmra.mrb[0].mxu0 %v2440
    %v2671 = vpop.f32.mrb[0].mxu0
    %v2672 = vadd.f32 %v2519, %v2671
    %v2673 = vpop.f32.mrb[0].mxu0
    %v2674 = vadd.f32 %v2523, %v2673
    %2675 = vmatprep.mubr.f32.mxu0 0.0
    %2676 = vmatmul.mubr.f32.gmra.mrb[0].mxu0 %v2441
    %v2677 = vpop.f32.mrb[0].mxu0
    %v2678 = vadd.f32 %v2519, %v2677
    %v2679 = vpop.f32.mrb[0].mxu0
    %v2680 = vadd.f32 %v2523, %v2679
    %2681 = vdwg.mxu0
    %v2682 = vld [vmem:[#allocation15] sm:$0xff]
    %v2683 = vld [vmem:[#allocation15 + $0x8] sm:$0xff]
    %v2684 = vld [vmem:[#allocation15 + $0x10] sm:$0xff]
    %v2685 = vld [vmem:[#allocation15 + $0x18] sm:$0xff]
    %v2686 = vld [vmem:[#allocation15 + $0x20] sm:$0xff]
    %v2687 = vld [vmem:[#allocation15 + $0x28] sm:$0xff]
    %v2688 = vld [vmem:[#allocation15 + $0x30] sm:$0xff]
    %v2689 = vld [vmem:[#allocation15 + $0x38] sm:$0xff]
    %v2690 = vld [vmem:[#allocation15 + $0x40] sm:$0xff]
    %v2691 = vld [vmem:[#allocation15 + $0x48] sm:$0xff]
    %v2692 = vld [vmem:[#allocation15 + $0x50] sm:$0xff]
    %v2693 = vld [vmem:[#allocation15 + $0x58] sm:$0xff]
    %v2694 = vld [vmem:[#allocation15 + $0x60] sm:$0xff]
    %v2695 = vld [vmem:[#allocation15 + $0x68] sm:$0xff]
    %v2696 = vld [vmem:[#allocation15 + $0x70] sm:$0xff]
    %v2697 = vld [vmem:[#allocation15 + $0x78] sm:$0xff]
    %v2698 = vld [vmem:[#allocation15 + $0x80] sm:$0xff]
    %v2699 = vld [vmem:[#allocation15 + $0x88] sm:$0xff]
    %v2700 = vld [vmem:[#allocation15 + $0x90] sm:$0xff]
    %v2701 = vld [vmem:[#allocation15 + $0x98] sm:$0xff]
    %v2702 = vld [vmem:[#allocation15 + $0xa0] sm:$0xff]
    %v2703 = vld [vmem:[#allocation15 + $0xa8] sm:$0xff]
    %v2704 = vld [vmem:[#allocation15 + $0xb0] sm:$0xff]
    %v2705 = vld [vmem:[#allocation15 + $0xb8] sm:$0xff]
    %v2706 = vld [vmem:[#allocation15 + $0xc0] sm:$0xff]
    %v2707 = vld [vmem:[#allocation15 + $0xc8] sm:$0xff]
    %v2708 = vld [vmem:[#allocation15 + $0xd0] sm:$0xff]
    %v2709 = vld [vmem:[#allocation15 + $0xd8] sm:$0xff]
    %v2710 = vld [vmem:[#allocation15 + $0xe0] sm:$0xff]
    %v2711 = vld [vmem:[#allocation15 + $0xe8] sm:$0xff]
    %v2712 = vld [vmem:[#allocation15 + $0xf0] sm:$0xff]
    %v2713 = vld [vmem:[#allocation15 + $0xf8] sm:$0xff]
    %v2714 = vld [vmem:[#allocation15 + $0x100] sm:$0xff]
    %v2715 = vld [vmem:[#allocation15 + $0x108] sm:$0xff]
    %v2716 = vld [vmem:[#allocation15 + $0x110] sm:$0xff]
    %v2717 = vld [vmem:[#allocation15 + $0x118] sm:$0xff]
    %v2718 = vld [vmem:[#allocation15 + $0x120] sm:$0xff]
    %v2719 = vld [vmem:[#allocation15 + $0x128] sm:$0xff]
    %v2720 = vld [vmem:[#allocation15 + $0x130] sm:$0xff]
    %v2721 = vld [vmem:[#allocation15 + $0x138] sm:$0xff]
    %v2722 = vld [vmem:[#allocation15 + $0x140] sm:$0xff]
    %v2723 = vld [vmem:[#allocation15 + $0x148] sm:$0xff]
    %v2724 = vld [vmem:[#allocation15 + $0x150] sm:$0xff]
    %v2725 = vld [vmem:[#allocation15 + $0x158] sm:$0xff]
    %v2726 = vld [vmem:[#allocation15 + $0x160] sm:$0xff]
    %v2727 = vld [vmem:[#allocation15 + $0x168] sm:$0xff]
    %v2728 = vld [vmem:[#allocation15 + $0x170] sm:$0xff]
    %v2729 = vld [vmem:[#allocation15 + $0x178] sm:$0xff]
    %v2730 = vld [vmem:[#allocation15 + $0x180] sm:$0xff]
    %v2731 = vld [vmem:[#allocation15 + $0x188] sm:$0xff]
    %v2732 = vld [vmem:[#allocation15 + $0x190] sm:$0xff]
    %v2733 = vld [vmem:[#allocation15 + $0x198] sm:$0xff]
    %v2734 = vld [vmem:[#allocation15 + $0x1a0] sm:$0xff]
    %v2735 = vld [vmem:[#allocation15 + $0x1a8] sm:$0xff]
    %v2736 = vld [vmem:[#allocation15 + $0x1b0] sm:$0xff]
    %v2737 = vld [vmem:[#allocation15 + $0x1b8] sm:$0xff]
    %v2738 = vld [vmem:[#allocation15 + $0x1c0] sm:$0xff]
    %v2739 = vld [vmem:[#allocation15 + $0x1c8] sm:$0xff]
    %v2740 = vld [vmem:[#allocation15 + $0x1d0] sm:$0xff]
    %v2741 = vld [vmem:[#allocation15 + $0x1d8] sm:$0xff]
    %v2742 = vld [vmem:[#allocation15 + $0x1e0] sm:$0xff]
    %v2743 = vld [vmem:[#allocation15 + $0x1e8] sm:$0xff]
    %v2744 = vld [vmem:[#allocation15 + $0x1f0] sm:$0xff]
    %v2745 = vld [vmem:[#allocation15 + $0x1f8] sm:$0xff]
    %2746 = vmatprep.subr.mxu0 %v2683
    %2747 = vmatpush1.msra.mxu0 %v2682
    %2748 = vmatprep.subr.mxu0 %v2687
    %2749 = vmatpush1.msra.mxu0 %v2686
    %2750 = vmatprep.subr.mxu0 %v2691
    %2751 = vmatpush1.msra.mxu0 %v2690
    %2752 = vmatprep.subr.mxu0 %v2695
    %2753 = vmatpush1.msra.mxu0 %v2694
    %2754 = vmatprep.subr.mxu0 %v2699
    %2755 = vmatpush1.msra.mxu0 %v2698
    %2756 = vmatprep.subr.mxu0 %v2703
    %2757 = vmatpush1.msra.mxu0 %v2702
    %2758 = vmatprep.subr.mxu0 %v2707
    %2759 = vmatpush1.msra.mxu0 %v2706
    %2760 = vmatprep.subr.mxu0 %v2711
    %2761 = vmatpush1.msra.mxu0 %v2710
    %2762 = vmatprep.subr.mxu0 %v2715
    %2763 = vmatpush1.msra.mxu0 %v2714
    %2764 = vmatprep.subr.mxu0 %v2719
    %2765 = vmatpush1.msra.mxu0 %v2718
    %2766 = vmatprep.subr.mxu0 %v2723
    %2767 = vmatpush1.msra.mxu0 %v2722
    %2768 = vmatprep.subr.mxu0 %v2727
    %2769 = vmatpush1.msra.mxu0 %v2726
    %2770 = vmatprep.subr.mxu0 %v2731
    %2771 = vmatpush1.msra.mxu0 %v2730
    %2772 = vmatprep.subr.mxu0 %v2735
    %2773 = vmatpush1.msra.mxu0 %v2734
    %2774 = vmatprep.subr.mxu0 %v2739
    %2775 = vmatpush1.msra.mxu0 %v2738
    %2776 = vmatprep.subr.mxu0 %v2743
    %2777 = vmatpush1.msra.mxu0 %v2742
    %2778 = vmatprep.subr.mxu0 0.0
    %2779 = vmatpush1.msra.mxu0 0.0
    %2780 = vmatprep.subr.mxu0 0.0
    %2781 = vmatpush1.msra.mxu0 0.0
    %2782 = vmatprep.subr.mxu0 0.0
    %2783 = vmatpush1.msra.mxu0 0.0
    %2784 = vmatprep.subr.mxu0 0.0
    %2785 = vmatpush1.msra.mxu0 0.0
    %2786 = vmatprep.subr.mxu0 0.0
    %2787 = vmatpush1.msra.mxu0 0.0
    %2788 = vmatprep.subr.mxu0 0.0
    %2789 = vmatpush1.msra.mxu0 0.0
    %2790 = vmatprep.subr.mxu0 0.0
    %2791 = vmatpush1.msra.mxu0 0.0
    %2792 = vmatprep.subr.mxu0 0.0
    %2793 = vmatpush1.msra.mxu0 0.0
    %2794 = vmatprep.subr.mxu0 0.0
    %2795 = vmatpush1.msra.mxu0 0.0
    %2796 = vmatprep.subr.mxu0 0.0
    %2797 = vmatpush1.msra.mxu0 0.0
    %2798 = vmatprep.subr.mxu0 0.0
    %2799 = vmatpush1.msra.mxu0 0.0
    %2800 = vmatprep.subr.mxu0 0.0
    %2801 = vmatpush1.msra.mxu0 0.0
    %2802 = vmatprep.subr.mxu0 0.0
    %2803 = vmatpush1.msra.mxu0 0.0
    %2804 = vmatprep.subr.mxu0 0.0
    %2805 = vmatpush1.msra.mxu0 0.0
    %2806 = vmatprep.subr.mxu0 0.0
    %2807 = vmatpush1.msra.mxu0 0.0
    %2808 = vmatprep.subr.mxu0 0.0
    %2809 = vmatpush1.msra.mxu0 0.0
    %2810 = vmatprep.mubr.f32.mxu0 0.0
    %2811 = vmatmul.mubr.f32.gmra.mrb[0].mxu0 0.0
    %v2812 = vpop.f32.mrb[0].mxu0
    %v2813 = vadd.f32 0.0, %v2812
    %v2814 = vpop.f32.mrb[0].mxu0
    %v2815 = vadd.f32 0.0, %v2814
    %2816 = vdwg.mxu0
    %2817 = vmatprep.subr.mxu0 %v2685
    %2818 = vmatpush1.msra.mxu0 %v2684
    %2819 = vmatprep.subr.mxu0 %v2689
    %2820 = vmatpush1.msra.mxu0 %v2688
    %2821 = vmatprep.subr.mxu0 %v2693
    %2822 = vmatpush1.msra.mxu0 %v2692
    %2823 = vmatprep.subr.mxu0 %v2697
    %2824 = vmatpush1.msra.mxu0 %v2696
    %2825 = vmatprep.subr.mxu0 %v2701
    %2826 = vmatpush1.msra.mxu0 %v2700
    %2827 = vmatprep.subr.mxu0 %v2705
    %2828 = vmatpush1.msra.mxu0 %v2704
    %2829 = vmatprep.subr.mxu0 %v2709
    %2830 = vmatpush1.msra.mxu0 %v2708
    %2831 = vmatprep.subr.mxu0 %v2713
    %2832 = vmatpush1.msra.mxu0 %v2712
    %2833 = vmatprep.subr.mxu0 %v2717
    %2834 = vmatpush1.msra.mxu0 %v2716
    %2835 = vmatprep.subr.mxu0 %v2721
    %2836 = vmatpush1.msra.mxu0 %v2720
    %2837 = vmatprep.subr.mxu0 %v2725
    %2838 = vmatpush1.msra.mxu0 %v2724
    %2839 = vmatprep.subr.mxu0 %v2729
    %2840 = vmatpush1.msra.mxu0 %v2728
    %2841 = vmatprep.subr.mxu0 %v2733
    %2842 = vmatpush1.msra.mxu0 %v2732
    %2843 = vmatprep.subr.mxu0 %v2737
    %2844 = vmatpush1.msra.mxu0 %v2736
    %2845 = vmatprep.subr.mxu0 %v2741
    %2846 = vmatpush1.msra.mxu0 %v2740
    %2847 = vmatprep.subr.mxu0 %v2745
    %2848 = vmatpush1.msra.mxu0 %v2744
    %2849 = vmatprep.subr.mxu0 0.0
    %2850 = vmatpush1.msra.mxu0 0.0
    %2851 = vmatprep.subr.mxu0 0.0
    %2852 = vmatpush1.msra.mxu0 0.0
    %2853 = vmatprep.subr.mxu0 0.0
    %2854 = vmatpush1.msra.mxu0 0.0
    %2855 = vmatprep.subr.mxu0 0.0
    %2856 = vmatpush1.msra.mxu0 0.0
    %2857 = vmatprep.subr.mxu0 0.0
    %2858 = vmatpush1.msra.mxu0 0.0
    %2859 = vmatprep.subr.mxu0 0.0
    %2860 = vmatpush1.msra.mxu0 0.0
    %2861 = vmatprep.subr.mxu0 0.0
    %2862 = vmatpush1.msra.mxu0 0.0
    %2863 = vmatprep.subr.mxu0 0.0
    %2864 = vmatpush1.msra.mxu0 0.0
    %2865 = vmatprep.subr.mxu0 0.0
    %2866 = vmatpush1.msra.mxu0 0.0
    %2867 = vmatprep.subr.mxu0 0.0
    %2868 = vmatpush1.msra.mxu0 0.0
    %2869 = vmatprep.subr.mxu0 0.0
    %2870 = vmatpush1.msra.mxu0 0.0
    %2871 = vmatprep.subr.mxu0 0.0
    %2872 = vmatpush1.msra.mxu0 0.0
    %2873 = vmatprep.subr.mxu0 0.0
    %2874 = vmatpush1.msra.mxu0 0.0
    %2875 = vmatprep.subr.mxu0 0.0
    %2876 = vmatpush1.msra.mxu0 0.0
    %2877 = vmatprep.subr.mxu0 0.0
    %2878 = vmatpush1.msra.mxu0 0.0
    %2879 = vmatprep.subr.mxu0 0.0
    %2880 = vmatpush1.msra.mxu0 0.0
    %2881 = vmatprep.mubr.f32.mxu0 0.0
    %2882 = vmatmul.mubr.f32.gmra.mrb[0].mxu0 0.0
    %v2883 = vpop.f32.mrb[0].mxu0
    %v2884 = vadd.f32 0.0, %v2883
    %v2885 = vpop.f32.mrb[0].mxu0
    %v2886 = vadd.f32 0.0, %v2885
    %2887 = vdwg.mxu0
    %v2888 = vadd.f32 %v2595, %v2813
    %v2889 = vadd.f32 %v2597, %v2815
    %v2890 = vadd.f32 %v2672, %v2884
    %v2891 = vadd.f32 %v2674, %v2886
    %v2892 = vxor.u32 %v2888, 2147483648
    %v2893 = vmul.f32 %v2892, 1.442695
    %v2894 = vpow.pop %v2893
    %v2895 = vadd.f32 %v2894, 1.0
    %v2896 = vrcp.pop %v2895
    %v2897 = vmul.f32 1.0, %v2896
    %v2898 = vxor.u32 %v2889, 2147483648
    %v2899 = vmul.f32 %v2898, 1.442695
    %v2900 = vpow.pop %v2899
    %v2901 = vadd.f32 %v2900, 1.0
    %v2902 = vrcp.pop %v2901
    %v2903 = vmul.f32 1.0, %v2902
    %v2904 = vtanh.pop %v2890
    %v2905 = vxor.u32 %v2891, 2147483648
    %v2906 = vmul.f32 %v2905, 1.442695
    %v2907 = vpow.pop %v2906
    %v2908 = vadd.f32 %v2907, 1.0
    %v2909 = vrcp.pop %v2908
    %v2910 = vmul.f32 1.0, %v2909
    %v2911 = vmul.f32 %v2903, 0.0
    %v2912 = vmul.f32 %v2897, %v2904
    %v2913 = vadd.f32 %v2911, %v2912
    %v2914 = vtanh.pop %v2913
    %v2915 = vmul.f32 %v2910, %v2914
    %2916 = vst [vmem:[#allocation3] sm:$0x3] %v2915
    %2917 = vmatprep.subr.mxu0 %v2683
    %2918 = vmatpush1.msra.mxu0 %v2682
    %2919 = vmatprep.subr.mxu0 %v2687
    %2920 = vmatpush1.msra.mxu0 %v2686
    %2921 = vmatprep.subr.mxu0 %v2691
    %2922 = vmatpush1.msra.mxu0 %v2690
    %2923 = vmatprep.subr.mxu0 %v2695
    %2924 = vmatpush1.msra.mxu0 %v2694
    %2925 = vmatprep.subr.mxu0 %v2699
    %2926 = vmatpush1.msra.mxu0 %v2698
    %2927 = vmatprep.subr.mxu0 %v2703
    %2928 = vmatpush1.msra.mxu0 %v2702
    %2929 = vmatprep.subr.mxu0 %v2707
    %2930 = vmatpush1.msra.mxu0 %v2706
    %2931 = vmatprep.subr.mxu0 %v2711
    %2932 = vmatpush1.msra.mxu0 %v2710
    %2933 = vmatprep.subr.mxu0 %v2715
    %2934 = vmatpush1.msra.mxu0 %v2714
    %2935 = vmatprep.subr.mxu0 %v2719
    %2936 = vmatpush1.msra.mxu0 %v2718
    %2937 = vmatprep.subr.mxu0 %v2723
    %2938 = vmatpush1.msra.mxu0 %v2722
    %2939 = vmatprep.subr.mxu0 %v2727
    %2940 = vmatpush1.msra.mxu0 %v2726
    %2941 = vmatprep.subr.mxu0 %v2731
    %2942 = vmatpush1.msra.mxu0 %v2730
    %2943 = vmatprep.subr.mxu0 %v2735
    %2944 = vmatpush1.msra.mxu0 %v2734
    %2945 = vmatprep.subr.mxu0 %v2739
    %2946 = vmatpush1.msra.mxu0 %v2738
    %2947 = vmatprep.subr.mxu0 %v2743
    %2948 = vmatpush1.msra.mxu0 %v2742
    %2949 = vmatprep.subr.mxu0 0.0
    %2950 = vmatpush1.msra.mxu0 0.0
    %2951 = vmatprep.subr.mxu0 0.0
    %2952 = vmatpush1.msra.mxu0 0.0
    %2953 = vmatprep.subr.mxu0 0.0
    %2954 = vmatpush1.msra.mxu0 0.0
    %2955 = vmatprep.subr.mxu0 0.0
    %2956 = vmatpush1.msra.mxu0 0.0
    %2957 = vmatprep.subr.mxu0 0.0
    %2958 = vmatpush1.msra.mxu0 0.0
    %2959 = vmatprep.subr.mxu0 0.0
    %2960 = vmatpush1.msra.mxu0 0.0
    %2961 = vmatprep.subr.mxu0 0.0
    %2962 = vmatpush1.msra.mxu0 0.0
    %2963 = vmatprep.subr.mxu0 0.0
    %2964 = vmatpush1.msra.mxu0 0.0
    %2965 = vmatprep.subr.mxu0 0.0
    %2966 = vmatpush1.msra.mxu0 0.0
    %2967 = vmatprep.subr.mxu0 0.0
    %2968 = vmatpush1.msra.mxu0 0.0
    %2969 = vmatprep.subr.mxu0 0.0
    %2970 = vmatpush1.msra.mxu0 0.0
    %2971 = vmatprep.subr.mxu0 0.0
    %2972 = vmatpush1.msra.mxu0 0.0
    %2973 = vmatprep.subr.mxu0 0.0
    %2974 = vmatpush1.msra.mxu0 0.0
    %2975 = vmatprep.subr.mxu0 0.0
    %2976 = vmatpush1.msra.mxu0 0.0
    %2977 = vmatprep.subr.mxu0 0.0
    %2978 = vmatpush1.msra.mxu0 0.0
    %2979 = vmatprep.subr.mxu0 0.0
    %2980 = vmatpush1.msra.mxu0 0.0
    %2981 = vmatprep.mubr.f32.mxu0 0.0
    %2982 = vmatmul.mubr.f32.gmra.mrb[0].mxu0 %v2915
    %v2983 = vpop.f32.mrb[0].mxu0
    %v2984 = vadd.f32 0.0, %v2983
    %v2985 = vpop.f32.mrb[0].mxu0
    %v2986 = vadd.f32 0.0, %v2985
    %2987 = vdwg.mxu0
    %2988 = vmatprep.subr.mxu0 %v2685
    %2989 = vmatpush1.msra.mxu0 %v2684
    %2990 = vmatprep.subr.mxu0 %v2689
    %2991 = vmatpush1.msra.mxu0 %v2688
    %2992 = vmatprep.subr.mxu0 %v2693
    %2993 = vmatpush1.msra.mxu0 %v2692
    %2994 = vmatprep.subr.mxu0 %v2697
    %2995 = vmatpush1.msra.mxu0 %v2696
    %2996 = vmatprep.subr.mxu0 %v2701
    %2997 = vmatpush1.msra.mxu0 %v2700
    %2998 = vmatprep.subr.mxu0 %v2705
    %2999 = vmatpush1.msra.mxu0 %v2704
    %3000 = vmatprep.subr.mxu0 %v2709
    %3001 = vmatpush1.msra.mxu0 %v2708
    %3002 = vmatprep.subr.mxu0 %v2713
    %3003 = vmatpush1.msra.mxu0 %v2712
    %3004 = vmatprep.subr.mxu0 %v2717
    %3005 = vmatpush1.msra.mxu0 %v2716
    %3006 = vmatprep.subr.mxu0 %v2721
    %3007 = vmatpush1.msra.mxu0 %v2720
    %3008 = vmatprep.subr.mxu0 %v2725
    %3009 = vmatpush1.msra.mxu0 %v2724
    %3010 = vmatprep.subr.mxu0 %v2729
    %3011 = vmatpush1.msra.mxu0 %v2728
    %3012 = vmatprep.subr.mxu0 %v2733
    %3013 = vmatpush1.msra.mxu0 %v2732
    %3014 = vmatprep.subr.mxu0 %v2737
    %3015 = vmatpush1.msra.mxu0 %v2736
    %3016 = vmatprep.subr.mxu0 %v2741
    %3017 = vmatpush1.msra.mxu0 %v2740
    %3018 = vmatprep.subr.mxu0 %v2745
    %3019 = vmatpush1.msra.mxu0 %v2744
    %3020 = vmatprep.subr.mxu0 0.0
    %3021 = vmatpush1.msra.mxu0 0.0
    %3022 = vmatprep.subr.mxu0 0.0
    %3023 = vmatpush1.msra.mxu0 0.0
    %3024 = vmatprep.subr.mxu0 0.0
    %3025 = vmatpush1.msra.mxu0 0.0
    %3026 = vmatprep.subr.mxu0 0.0
    %3027 = vmatpush1.msra.mxu0 0.0
    %3028 = vmatprep.subr.mxu0 0.0
    %3029 = vmatpush1.msra.mxu0 0.0
    %3030 = vmatprep.subr.mxu0 0.0
    %3031 = vmatpush1.msra.mxu0 0.0
    %3032 = vmatprep.subr.mxu0 0.0
    %3033 = vmatpush1.msra.mxu0 0.0
    %3034 = vmatprep.subr.mxu0 0.0
    %3035 = vmatpush1.msra.mxu0 0.0
    %3036 = vmatprep.subr.mxu0 0.0
    %3037 = vmatpush1.msra.mxu0 0.0
    %3038 = vmatprep.subr.mxu0 0.0
    %3039 = vmatpush1.msra.mxu0 0.0
    %3040 = vmatprep.subr.mxu0 0.0
    %3041 = vmatpush1.msra.mxu0 0.0
    %3042 = vmatprep.subr.mxu0 0.0
    %3043 = vmatpush1.msra.mxu0 0.0
    %3044 = vmatprep.subr.mxu0 0.0
    %3045 = vmatpush1.msra.mxu0 0.0
    %3046 = vmatprep.subr.mxu0 0.0
    %3047 = vmatpush1.msra.mxu0 0.0
    %3048 = vmatprep.subr.mxu0 0.0
    %3049 = vmatpush1.msra.mxu0 0.0
    %3050 = vmatprep.subr.mxu0 0.0
    %3051 = vmatpush1.msra.mxu0 0.0
    %3052 = vmatprep.mubr.f32.mxu0 0.0
    %3053 = vmatmul.mubr.f32.gmra.mrb[0].mxu0 %v2915
    %v3054 = vpop.f32.mrb[0].mxu0
    %v3055 = vadd.f32 0.0, %v3054
    %v3056 = vpop.f32.mrb[0].mxu0
    %v3057 = vadd.f32 0.0, %v3056
    %3058 = vdwg.mxu0
    %v3063 = vrot.slane %v2984, 6
    %v3064 = vrot.slane %v2986, 6
    %v3065 = vrot.slane %v3055, 6
    %v3066 = vrot.slane %v3057, 6
    %v3071 = vadd.f32 %v2595, %v3063
    %v3072 = vadd.f32 %v2597, %v3064
    %v3073 = vadd.f32 %v2672, %v3065
    %v3074 = vadd.f32 %v2674, %v3066
    %v3075 = vxor.u32 %v3071, 2147483648
    %v3076 = vmul.f32 %v3075, 1.442695
    %v3077 = vpow.pop %v3076
    %v3078 = vadd.f32 %v3077, 1.0
    %v3079 = vrcp.pop %v3078
    %v3080 = vmul.f32 1.0, %v3079
    %v3081 = vxor.u32 %v3072, 2147483648
    %v3082 = vmul.f32 %v3081, 1.442695
    %v3083 = vpow.pop %v3082
    %v3084 = vadd.f32 %v3083, 1.0
    %v3085 = vrcp.pop %v3084
    %v3086 = vmul.f32 1.0, %v3085
    %v3087 = vtanh.pop %v3073
    %v3088 = vxor.u32 %v3074, 2147483648
    %v3089 = vmul.f32 %v3088, 1.442695
    %v3090 = vpow.pop %v3089
    %v3091 = vadd.f32 %v3090, 1.0
    %v3092 = vrcp.pop %v3091
    %v3093 = vmul.f32 1.0, %v3092
    %v3095 = vrot.slane %v2913, 6
    %v3097 = vmul.f32 %v3086, %v3095
    %v3098 = vmul.f32 %v3080, %v3087
    %v3099 = vadd.f32 %v3097, %v3098
    %v3100 = vtanh.pop %v3099
    %v3101 = vmul.f32 %v3093, %v3100
    %3102 = vst [vmem:[#allocation3] sm:$0xc] %v3101
    %v3104 = vrot.slane %v3101, 2
    %3106 = vmatprep.subr.mxu0 %v2683
    %3107 = vmatpush1.msra.mxu0 %v2682
    %3108 = vmatprep.subr.mxu0 %v2687
    %3109 = vmatpush1.msra.mxu0 %v2686
    %3110 = vmatprep.subr.mxu0 %v2691
    %3111 = vmatpush1.msra.mxu0 %v2690
    %3112 = vmatprep.subr.mxu0 %v2695
    %3113 = vmatpush1.msra.mxu0 %v2694
    %3114 = vmatprep.subr.mxu0 %v2699
    %3115 = vmatpush1.msra.mxu0 %v2698
    %3116 = vmatprep.subr.mxu0 %v2703
    %3117 = vmatpush1.msra.mxu0 %v2702
    %3118 = vmatprep.subr.mxu0 %v2707
    %3119 = vmatpush1.msra.mxu0 %v2706
    %3120 = vmatprep.subr.mxu0 %v2711
    %3121 = vmatpush1.msra.mxu0 %v2710
    %3122 = vmatprep.subr.mxu0 %v2715
    %3123 = vmatpush1.msra.mxu0 %v2714
    %3124 = vmatprep.subr.mxu0 %v2719
    %3125 = vmatpush1.msra.mxu0 %v2718
    %3126 = vmatprep.subr.mxu0 %v2723
    %3127 = vmatpush1.msra.mxu0 %v2722
    %3128 = vmatprep.subr.mxu0 %v2727
    %3129 = vmatpush1.msra.mxu0 %v2726
    %3130 = vmatprep.subr.mxu0 %v2731
    %3131 = vmatpush1.msra.mxu0 %v2730
    %3132 = vmatprep.subr.mxu0 %v2735
    %3133 = vmatpush1.msra.mxu0 %v2734
    %3134 = vmatprep.subr.mxu0 %v2739
    %3135 = vmatpush1.msra.mxu0 %v2738
    %3136 = vmatprep.subr.mxu0 %v2743
    %3137 = vmatpush1.msra.mxu0 %v2742
    %3138 = vmatprep.subr.mxu0 0.0
    %3139 = vmatpush1.msra.mxu0 0.0
    %3140 = vmatprep.subr.mxu0 0.0
    %3141 = vmatpush1.msra.mxu0 0.0
    %3142 = vmatprep.subr.mxu0 0.0
    %3143 = vmatpush1.msra.mxu0 0.0
    %3144 = vmatprep.subr.mxu0 0.0
    %3145 = vmatpush1.msra.mxu0 0.0
    %3146 = vmatprep.subr.mxu0 0.0
    %3147 = vmatpush1.msra.mxu0 0.0
    %3148 = vmatprep.subr.mxu0 0.0
    %3149 = vmatpush1.msra.mxu0 0.0
    %3150 = vmatprep.subr.mxu0 0.0
    %3151 = vmatpush1.msra.mxu0 0.0
    %3152 = vmatprep.subr.mxu0 0.0
    %3153 = vmatpush1.msra.mxu0 0.0
    %3154 = vmatprep.subr.mxu0 0.0
    %3155 = vmatpush1.msra.mxu0 0.0
    %3156 = vmatprep.subr.mxu0 0.0
    %3157 = vmatpush1.msra.mxu0 0.0
    %3158 = vmatprep.subr.mxu0 0.0
    %3159 = vmatpush1.msra.mxu0 0.0
    %3160 = vmatprep.subr.mxu0 0.0
    %3161 = vmatpush1.msra.mxu0 0.0
    %3162 = vmatprep.subr.mxu0 0.0
    %3163 = vmatpush1.msra.mxu0 0.0
    %3164 = vmatprep.subr.mxu0 0.0
    %3165 = vmatpush1.msra.mxu0 0.0
    %3166 = vmatprep.subr.mxu0 0.0
    %3167 = vmatpush1.msra.mxu0 0.0
    %3168 = vmatprep.subr.mxu0 0.0
    %3169 = vmatpush1.msra.mxu0 0.0
    %3170 = vmatprep.mubr.f32.mxu0 0.0
    %3171 = vmatmul.mubr.f32.gmra.mrb[0].mxu0 %v3104
    %v3172 = vpop.f32.mrb[0].mxu0
    %v3173 = vadd.f32 0.0, %v3172
    %v3174 = vpop.f32.mrb[0].mxu0
    %v3175 = vadd.f32 0.0, %v3174
    %3176 = vdwg.mxu0
    %3177 = vmatprep.subr.mxu0 %v2685
    %3178 = vmatpush1.msra.mxu0 %v2684
    %3179 = vmatprep.subr.mxu0 %v2689
    %3180 = vmatpush1.msra.mxu0 %v2688
    %3181 = vmatprep.subr.mxu0 %v2693
    %3182 = vmatpush1.msra.mxu0 %v2692
    %3183 = vmatprep.subr.mxu0 %v2697
    %3184 = vmatpush1.msra.mxu0 %v2696
    %3185 = vmatprep.subr.mxu0 %v2701
    %3186 = vmatpush1.msra.mxu0 %v2700
    %3187 = vmatprep.subr.mxu0 %v2705
    %3188 = vmatpush1.msra.mxu0 %v2704
    %3189 = vmatprep.subr.mxu0 %v2709
    %3190 = vmatpush1.msra.mxu0 %v2708
    %3191 = vmatprep.subr.mxu0 %v2713
    %3192 = vmatpush1.msra.mxu0 %v2712
    %3193 = vmatprep.subr.mxu0 %v2717
    %3194 = vmatpush1.msra.mxu0 %v2716
    %3195 = vmatprep.subr.mxu0 %v2721
    %3196 = vmatpush1.msra.mxu0 %v2720
    %3197 = vmatprep.subr.mxu0 %v2725
    %3198 = vmatpush1.msra.mxu0 %v2724
    %3199 = vmatprep.subr.mxu0 %v2729
    %3200 = vmatpush1.msra.mxu0 %v2728
    %3201 = vmatprep.subr.mxu0 %v2733
    %3202 = vmatpush1.msra.mxu0 %v2732
    %3203 = vmatprep.subr.mxu0 %v2737
    %3204 = vmatpush1.msra.mxu0 %v2736
    %3205 = vmatprep.subr.mxu0 %v2741
    %3206 = vmatpush1.msra.mxu0 %v2740
    %3207 = vmatprep.subr.mxu0 %v2745
    %3208 = vmatpush1.msra.mxu0 %v2744
    %3209 = vmatprep.subr.mxu0 0.0
    %3210 = vmatpush1.msra.mxu0 0.0
    %3211 = vmatprep.subr.mxu0 0.0
    %3212 = vmatpush1.msra.mxu0 0.0
    %3213 = vmatprep.subr.mxu0 0.0
    %3214 = vmatpush1.msra.mxu0 0.0
    %3215 = vmatprep.subr.mxu0 0.0
    %3216 = vmatpush1.msra.mxu0 0.0
    %3217 = vmatprep.subr.mxu0 0.0
    %3218 = vmatpush1.msra.mxu0 0.0
    %3219 = vmatprep.subr.mxu0 0.0
    %3220 = vmatpush1.msra.mxu0 0.0
    %3221 = vmatprep.subr.mxu0 0.0
    %3222 = vmatpush1.msra.mxu0 0.0
    %3223 = vmatprep.subr.mxu0 0.0
    %3224 = vmatpush1.msra.mxu0 0.0
    %3225 = vmatprep.subr.mxu0 0.0
    %3226 = vmatpush1.msra.mxu0 0.0
    %3227 = vmatprep.subr.mxu0 0.0
    %3228 = vmatpush1.msra.mxu0 0.0
    %3229 = vmatprep.subr.mxu0 0.0
    %3230 = vmatpush1.msra.mxu0 0.0
    %3231 = vmatprep.subr.mxu0 0.0
    %3232 = vmatpush1.msra.mxu0 0.0
    %3233 = vmatprep.subr.mxu0 0.0
    %3234 = vmatpush1.msra.mxu0 0.0
    %3235 = vmatprep.subr.mxu0 0.0
    %3236 = vmatpush1.msra.mxu0 0.0
    %3237 = vmatprep.subr.mxu0 0.0
    %3238 = vmatpush1.msra.mxu0 0.0
    %3239 = vmatprep.subr.mxu0 0.0
    %3240 = vmatpush1.msra.mxu0 0.0
    %3241 = vmatprep.mubr.f32.mxu0 0.0
    %3242 = vmatmul.mubr.f32.gmra.mrb[0].mxu0 %v3104
    %v3243 = vpop.f32.mrb[0].mxu0
    %v3244 = vadd.f32 0.0, %v3243
    %v3245 = vpop.f32.mrb[0].mxu0
    %v3246 = vadd.f32 0.0, %v3245
    %3247 = vdwg.mxu0
    %v3252 = vrot.slane %v3173, 4
    %v3253 = vrot.slane %v3175, 4
    %v3254 = vrot.slane %v3244, 4
    %v3255 = vrot.slane %v3246, 4
    %v3260 = vadd.f32 %v2595, %v3252
    %v3261 = vadd.f32 %v2597, %v3253
    %v3262 = vadd.f32 %v2672, %v3254
    %v3263 = vadd.f32 %v2674, %v3255
    %v3264 = vxor.u32 %v3260, 2147483648
    %v3265 = vmul.f32 %v3264, 1.442695
    %v3266 = vpow.pop %v3265
    %v3267 = vadd.f32 %v3266, 1.0
    %v3268 = vrcp.pop %v3267
    %v3269 = vmul.f32 1.0, %v3268
    %v3270 = vxor.u32 %v3261, 2147483648
    %v3271 = vmul.f32 %v3270, 1.442695
    %v3272 = vpow.pop %v3271
    %v3273 = vadd.f32 %v3272, 1.0
    %v3274 = vrcp.pop %v3273
    %v3275 = vmul.f32 1.0, %v3274
    %v3276 = vtanh.pop %v3262
    %v3277 = vxor.u32 %v3263, 2147483648
    %v3278 = vmul.f32 %v3277, 1.442695
    %v3279 = vpow.pop %v3278
    %v3280 = vadd.f32 %v3279, 1.0
    %v3281 = vrcp.pop %v3280
    %v3282 = vmul.f32 1.0, %v3281
    %v3284 = vrot.slane %v3099, 6
    %v3286 = vmul.f32 %v3275, %v3284
    %v3287 = vmul.f32 %v3269, %v3276
    %v3288 = vadd.f32 %v3286, %v3287
    %v3289 = vtanh.pop %v3288
    %v3290 = vmul.f32 %v3282, %v3289
    %3291 = vst [vmem:[#allocation3] sm:$0x30] %v3290
    %v3293 = vrot.slane %v3290, 4
    %3295 = vmatprep.subr.mxu0 %v2683
    %3296 = vmatpush1.msra.mxu0 %v2682
    %3297 = vmatprep.subr.mxu0 %v2687
    %3298 = vmatpush1.msra.mxu0 %v2686
    %3299 = vmatprep.subr.mxu0 %v2691
    %3300 = vmatpush1.msra.mxu0 %v2690
    %3301 = vmatprep.subr.mxu0 %v2695
    %3302 = vmatpush1.msra.mxu0 %v2694
    %3303 = vmatprep.subr.mxu0 %v2699
    %3304 = vmatpush1.msra.mxu0 %v2698
    %3305 = vmatprep.subr.mxu0 %v2703
    %3306 = vmatpush1.msra.mxu0 %v2702
    %3307 = vmatprep.subr.mxu0 %v2707
    %3308 = vmatpush1.msra.mxu0 %v2706
    %3309 = vmatprep.subr.mxu0 %v2711
    %3310 = vmatpush1.msra.mxu0 %v2710
    %3311 = vmatprep.subr.mxu0 %v2715
    %3312 = vmatpush1.msra.mxu0 %v2714
    %3313 = vmatprep.subr.mxu0 %v2719
    %3314 = vmatpush1.msra.mxu0 %v2718
    %3315 = vmatprep.subr.mxu0 %v2723
    %3316 = vmatpush1.msra.mxu0 %v2722
    %3317 = vmatprep.subr.mxu0 %v2727
    %3318 = vmatpush1.msra.mxu0 %v2726
    %3319 = vmatprep.subr.mxu0 %v2731
    %3320 = vmatpush1.msra.mxu0 %v2730
    %3321 = vmatprep.subr.mxu0 %v2735
    %3322 = vmatpush1.msra.mxu0 %v2734
    %3323 = vmatprep.subr.mxu0 %v2739
    %3324 = vmatpush1.msra.mxu0 %v2738
    %3325 = vmatprep.subr.mxu0 %v2743
    %3326 = vmatpush1.msra.mxu0 %v2742
    %3327 = vmatprep.subr.mxu0 0.0
    %3328 = vmatpush1.msra.mxu0 0.0
    %3329 = vmatprep.subr.mxu0 0.0
    %3330 = vmatpush1.msra.mxu0 0.0
    %3331 = vmatprep.subr.mxu0 0.0
    %3332 = vmatpush1.msra.mxu0 0.0
    %3333 = vmatprep.subr.mxu0 0.0
    %3334 = vmatpush1.msra.mxu0 0.0
    %3335 = vmatprep.subr.mxu0 0.0
    %3336 = vmatpush1.msra.mxu0 0.0
    %3337 = vmatprep.subr.mxu0 0.0
    %3338 = vmatpush1.msra.mxu0 0.0
    %3339 = vmatprep.subr.mxu0 0.0
    %3340 = vmatpush1.msra.mxu0 0.0
    %3341 = vmatprep.subr.mxu0 0.0
    %3342 = vmatpush1.msra.mxu0 0.0
    %3343 = vmatprep.subr.mxu0 0.0
    %3344 = vmatpush1.msra.mxu0 0.0
    %3345 = vmatprep.subr.mxu0 0.0
    %3346 = vmatpush1.msra.mxu0 0.0
    %3347 = vmatprep.subr.mxu0 0.0
    %3348 = vmatpush1.msra.mxu0 0.0
    %3349 = vmatprep.subr.mxu0 0.0
    %3350 = vmatpush1.msra.mxu0 0.0
    %3351 = vmatprep.subr.mxu0 0.0
    %3352 = vmatpush1.msra.mxu0 0.0
    %3353 = vmatprep.subr.mxu0 0.0
    %3354 = vmatpush1.msra.mxu0 0.0
    %3355 = vmatprep.subr.mxu0 0.0
    %3356 = vmatpush1.msra.mxu0 0.0
    %3357 = vmatprep.subr.mxu0 0.0
    %3358 = vmatpush1.msra.mxu0 0.0
    %3359 = vmatprep.mubr.f32.mxu0 0.0
    %3360 = vmatmul.mubr.f32.gmra.mrb[0].mxu0 %v3293
    %v3361 = vpop.f32.mrb[0].mxu0
    %v3362 = vadd.f32 0.0, %v3361
    %v3363 = vpop.f32.mrb[0].mxu0
    %v3364 = vadd.f32 0.0, %v3363
    %3365 = vdwg.mxu0
    %3366 = vmatprep.subr.mxu0 %v2685
    %3367 = vmatpush1.msra.mxu0 %v2684
    %3368 = vmatprep.subr.mxu0 %v2689
    %3369 = vmatpush1.msra.mxu0 %v2688
    %3370 = vmatprep.subr.mxu0 %v2693
    %3371 = vmatpush1.msra.mxu0 %v2692
    %3372 = vmatprep.subr.mxu0 %v2697
    %3373 = vmatpush1.msra.mxu0 %v2696
    %3374 = vmatprep.subr.mxu0 %v2701
    %3375 = vmatpush1.msra.mxu0 %v2700
    %3376 = vmatprep.subr.mxu0 %v2705
    %3377 = vmatpush1.msra.mxu0 %v2704
    %3378 = vmatprep.subr.mxu0 %v2709
    %3379 = vmatpush1.msra.mxu0 %v2708
    %3380 = vmatprep.subr.mxu0 %v2713
    %3381 = vmatpush1.msra.mxu0 %v2712
    %3382 = vmatprep.subr.mxu0 %v2717
    %3383 = vmatpush1.msra.mxu0 %v2716
    %3384 = vmatprep.subr.mxu0 %v2721
    %3385 = vmatpush1.msra.mxu0 %v2720
    %3386 = vmatprep.subr.mxu0 %v2725
    %3387 = vmatpush1.msra.mxu0 %v2724
    %3388 = vmatprep.subr.mxu0 %v2729
    %3389 = vmatpush1.msra.mxu0 %v2728
    %3390 = vmatprep.subr.mxu0 %v2733
    %3391 = vmatpush1.msra.mxu0 %v2732
    %3392 = vmatprep.subr.mxu0 %v2737
    %3393 = vmatpush1.msra.mxu0 %v2736
    %3394 = vmatprep.subr.mxu0 %v2741
    %3395 = vmatpush1.msra.mxu0 %v2740
    %3396 = vmatprep.subr.mxu0 %v2745
    %3397 = vmatpush1.msra.mxu0 %v2744
    %3398 = vmatprep.subr.mxu0 0.0
    %3399 = vmatpush1.msra.mxu0 0.0
    %3400 = vmatprep.subr.mxu0 0.0
    %3401 = vmatpush1.msra.mxu0 0.0
    %3402 = vmatprep.subr.mxu0 0.0
    %3403 = vmatpush1.msra.mxu0 0.0
    %3404 = vmatprep.subr.mxu0 0.0
    %3405 = vmatpush1.msra.mxu0 0.0
    %3406 = vmatprep.subr.mxu0 0.0
    %3407 = vmatpush1.msra.mxu0 0.0
    %3408 = vmatprep.subr.mxu0 0.0
    %3409 = vmatpush1.msra.mxu0 0.0
    %3410 = vmatprep.subr.mxu0 0.0
    %3411 = vmatpush1.msra.mxu0 0.0
    %3412 = vmatprep.subr.mxu0 0.0
    %3413 = vmatpush1.msra.mxu0 0.0
    %3414 = vmatprep.subr.mxu0 0.0
    %3415 = vmatpush1.msra.mxu0 0.0
    %3416 = vmatprep.subr.mxu0 0.0
    %3417 = vmatpush1.msra.mxu0 0.0
    %3418 = vmatprep.subr.mxu0 0.0
    %3419 = vmatpush1.msra.mxu0 0.0
    %3420 = vmatprep.subr.mxu0 0.0
    %3421 = vmatpush1.msra.mxu0 0.0
    %3422 = vmatprep.subr.mxu0 0.0
    %3423 = vmatpush1.msra.mxu0 0.0
    %3424 = vmatprep.subr.mxu0 0.0
    %3425 = vmatpush1.msra.mxu0 0.0
    %3426 = vmatprep.subr.mxu0 0.0
    %3427 = vmatpush1.msra.mxu0 0.0
    %3428 = vmatprep.subr.mxu0 0.0
    %3429 = vmatpush1.msra.mxu0 0.0
    %3430 = vmatprep.mubr.f32.mxu0 0.0
    %3431 = vmatmul.mubr.f32.gmra.mrb[0].mxu0 %v3293
    %v3432 = vpop.f32.mrb[0].mxu0
    %v3433 = vadd.f32 0.0, %v3432
    %v3434 = vpop.f32.mrb[0].mxu0
    %v3435 = vadd.f32 0.0, %v3434
    %3436 = vdwg.mxu0
    %v3441 = vrot.slane %v3362, 2
    %v3442 = vrot.slane %v3364, 2
    %v3443 = vrot.slane %v3433, 2
    %v3444 = vrot.slane %v3435, 2
    %v3449 = vadd.f32 %v2595, %v3441
    %v3450 = vadd.f32 %v2597, %v3442
    %v3451 = vadd.f32 %v2672, %v3443
    %v3452 = vadd.f32 %v2674, %v3444
    %v3453 = vxor.u32 %v3449, 2147483648
    %v3454 = vmul.f32 %v3453, 1.442695
    %v3455 = vpow.pop %v3454
    %v3456 = vadd.f32 %v3455, 1.0
    %v3457 = vrcp.pop %v3456
    %v3458 = vmul.f32 1.0, %v3457
    %v3459 = vxor.u32 %v3450, 2147483648
    %v3460 = vmul.f32 %v3459, 1.442695
    %v3461 = vpow.pop %v3460
    %v3462 = vadd.f32 %v3461, 1.0
    %v3463 = vrcp.pop %v3462
    %v3464 = vmul.f32 1.0, %v3463
    %v3465 = vtanh.pop %v3451
    %v3466 = vxor.u32 %v3452, 2147483648
    %v3467 = vmul.f32 %v3466, 1.442695
    %v3468 = vpow.pop %v3467
    %v3469 = vadd.f32 %v3468, 1.0
    %v3470 = vrcp.pop %v3469
    %v3471 = vmul.f32 1.0, %v3470
    %v3473 = vrot.slane %v3288, 6
    %v3475 = vmul.f32 %v3464, %v3473
    %v3476 = vmul.f32 %v3458, %v3465
    %v3477 = vadd.f32 %v3475, %v3476
    %v3478 = vtanh.pop %v3477
    %v3479 = vmul.f32 %v3471, %v3478
    %3480 = vst [vmem:[#allocation3] sm:$0xc0] %v3479
    %v3482 = vrot.slane %v3479, 6
    %3484 = vmatprep.subr.mxu0 %v2683
    %3485 = vmatpush1.msra.mxu0 %v2682
    %3486 = vmatprep.subr.mxu0 %v2687
    %3487 = vmatpush1.msra.mxu0 %v2686
    %3488 = vmatprep.subr.mxu0 %v2691
    %3489 = vmatpush1.msra.mxu0 %v2690
    %3490 = vmatprep.subr.mxu0 %v2695
    %3491 = vmatpush1.msra.mxu0 %v2694
    %3492 = vmatprep.subr.mxu0 %v2699
    %3493 = vmatpush1.msra.mxu0 %v2698
    %3494 = vmatprep.subr.mxu0 %v2703
    %3495 = vmatpush1.msra.mxu0 %v2702
    %3496 = vmatprep.subr.mxu0 %v2707
    %3497 = vmatpush1.msra.mxu0 %v2706
    %3498 = vmatprep.subr.mxu0 %v2711
    %3499 = vmatpush1.msra.mxu0 %v2710
    %3500 = vmatprep.subr.mxu0 %v2715
    %3501 = vmatpush1.msra.mxu0 %v2714
    %3502 = vmatprep.subr.mxu0 %v2719
    %3503 = vmatpush1.msra.mxu0 %v2718
    %3504 = vmatprep.subr.mxu0 %v2723
    %3505 = vmatpush1.msra.mxu0 %v2722
    %3506 = vmatprep.subr.mxu0 %v2727
    %3507 = vmatpush1.msra.mxu0 %v2726
    %3508 = vmatprep.subr.mxu0 %v2731
    %3509 = vmatpush1.msra.mxu0 %v2730
    %3510 = vmatprep.subr.mxu0 %v2735
    %3511 = vmatpush1.msra.mxu0 %v2734
    %3512 = vmatprep.subr.mxu0 %v2739
    %3513 = vmatpush1.msra.mxu0 %v2738
    %3514 = vmatprep.subr.mxu0 %v2743
    %3515 = vmatpush1.msra.mxu0 %v2742
    %3516 = vmatprep.subr.mxu0 0.0
    %3517 = vmatpush1.msra.mxu0 0.0
    %3518 = vmatprep.subr.mxu0 0.0
    %3519 = vmatpush1.msra.mxu0 0.0
    %3520 = vmatprep.subr.mxu0 0.0
    %3521 = vmatpush1.msra.mxu0 0.0
    %3522 = vmatprep.subr.mxu0 0.0
    %3523 = vmatpush1.msra.mxu0 0.0
    %3524 = vmatprep.subr.mxu0 0.0
    %3525 = vmatpush1.msra.mxu0 0.0
    %3526 = vmatprep.subr.mxu0 0.0
    %3527 = vmatpush1.msra.mxu0 0.0
    %3528 = vmatprep.subr.mxu0 0.0
    %3529 = vmatpush1.msra.mxu0 0.0
    %3530 = vmatprep.subr.mxu0 0.0
    %3531 = vmatpush1.msra.mxu0 0.0
    %3532 = vmatprep.subr.mxu0 0.0
    %3533 = vmatpush1.msra.mxu0 0.0
    %3534 = vmatprep.subr.mxu0 0.0
    %3535 = vmatpush1.msra.mxu0 0.0
    %3536 = vmatprep.subr.mxu0 0.0
    %3537 = vmatpush1.msra.mxu0 0.0
    %3538 = vmatprep.subr.mxu0 0.0
    %3539 = vmatpush1.msra.mxu0 0.0
    %3540 = vmatprep.subr.mxu0 0.0
    %3541 = vmatpush1.msra.mxu0 0.0
    %3542 = vmatprep.subr.mxu0 0.0
    %3543 = vmatpush1.msra.mxu0 0.0
    %3544 = vmatprep.subr.mxu0 0.0
    %3545 = vmatpush1.msra.mxu0 0.0
    %3546 = vmatprep.subr.mxu0 0.0
    %3547 = vmatpush1.msra.mxu0 0.0
    %3548 = vmatprep.mubr.f32.mxu0 0.0
    %3549 = vmatmul.mubr.f32.gmra.mrb[0].mxu0 %v3482
    %v3550 = vpop.f32.mrb[0].mxu0
    %v3551 = vadd.f32 0.0, %v3550
    %v3552 = vpop.f32.mrb[0].mxu0
    %v3553 = vadd.f32 0.0, %v3552
    %3554 = vdwg.mxu0
    %3555 = vmatprep.subr.mxu0 %v2685
    %3556 = vmatpush1.msra.mxu0 %v2684
    %3557 = vmatprep.subr.mxu0 %v2689
    %3558 = vmatpush1.msra.mxu0 %v2688
    %3559 = vmatprep.subr.mxu0 %v2693
    %3560 = vmatpush1.msra.mxu0 %v2692
    %3561 = vmatprep.subr.mxu0 %v2697
    %3562 = vmatpush1.msra.mxu0 %v2696
    %3563 = vmatprep.subr.mxu0 %v2701
    %3564 = vmatpush1.msra.mxu0 %v2700
    %3565 = vmatprep.subr.mxu0 %v2705
    %3566 = vmatpush1.msra.mxu0 %v2704
    %3567 = vmatprep.subr.mxu0 %v2709
    %3568 = vmatpush1.msra.mxu0 %v2708
    %3569 = vmatprep.subr.mxu0 %v2713
    %3570 = vmatpush1.msra.mxu0 %v2712
    %3571 = vmatprep.subr.mxu0 %v2717
    %3572 = vmatpush1.msra.mxu0 %v2716
    %3573 = vmatprep.subr.mxu0 %v2721
    %3574 = vmatpush1.msra.mxu0 %v2720
    %3575 = vmatprep.subr.mxu0 %v2725
    %3576 = vmatpush1.msra.mxu0 %v2724
    %3577 = vmatprep.subr.mxu0 %v2729
    %3578 = vmatpush1.msra.mxu0 %v2728
    %3579 = vmatprep.subr.mxu0 %v2733
    %3580 = vmatpush1.msra.mxu0 %v2732
    %3581 = vmatprep.subr.mxu0 %v2737
    %3582 = vmatpush1.msra.mxu0 %v2736
    %3583 = vmatprep.subr.mxu0 %v2741
    %3584 = vmatpush1.msra.mxu0 %v2740
    %3585 = vmatprep.subr.mxu0 %v2745
    %3586 = vmatpush1.msra.mxu0 %v2744
    %3587 = vmatprep.subr.mxu0 0.0
    %3588 = vmatpush1.msra.mxu0 0.0
    %3589 = vmatprep.subr.mxu0 0.0
    %3590 = vmatpush1.msra.mxu0 0.0
    %3591 = vmatprep.subr.mxu0 0.0
    %3592 = vmatpush1.msra.mxu0 0.0
    %3593 = vmatprep.subr.mxu0 0.0
    %3594 = vmatpush1.msra.mxu0 0.0
    %3595 = vmatprep.subr.mxu0 0.0
    %3596 = vmatpush1.msra.mxu0 0.0
    %3597 = vmatprep.subr.mxu0 0.0
    %3598 = vmatpush1.msra.mxu0 0.0
    %3599 = vmatprep.subr.mxu0 0.0
    %3600 = vmatpush1.msra.mxu0 0.0
    %3601 = vmatprep.subr.mxu0 0.0
    %3602 = vmatpush1.msra.mxu0 0.0
    %3603 = vmatprep.subr.mxu0 0.0
    %3604 = vmatpush1.msra.mxu0 0.0
    %3605 = vmatprep.subr.mxu0 0.0
    %3606 = vmatpush1.msra.mxu0 0.0
    %3607 = vmatprep.subr.mxu0 0.0
    %3608 = vmatpush1.msra.mxu0 0.0
    %3609 = vmatprep.subr.mxu0 0.0
    %3610 = vmatpush1.msra.mxu0 0.0
    %3611 = vmatprep.subr.mxu0 0.0
    %3612 = vmatpush1.msra.mxu0 0.0
    %3613 = vmatprep.subr.mxu0 0.0
    %3614 = vmatpush1.msra.mxu0 0.0
    %3615 = vmatprep.subr.mxu0 0.0
    %3616 = vmatpush1.msra.mxu0 0.0
    %3617 = vmatprep.subr.mxu0 0.0
    %3618 = vmatpush1.msra.mxu0 0.0
    %3619 = vmatprep.mubr.f32.mxu0 0.0
    %3620 = vmatmul.mubr.f32.gmra.mrb[0].mxu0 %v3482
    %v3621 = vpop.f32.mrb[0].mxu0
    %v3622 = vadd.f32 0.0, %v3621
    %v3623 = vpop.f32.mrb[0].mxu0
    %v3624 = vadd.f32 0.0, %v3623
    %3625 = vdwg.mxu0
    %v3626 = vadd.f32 %v2601, %v3551
    %v3627 = vadd.f32 %v2603, %v3553
    %v3628 = vadd.f32 %v2678, %v3622
    %v3629 = vadd.f32 %v2680, %v3624
    %v3630 = vxor.u32 %v3626, 2147483648
    %v3631 = vmul.f32 %v3630, 1.442695
    %v3632 = vpow.pop %v3631
    %v3633 = vadd.f32 %v3632, 1.0
    %v3634 = vrcp.pop %v3633
    %v3635 = vmul.f32 1.0, %v3634
    %v3636 = vxor.u32 %v3627, 2147483648
    %v3637 = vmul.f32 %v3636, 1.442695
    %v3638 = vpow.pop %v3637
    %v3639 = vadd.f32 %v3638, 1.0
    %v3640 = vrcp.pop %v3639
    %v3641 = vmul.f32 1.0, %v3640
    %v3642 = vtanh.pop %v3628
    %v3643 = vxor.u32 %v3629, 2147483648
    %v3644 = vmul.f32 %v3643, 1.442695
    %v3645 = vpow.pop %v3644
    %v3646 = vadd.f32 %v3645, 1.0
    %v3647 = vrcp.pop %v3646
    %v3648 = vmul.f32 1.0, %v3647
    %v3650 = vrot.slane %v3477, 6
    %v3652 = vmul.f32 %v3641, %v3650
    %v3653 = vmul.f32 %v3635, %v3642
    %v3654 = vadd.f32 %v3652, %v3653
    %v3655 = vtanh.pop %v3654
    %v3656 = vmul.f32 %v3648, %v3655
    %3657 = vst [vmem:[#allocation3 + $0x8] sm:$0x3] %v3656
    %3658 = vmatprep.subr.mxu0 %v2683
    %3659 = vmatpush1.msra.mxu0 %v2682
    %3660 = vmatprep.subr.mxu0 %v2687
    %3661 = vmatpush1.msra.mxu0 %v2686
    %3662 = vmatprep.subr.mxu0 %v2691
    %3663 = vmatpush1.msra.mxu0 %v2690
    %3664 = vmatprep.subr.mxu0 %v2695
    %3665 = vmatpush1.msra.mxu0 %v2694
    %3666 = vmatprep.subr.mxu0 %v2699
    %3667 = vmatpush1.msra.mxu0 %v2698
    %3668 = vmatprep.subr.mxu0 %v2703
    %3669 = vmatpush1.msra.mxu0 %v2702
    %3670 = vmatprep.subr.mxu0 %v2707
    %3671 = vmatpush1.msra.mxu0 %v2706
    %3672 = vmatprep.subr.mxu0 %v2711
    %3673 = vmatpush1.msra.mxu0 %v2710
    %3674 = vmatprep.subr.mxu0 %v2715
    %3675 = vmatpush1.msra.mxu0 %v2714
    %3676 = vmatprep.subr.mxu0 %v2719
    %3677 = vmatpush1.msra.mxu0 %v2718
    %3678 = vmatprep.subr.mxu0 %v2723
    %3679 = vmatpush1.msra.mxu0 %v2722
    %3680 = vmatprep.subr.mxu0 %v2727
    %3681 = vmatpush1.msra.mxu0 %v2726
    %3682 = vmatprep.subr.mxu0 %v2731
    %3683 = vmatpush1.msra.mxu0 %v2730
    %3684 = vmatprep.subr.mxu0 %v2735
    %3685 = vmatpush1.msra.mxu0 %v2734
    %3686 = vmatprep.subr.mxu0 %v2739
    %3687 = vmatpush1.msra.mxu0 %v2738
    %3688 = vmatprep.subr.mxu0 %v2743
    %3689 = vmatpush1.msra.mxu0 %v2742
    %3690 = vmatprep.subr.mxu0 0.0
    %3691 = vmatpush1.msra.mxu0 0.0
    %3692 = vmatprep.subr.mxu0 0.0
    %3693 = vmatpush1.msra.mxu0 0.0
    %3694 = vmatprep.subr.mxu0 0.0
    %3695 = vmatpush1.msra.mxu0 0.0
    %3696 = vmatprep.subr.mxu0 0.0
    %3697 = vmatpush1.msra.mxu0 0.0
    %3698 = vmatprep.subr.mxu0 0.0
    %3699 = vmatpush1.msra.mxu0 0.0
    %3700 = vmatprep.subr.mxu0 0.0
    %3701 = vmatpush1.msra.mxu0 0.0
    %3702 = vmatprep.subr.mxu0 0.0
    %3703 = vmatpush1.msra.mxu0 0.0
    %3704 = vmatprep.subr.mxu0 0.0
    %3705 = vmatpush1.msra.mxu0 0.0
    %3706 = vmatprep.subr.mxu0 0.0
    %3707 = vmatpush1.msra.mxu0 0.0
    %3708 = vmatprep.subr.mxu0 0.0
    %3709 = vmatpush1.msra.mxu0 0.0
    %3710 = vmatprep.subr.mxu0 0.0
    %3711 = vmatpush1.msra.mxu0 0.0
    %3712 = vmatprep.subr.mxu0 0.0
    %3713 = vmatpush1.msra.mxu0 0.0
    %3714 = vmatprep.subr.mxu0 0.0
    %3715 = vmatpush1.msra.mxu0 0.0
    %3716 = vmatprep.subr.mxu0 0.0
    %3717 = vmatpush1.msra.mxu0 0.0
    %3718 = vmatprep.subr.mxu0 0.0
    %3719 = vmatpush1.msra.mxu0 0.0
    %3720 = vmatprep.subr.mxu0 0.0
    %3721 = vmatpush1.msra.mxu0 0.0
    %3722 = vmatprep.mubr.f32.mxu0 0.0
    %3723 = vmatmul.mubr.f32.gmra.mrb[0].mxu0 %v3656
    %v3724 = vpop.f32.mrb[0].mxu0
    %v3725 = vadd.f32 0.0, %v3724
    %v3726 = vpop.f32.mrb[0].mxu0
    %v3727 = vadd.f32 0.0, %v3726
    %3728 = vdwg.mxu0
    %3729 = vmatprep.subr.mxu0 %v2685
    %3730 = vmatpush1.msra.mxu0 %v2684
    %3731 = vmatprep.subr.mxu0 %v2689
    %3732 = vmatpush1.msra.mxu0 %v2688
    %3733 = vmatprep.subr.mxu0 %v2693
    %3734 = vmatpush1.msra.mxu0 %v2692
    %3735 = vmatprep.subr.mxu0 %v2697
    %3736 = vmatpush1.msra.mxu0 %v2696
    %3737 = vmatprep.subr.mxu0 %v2701
    %3738 = vmatpush1.msra.mxu0 %v2700
    %3739 = vmatprep.subr.mxu0 %v2705
    %3740 = vmatpush1.msra.mxu0 %v2704
    %3741 = vmatprep.subr.mxu0 %v2709
    %3742 = vmatpush1.msra.mxu0 %v2708
    %3743 = vmatprep.subr.mxu0 %v2713
    %3744 = vmatpush1.msra.mxu0 %v2712
    %3745 = vmatprep.subr.mxu0 %v2717
    %3746 = vmatpush1.msra.mxu0 %v2716
    %3747 = vmatprep.subr.mxu0 %v2721
    %3748 = vmatpush1.msra.mxu0 %v2720
    %3749 = vmatprep.subr.mxu0 %v2725
    %3750 = vmatpush1.msra.mxu0 %v2724
    %3751 = vmatprep.subr.mxu0 %v2729
    %3752 = vmatpush1.msra.mxu0 %v2728
    %3753 = vmatprep.subr.mxu0 %v2733
    %3754 = vmatpush1.msra.mxu0 %v2732
    %3755 = vmatprep.subr.mxu0 %v2737
    %3756 = vmatpush1.msra.mxu0 %v2736
    %3757 = vmatprep.subr.mxu0 %v2741
    %3758 = vmatpush1.msra.mxu0 %v2740
    %3759 = vmatprep.subr.mxu0 %v2745
    %3760 = vmatpush1.msra.mxu0 %v2744
    %3761 = vmatprep.subr.mxu0 0.0
    %3762 = vmatpush1.msra.mxu0 0.0
    %3763 = vmatprep.subr.mxu0 0.0
    %3764 = vmatpush1.msra.mxu0 0.0
    %3765 = vmatprep.subr.mxu0 0.0
    %3766 = vmatpush1.msra.mxu0 0.0
    %3767 = vmatprep.subr.mxu0 0.0
    %3768 = vmatpush1.msra.mxu0 0.0
    %3769 = vmatprep.subr.mxu0 0.0
    %3770 = vmatpush1.msra.mxu0 0.0
    %3771 = vmatprep.subr.mxu0 0.0
    %3772 = vmatpush1.msra.mxu0 0.0
    %3773 = vmatprep.subr.mxu0 0.0
    %3774 = vmatpush1.msra.mxu0 0.0
    %3775 = vmatprep.subr.mxu0 0.0
    %3776 = vmatpush1.msra.mxu0 0.0
    %3777 = vmatprep.subr.mxu0 0.0
    %3778 = vmatpush1.msra.mxu0 0.0
    %3779 = vmatprep.subr.mxu0 0.0
    %3780 = vmatpush1.msra.mxu0 0.0
    %3781 = vmatprep.subr.mxu0 0.0
    %3782 = vmatpush1.msra.mxu0 0.0
    %3783 = vmatprep.subr.mxu0 0.0
    %3784 = vmatpush1.msra.mxu0 0.0
    %3785 = vmatprep.subr.mxu0 0.0
    %3786 = vmatpush1.msra.mxu0 0.0
    %3787 = vmatprep.subr.mxu0 0.0
    %3788 = vmatpush1.msra.mxu0 0.0
    %3789 = vmatprep.subr.mxu0 0.0
    %3790 = vmatpush1.msra.mxu0 0.0
    %3791 = vmatprep.subr.mxu0 0.0
    %3792 = vmatpush1.msra.mxu0 0.0
    %3793 = vmatprep.mubr.f32.mxu0 0.0
    %3794 = vmatmul.mubr.f32.gmra.mrb[0].mxu0 %v3656
    %v3795 = vpop.f32.mrb[0].mxu0
    %v3796 = vadd.f32 0.0, %v3795
    %v3797 = vpop.f32.mrb[0].mxu0
    %v3798 = vadd.f32 0.0, %v3797
    %3799 = vdwg.mxu0
    %v3804 = vrot.slane %v3725, 6
    %v3805 = vrot.slane %v3727, 6
    %v3806 = vrot.slane %v3796, 6
    %v3807 = vrot.slane %v3798, 6
    %v3812 = vadd.f32 %v2601, %v3804
    %v3813 = vadd.f32 %v2603, %v3805
    %v3814 = vadd.f32 %v2678, %v3806
    %v3815 = vadd.f32 %v2680, %v3807
    %v3816 = vxor.u32 %v3812, 2147483648
    %v3817 = vmul.f32 %v3816, 1.442695
    %v3818 = vpow.pop %v3817
    %v3819 = vadd.f32 %v3818, 1.0
    %v3820 = vrcp.pop %v3819
    %v3821 = vmul.f32 1.0, %v3820
    %v3822 = vxor.u32 %v3813, 2147483648
    %v3823 = vmul.f32 %v3822, 1.442695
    %v3824 = vpow.pop %v3823
    %v3825 = vadd.f32 %v3824, 1.0
    %v3826 = vrcp.pop %v3825
    %v3827 = vmul.f32 1.0, %v3826
    %v3828 = vtanh.pop %v3814
    %v3829 = vxor.u32 %v3815, 2147483648
    %v3830 = vmul.f32 %v3829, 1.442695
    %v3831 = vpow.pop %v3830
    %v3832 = vadd.f32 %v3831, 1.0
    %v3833 = vrcp.pop %v3832
    %v3834 = vmul.f32 1.0, %v3833
    %v3836 = vrot.slane %v3654, 6
    %v3838 = vmul.f32 %v3827, %v3836
    %v3839 = vmul.f32 %v3821, %v3828
    %v3840 = vadd.f32 %v3838, %v3839
    %v3841 = vtanh.pop %v3840
    %v3842 = vmul.f32 %v3834, %v3841
    %3843 = vst [vmem:[#allocation3 + $0x8] sm:$0xc] %v3842
    %v3845 = vrot.slane %v3842, 2
    %3847 = vmatprep.subr.mxu0 %v2683
    %3848 = vmatpush1.msra.mxu0 %v2682
    %3849 = vmatprep.subr.mxu0 %v2687
    %3850 = vmatpush1.msra.mxu0 %v2686
    %3851 = vmatprep.subr.mxu0 %v2691
    %3852 = vmatpush1.msra.mxu0 %v2690
    %3853 = vmatprep.subr.mxu0 %v2695
    %3854 = vmatpush1.msra.mxu0 %v2694
    %3855 = vmatprep.subr.mxu0 %v2699
    %3856 = vmatpush1.msra.mxu0 %v2698
    %3857 = vmatprep.subr.mxu0 %v2703
    %3858 = vmatpush1.msra.mxu0 %v2702
    %3859 = vmatprep.subr.mxu0 %v2707
    %3860 = vmatpush1.msra.mxu0 %v2706
    %3861 = vmatprep.subr.mxu0 %v2711
    %3862 = vmatpush1.msra.mxu0 %v2710
    %3863 = vmatprep.subr.mxu0 %v2715
    %3864 = vmatpush1.msra.mxu0 %v2714
    %3865 = vmatprep.subr.mxu0 %v2719
    %3866 = vmatpush1.msra.mxu0 %v2718
    %3867 = vmatprep.subr.mxu0 %v2723
    %3868 = vmatpush1.msra.mxu0 %v2722
    %3869 = vmatprep.subr.mxu0 %v2727
    %3870 = vmatpush1.msra.mxu0 %v2726
    %3871 = vmatprep.subr.mxu0 %v2731
    %3872 = vmatpush1.msra.mxu0 %v2730
    %3873 = vmatprep.subr.mxu0 %v2735
    %3874 = vmatpush1.msra.mxu0 %v2734
    %3875 = vmatprep.subr.mxu0 %v2739
    %3876 = vmatpush1.msra.mxu0 %v2738
    %3877 = vmatprep.subr.mxu0 %v2743
    %3878 = vmatpush1.msra.mxu0 %v2742
    %3879 = vmatprep.subr.mxu0 0.0
    %3880 = vmatpush1.msra.mxu0 0.0
    %3881 = vmatprep.subr.mxu0 0.0
    %3882 = vmatpush1.msra.mxu0 0.0
    %3883 = vmatprep.subr.mxu0 0.0
    %3884 = vmatpush1.msra.mxu0 0.0
    %3885 = vmatprep.subr.mxu0 0.0
    %3886 = vmatpush1.msra.mxu0 0.0
    %3887 = vmatprep.subr.mxu0 0.0
    %3888 = vmatpush1.msra.mxu0 0.0
    %3889 = vmatprep.subr.mxu0 0.0
    %3890 = vmatpush1.msra.mxu0 0.0
    %3891 = vmatprep.subr.mxu0 0.0
    %3892 = vmatpush1.msra.mxu0 0.0
    %3893 = vmatprep.subr.mxu0 0.0
    %3894 = vmatpush1.msra.mxu0 0.0
    %3895 = vmatprep.subr.mxu0 0.0
    %3896 = vmatpush1.msra.mxu0 0.0
    %3897 = vmatprep.subr.mxu0 0.0
    %3898 = vmatpush1.msra.mxu0 0.0
    %3899 = vmatprep.subr.mxu0 0.0
    %3900 = vmatpush1.msra.mxu0 0.0
    %3901 = vmatprep.subr.mxu0 0.0
    %3902 = vmatpush1.msra.mxu0 0.0
    %3903 = vmatprep.subr.mxu0 0.0
    %3904 = vmatpush1.msra.mxu0 0.0
    %3905 = vmatprep.subr.mxu0 0.0
    %3906 = vmatpush1.msra.mxu0 0.0
    %3907 = vmatprep.subr.mxu0 0.0
    %3908 = vmatpush1.msra.mxu0 0.0
    %3909 = vmatprep.subr.mxu0 0.0
    %3910 = vmatpush1.msra.mxu0 0.0
    %3911 = vmatprep.mubr.f32.mxu0 0.0
    %3912 = vmatmul.mubr.f32.gmra.mrb[0].mxu0 %v3845
    %v3913 = vpop.f32.mrb[0].mxu0
    %v3914 = vadd.f32 0.0, %v3913
    %v3915 = vpop.f32.mrb[0].mxu0
    %v3916 = vadd.f32 0.0, %v3915
    %3917 = vdwg.mxu0
    %3918 = vmatprep.subr.mxu0 %v2685
    %3919 = vmatpush1.msra.mxu0 %v2684
    %3920 = vmatprep.subr.mxu0 %v2689
    %3921 = vmatpush1.msra.mxu0 %v2688
    %3922 = vmatprep.subr.mxu0 %v2693
    %3923 = vmatpush1.msra.mxu0 %v2692
    %3924 = vmatprep.subr.mxu0 %v2697
    %3925 = vmatpush1.msra.mxu0 %v2696
    %3926 = vmatprep.subr.mxu0 %v2701
    %3927 = vmatpush1.msra.mxu0 %v2700
    %3928 = vmatprep.subr.mxu0 %v2705
    %3929 = vmatpush1.msra.mxu0 %v2704
    %3930 = vmatprep.subr.mxu0 %v2709
    %3931 = vmatpush1.msra.mxu0 %v2708
    %3932 = vmatprep.subr.mxu0 %v2713
    %3933 = vmatpush1.msra.mxu0 %v2712
    %3934 = vmatprep.subr.mxu0 %v2717
    %3935 = vmatpush1.msra.mxu0 %v2716
    %3936 = vmatprep.subr.mxu0 %v2721
    %3937 = vmatpush1.msra.mxu0 %v2720
    %3938 = vmatprep.subr.mxu0 %v2725
    %3939 = vmatpush1.msra.mxu0 %v2724
    %3940 = vmatprep.subr.mxu0 %v2729
    %3941 = vmatpush1.msra.mxu0 %v2728
    %3942 = vmatprep.subr.mxu0 %v2733
    %3943 = vmatpush1.msra.mxu0 %v2732
    %3944 = vmatprep.subr.mxu0 %v2737
    %3945 = vmatpush1.msra.mxu0 %v2736
    %3946 = vmatprep.subr.mxu0 %v2741
    %3947 = vmatpush1.msra.mxu0 %v2740
    %3948 = vmatprep.subr.mxu0 %v2745
    %3949 = vmatpush1.msra.mxu0 %v2744
    %3950 = vmatprep.subr.mxu0 0.0
    %3951 = vmatpush1.msra.mxu0 0.0
    %3952 = vmatprep.subr.mxu0 0.0
    %3953 = vmatpush1.msra.mxu0 0.0
    %3954 = vmatprep.subr.mxu0 0.0
    %3955 = vmatpush1.msra.mxu0 0.0
    %3956 = vmatprep.subr.mxu0 0.0
    %3957 = vmatpush1.msra.mxu0 0.0
    %3958 = vmatprep.subr.mxu0 0.0
    %3959 = vmatpush1.msra.mxu0 0.0
    %3960 = vmatprep.subr.mxu0 0.0
    %3961 = vmatpush1.msra.mxu0 0.0
    %3962 = vmatprep.subr.mxu0 0.0
    %3963 = vmatpush1.msra.mxu0 0.0
    %3964 = vmatprep.subr.mxu0 0.0
    %3965 = vmatpush1.msra.mxu0 0.0
    %3966 = vmatprep.subr.mxu0 0.0
    %3967 = vmatpush1.msra.mxu0 0.0
    %3968 = vmatprep.subr.mxu0 0.0
    %3969 = vmatpush1.msra.mxu0 0.0
    %3970 = vmatprep.subr.mxu0 0.0
    %3971 = vmatpush1.msra.mxu0 0.0
    %3972 = vmatprep.subr.mxu0 0.0
    %3973 = vmatpush1.msra.mxu0 0.0
    %3974 = vmatprep.subr.mxu0 0.0
    %3975 = vmatpush1.msra.mxu0 0.0
    %3976 = vmatprep.subr.mxu0 0.0
    %3977 = vmatpush1.msra.mxu0 0.0
    %3978 = vmatprep.subr.mxu0 0.0
    %3979 = vmatpush1.msra.mxu0 0.0
    %3980 = vmatprep.subr.mxu0 0.0
    %3981 = vmatpush1.msra.mxu0 0.0
    %3982 = vmatprep.mubr.f32.mxu0 0.0
    %3983 = vmatmul.mubr.f32.gmra.mrb[0].mxu0 %v3845
    %v3984 = vpop.f32.mrb[0].mxu0
    %v3985 = vadd.f32 0.0, %v3984
    %v3986 = vpop.f32.mrb[0].mxu0
    %v3987 = vadd.f32 0.0, %v3986
    %3988 = vdwg.mxu0
    %v3993 = vrot.slane %v3914, 4
    %v3994 = vrot.slane %v3916, 4
    %v3995 = vrot.slane %v3985, 4
    %v3996 = vrot.slane %v3987, 4
    %v4001 = vadd.f32 %v2601, %v3993
    %v4002 = vadd.f32 %v2603, %v3994
    %v4003 = vadd.f32 %v2678, %v3995
    %v4004 = vadd.f32 %v2680, %v3996
    %v4005 = vxor.u32 %v4001, 2147483648
    %v4006 = vmul.f32 %v4005, 1.442695
    %v4007 = vpow.pop %v4006
    %v4008 = vadd.f32 %v4007, 1.0
    %v4009 = vrcp.pop %v4008
    %v4010 = vmul.f32 1.0, %v4009
    %v4011 = vxor.u32 %v4002, 2147483648
    %v4012 = vmul.f32 %v4011, 1.442695
    %v4013 = vpow.pop %v4012
    %v4014 = vadd.f32 %v4013, 1.0
    %v4015 = vrcp.pop %v4014
    %v4016 = vmul.f32 1.0, %v4015
    %v4017 = vtanh.pop %v4003
    %v4018 = vxor.u32 %v4004, 2147483648
    %v4019 = vmul.f32 %v4018, 1.442695
    %v4020 = vpow.pop %v4019
    %v4021 = vadd.f32 %v4020, 1.0
    %v4022 = vrcp.pop %v4021
    %v4023 = vmul.f32 1.0, %v4022
    %v4025 = vrot.slane %v3840, 6
    %v4027 = vmul.f32 %v4016, %v4025
    %v4028 = vmul.f32 %v4010, %v4017
    %v4029 = vadd.f32 %v4027, %v4028
    %v4030 = vtanh.pop %v4029
    %v4031 = vmul.f32 %v4023, %v4030
    %4032 = vst [vmem:[#allocation3 + $0x8] sm:$0x30] %v4031
    %v4034 = vrot.slane %v4031, 4
    %4036 = vmatprep.subr.mxu0 %v2683
    %4037 = vmatpush1.msra.mxu0 %v2682
    %4038 = vmatprep.subr.mxu0 %v2687
    %4039 = vmatpush1.msra.mxu0 %v2686
    %4040 = vmatprep.subr.mxu0 %v2691
    %4041 = vmatpush1.msra.mxu0 %v2690
    %4042 = vmatprep.subr.mxu0 %v2695
    %4043 = vmatpush1.msra.mxu0 %v2694
    %4044 = vmatprep.subr.mxu0 %v2699
    %4045 = vmatpush1.msra.mxu0 %v2698
    %4046 = vmatprep.subr.mxu0 %v2703
    %4047 = vmatpush1.msra.mxu0 %v2702
    %4048 = vmatprep.subr.mxu0 %v2707
    %4049 = vmatpush1.msra.mxu0 %v2706
    %4050 = vmatprep.subr.mxu0 %v2711
    %4051 = vmatpush1.msra.mxu0 %v2710
    %4052 = vmatprep.subr.mxu0 %v2715
    %4053 = vmatpush1.msra.mxu0 %v2714
    %4054 = vmatprep.subr.mxu0 %v2719
    %4055 = vmatpush1.msra.mxu0 %v2718
    %4056 = vmatprep.subr.mxu0 %v2723
    %4057 = vmatpush1.msra.mxu0 %v2722
    %4058 = vmatprep.subr.mxu0 %v2727
    %4059 = vmatpush1.msra.mxu0 %v2726
    %4060 = vmatprep.subr.mxu0 %v2731
    %4061 = vmatpush1.msra.mxu0 %v2730
    %4062 = vmatprep.subr.mxu0 %v2735
    %4063 = vmatpush1.msra.mxu0 %v2734
    %4064 = vmatprep.subr.mxu0 %v2739
    %4065 = vmatpush1.msra.mxu0 %v2738
    %4066 = vmatprep.subr.mxu0 %v2743
    %4067 = vmatpush1.msra.mxu0 %v2742
    %4068 = vmatprep.subr.mxu0 0.0
    %4069 = vmatpush1.msra.mxu0 0.0
    %4070 = vmatprep.subr.mxu0 0.0
    %4071 = vmatpush1.msra.mxu0 0.0
    %4072 = vmatprep.subr.mxu0 0.0
    %4073 = vmatpush1.msra.mxu0 0.0
    %4074 = vmatprep.subr.mxu0 0.0
    %4075 = vmatpush1.msra.mxu0 0.0
    %4076 = vmatprep.subr.mxu0 0.0
    %4077 = vmatpush1.msra.mxu0 0.0
    %4078 = vmatprep.subr.mxu0 0.0
    %4079 = vmatpush1.msra.mxu0 0.0
    %4080 = vmatprep.subr.mxu0 0.0
    %4081 = vmatpush1.msra.mxu0 0.0
    %4082 = vmatprep.subr.mxu0 0.0
    %4083 = vmatpush1.msra.mxu0 0.0
    %4084 = vmatprep.subr.mxu0 0.0
    %4085 = vmatpush1.msra.mxu0 0.0
    %4086 = vmatprep.subr.mxu0 0.0
    %4087 = vmatpush1.msra.mxu0 0.0
    %4088 = vmatprep.subr.mxu0 0.0
    %4089 = vmatpush1.msra.mxu0 0.0
    %4090 = vmatprep.subr.mxu0 0.0
    %4091 = vmatpush1.msra.mxu0 0.0
    %4092 = vmatprep.subr.mxu0 0.0
    %4093 = vmatpush1.msra.mxu0 0.0
    %4094 = vmatprep.subr.mxu0 0.0
    %4095 = vmatpush1.msra.mxu0 0.0
    %4096 = vmatprep.subr.mxu0 0.0
    %4097 = vmatpush1.msra.mxu0 0.0
    %4098 = vmatprep.subr.mxu0 0.0
    %4099 = vmatpush1.msra.mxu0 0.0
    %4100 = vmatprep.mubr.f32.mxu0 0.0
    %4101 = vmatmul.mubr.f32.gmra.mrb[0].mxu0 %v4034
    %v4102 = vpop.f32.mrb[0].mxu0
    %v4103 = vadd.f32 0.0, %v4102
    %v4104 = vpop.f32.mrb[0].mxu0
    %v4105 = vadd.f32 0.0, %v4104
    %4106 = vdwg.mxu0
    %4107 = vmatprep.subr.mxu0 %v2685
    %4108 = vmatpush1.msra.mxu0 %v2684
    %4109 = vmatprep.subr.mxu0 %v2689
    %4110 = vmatpush1.msra.mxu0 %v2688
    %4111 = vmatprep.subr.mxu0 %v2693
    %4112 = vmatpush1.msra.mxu0 %v2692
    %4113 = vmatprep.subr.mxu0 %v2697
    %4114 = vmatpush1.msra.mxu0 %v2696
    %4115 = vmatprep.subr.mxu0 %v2701
    %4116 = vmatpush1.msra.mxu0 %v2700
    %4117 = vmatprep.subr.mxu0 %v2705
    %4118 = vmatpush1.msra.mxu0 %v2704
    %4119 = vmatprep.subr.mxu0 %v2709
    %4120 = vmatpush1.msra.mxu0 %v2708
    %4121 = vmatprep.subr.mxu0 %v2713
    %4122 = vmatpush1.msra.mxu0 %v2712
    %4123 = vmatprep.subr.mxu0 %v2717
    %4124 = vmatpush1.msra.mxu0 %v2716
    %4125 = vmatprep.subr.mxu0 %v2721
    %4126 = vmatpush1.msra.mxu0 %v2720
    %4127 = vmatprep.subr.mxu0 %v2725
    %4128 = vmatpush1.msra.mxu0 %v2724
    %4129 = vmatprep.subr.mxu0 %v2729
    %4130 = vmatpush1.msra.mxu0 %v2728
    %4131 = vmatprep.subr.mxu0 %v2733
    %4132 = vmatpush1.msra.mxu0 %v2732
    %4133 = vmatprep.subr.mxu0 %v2737
    %4134 = vmatpush1.msra.mxu0 %v2736
    %4135 = vmatprep.subr.mxu0 %v2741
    %4136 = vmatpush1.msra.mxu0 %v2740
    %4137 = vmatprep.subr.mxu0 %v2745
    %4138 = vmatpush1.msra.mxu0 %v2744
    %4139 = vmatprep.subr.mxu0 0.0
    %4140 = vmatpush1.msra.mxu0 0.0
    %4141 = vmatprep.subr.mxu0 0.0
    %4142 = vmatpush1.msra.mxu0 0.0
    %4143 = vmatprep.subr.mxu0 0.0
    %4144 = vmatpush1.msra.mxu0 0.0
    %4145 = vmatprep.subr.mxu0 0.0
    %4146 = vmatpush1.msra.mxu0 0.0
    %4147 = vmatprep.subr.mxu0 0.0
    %4148 = vmatpush1.msra.mxu0 0.0
    %4149 = vmatprep.subr.mxu0 0.0
    %4150 = vmatpush1.msra.mxu0 0.0
    %4151 = vmatprep.subr.mxu0 0.0
    %4152 = vmatpush1.msra.mxu0 0.0
    %4153 = vmatprep.subr.mxu0 0.0
    %4154 = vmatpush1.msra.mxu0 0.0
    %4155 = vmatprep.subr.mxu0 0.0
    %4156 = vmatpush1.msra.mxu0 0.0
    %4157 = vmatprep.subr.mxu0 0.0
    %4158 = vmatpush1.msra.mxu0 0.0
    %4159 = vmatprep.subr.mxu0 0.0
    %4160 = vmatpush1.msra.mxu0 0.0
    %4161 = vmatprep.subr.mxu0 0.0
    %4162 = vmatpush1.msra.mxu0 0.0
    %4163 = vmatprep.subr.mxu0 0.0
    %4164 = vmatpush1.msra.mxu0 0.0
    %4165 = vmatprep.subr.mxu0 0.0
    %4166 = vmatpush1.msra.mxu0 0.0
    %4167 = vmatprep.subr.mxu0 0.0
    %4168 = vmatpush1.msra.mxu0 0.0
    %4169 = vmatprep.subr.mxu0 0.0
    %4170 = vmatpush1.msra.mxu0 0.0
    %4171 = vmatprep.mubr.f32.mxu0 0.0
    %4172 = vmatmul.mubr.f32.gmra.mrb[0].mxu0 %v4034
    %v4173 = vpop.f32.mrb[0].mxu0
    %v4174 = vadd.f32 0.0, %v4173
    %v4175 = vpop.f32.mrb[0].mxu0
    %v4176 = vadd.f32 0.0, %v4175
    %4177 = vdwg.mxu0
    %v4182 = vrot.slane %v4103, 2
    %v4183 = vrot.slane %v4105, 2
    %v4184 = vrot.slane %v4174, 2
    %v4185 = vrot.slane %v4176, 2
    %v4190 = vadd.f32 %v2601, %v4182
    %v4191 = vadd.f32 %v2603, %v4183
    %v4192 = vadd.f32 %v2678, %v4184
    %v4193 = vadd.f32 %v2680, %v4185
    %v4194 = vxor.u32 %v4190, 2147483648
    %v4195 = vmul.f32 %v4194, 1.442695
    %v4196 = vpow.pop %v4195
    %v4197 = vadd.f32 %v4196, 1.0
    %v4198 = vrcp.pop %v4197
    %v4199 = vmul.f32 1.0, %v4198
    %v4200 = vxor.u32 %v4191, 2147483648
    %v4201 = vmul.f32 %v4200, 1.442695
    %v4202 = vpow.pop %v4201
    %v4203 = vadd.f32 %v4202, 1.0
    %v4204 = vrcp.pop %v4203
    %v4205 = vmul.f32 1.0, %v4204
    %v4206 = vtanh.pop %v4192
    %v4207 = vxor.u32 %v4193, 2147483648
    %v4208 = vmul.f32 %v4207, 1.442695
    %v4209 = vpow.pop %v4208
    %v4210 = vadd.f32 %v4209, 1.0
    %v4211 = vrcp.pop %v4210
    %v4212 = vmul.f32 1.0, %v4211
    %v4214 = vrot.slane %v4029, 6
    %v4216 = vmul.f32 %v4205, %v4214
    %v4217 = vmul.f32 %v4199, %v4206
    %v4218 = vadd.f32 %v4216, %v4217
    %v4219 = vtanh.pop %v4218
    %v4220 = vmul.f32 %v4212, %v4219
    %4221 = vst [vmem:[#allocation3 + $0x8] sm:$0xc0] %v4220
    %v4222 = vld [vmem:[#allocation3] sm:$0xff]
    %v4223 = vld [vmem:[#allocation3 + $0x8] sm:$0xff]
    %v4224 = vld [vmem:[#allocation16] sm:$0xff]
    %v4225 = vld [vmem:[#allocation16 + $0x8] sm:$0xff]
    %v4226 = vld [vmem:[#allocation16 + $0x10] sm:$0xff]
    %v4227 = vld [vmem:[#allocation16 + $0x18] sm:$0xff]
    %v4228 = vld [vmem:[#allocation16 + $0x20] sm:$0xff]
    %v4229 = vld [vmem:[#allocation16 + $0x28] sm:$0xff]
    %v4230 = vld [vmem:[#allocation16 + $0x30] sm:$0xff]
    %v4231 = vld [vmem:[#allocation16 + $0x38] sm:$0xff]
    %v4232 = vld [vmem:[#allocation16 + $0x40] sm:$0xff]
    %v4233 = vld [vmem:[#allocation16 + $0x48] sm:$0xff]
    %v4234 = vld [vmem:[#allocation16 + $0x50] sm:$0xff]
    %v4235 = vld [vmem:[#allocation16 + $0x58] sm:$0xff]
    %v4236 = vld [vmem:[#allocation16 + $0x60] sm:$0xff]
    %v4237 = vld [vmem:[#allocation16 + $0x68] sm:$0xff]
    %v4238 = vld [vmem:[#allocation16 + $0x70] sm:$0xff]
    %v4239 = vld [vmem:[#allocation16 + $0x78] sm:$0xff]
    %v4240 = vld [vmem:[%s13] sm:$0x1]
    %v4242 = vlaneseq
    %v4243 = vshrl.u32 %v4242, 7
    %v4244 = vsub.s32 0, %v4243
    %v4245 = vrot.slane %v4240, %v4244
    %4247 = vmatprep.subr.mxu0 0.0
    %4248 = vmatpush1.msra.mxu0 %v4224
    %4249 = vmatprep.subr.mxu0 0.0
    %4250 = vmatpush1.msra.mxu0 %v4225
    %4251 = vmatprep.subr.mxu0 0.0
    %4252 = vmatpush1.msra.mxu0 %v4226
    %4253 = vmatprep.subr.mxu0 0.0
    %4254 = vmatpush1.msra.mxu0 %v4227
    %4255 = vmatprep.subr.mxu0 0.0
    %4256 = vmatpush1.msra.mxu0 %v4228
    %4257 = vmatprep.subr.mxu0 0.0
    %4258 = vmatpush1.msra.mxu0 %v4229
    %4259 = vmatprep.subr.mxu0 0.0
    %4260 = vmatpush1.msra.mxu0 %v4230
    %4261 = vmatprep.subr.mxu0 0.0
    %4262 = vmatpush1.msra.mxu0 %v4231
    %4263 = vmatprep.subr.mxu0 0.0
    %4264 = vmatpush1.msra.mxu0 %v4232
    %4265 = vmatprep.subr.mxu0 0.0
    %4266 = vmatpush1.msra.mxu0 %v4233
    %4267 = vmatprep.subr.mxu0 0.0
    %4268 = vmatpush1.msra.mxu0 %v4234
    %4269 = vmatprep.subr.mxu0 0.0
    %4270 = vmatpush1.msra.mxu0 %v4235
    %4271 = vmatprep.subr.mxu0 0.0
    %4272 = vmatpush1.msra.mxu0 %v4236
    %4273 = vmatprep.subr.mxu0 0.0
    %4274 = vmatpush1.msra.mxu0 %v4237
    %4275 = vmatprep.subr.mxu0 0.0
    %4276 = vmatpush1.msra.mxu0 %v4238
    %4277 = vmatprep.subr.mxu0 0.0
    %4278 = vmatpush1.msra.mxu0 %v4239
    %4279 = vmatprep.subr.mxu0 0.0
    %4280 = vmatpush1.msra.mxu0 0.0
    %4281 = vmatprep.subr.mxu0 0.0
    %4282 = vmatpush1.msra.mxu0 0.0
    %4283 = vmatprep.subr.mxu0 0.0
    %4284 = vmatpush1.msra.mxu0 0.0
    %4285 = vmatprep.subr.mxu0 0.0
    %4286 = vmatpush1.msra.mxu0 0.0
    %4287 = vmatprep.subr.mxu0 0.0
    %4288 = vmatpush1.msra.mxu0 0.0
    %4289 = vmatprep.subr.mxu0 0.0
    %4290 = vmatpush1.msra.mxu0 0.0
    %4291 = vmatprep.subr.mxu0 0.0
    %4292 = vmatpush1.msra.mxu0 0.0
    %4293 = vmatprep.subr.mxu0 0.0
    %4294 = vmatpush1.msra.mxu0 0.0
    %4295 = vmatprep.subr.mxu0 0.0
    %4296 = vmatpush1.msra.mxu0 0.0
    %4297 = vmatprep.subr.mxu0 0.0
    %4298 = vmatpush1.msra.mxu0 0.0
    %4299 = vmatprep.subr.mxu0 0.0
    %4300 = vmatpush1.msra.mxu0 0.0
    %4301 = vmatprep.subr.mxu0 0.0
    %4302 = vmatpush1.msra.mxu0 0.0
    %4303 = vmatprep.subr.mxu0 0.0
    %4304 = vmatpush1.msra.mxu0 0.0
    %4305 = vmatprep.subr.mxu0 0.0
    %4306 = vmatpush1.msra.mxu0 0.0
    %4307 = vmatprep.subr.mxu0 0.0
    %4308 = vmatpush1.msra.mxu0 0.0
    %4309 = vmatprep.subr.mxu0 0.0
    %4310 = vmatpush1.msra.mxu0 0.0
    %4311 = vmatprep.mubr.f32.mxu0 0.0
    %4312 = vmatmul.mubr.f32.gmra.mrb[0].mxu0 %v4222
    %v4313 = vpop.f32.mrb[0].mxu0
    %v4314 = vadd.f32 %v4245, %v4313
    %v4315 = vpop.f32.mrb[0].mxu0
    %4316 = vmatprep.mubr.f32.mxu0 0.0
    %4317 = vmatmul.mubr.f32.gmra.mrb[0].mxu0 %v4223
    %v4318 = vpop.f32.mrb[0].mxu0
    %v4319 = vadd.f32 %v4245, %v4318
    %v4320 = vpop.f32.mrb[0].mxu0
    %4321 = vdwg.mxu0
    %4322 = vst [vmem:[#allocation18] sm:$0xff] %v4314
    %4323 = vst [vmem:[#allocation18 + $0x8] sm:$0x1f] %v4319
    %4324 = vst [vmem:[#allocation18 + $0x7] sm:$0x40] %v4319
    // Predicated region
    $region90: #{tpu_custom_call.1} parent=1 // pred_check
      _
    $region91: #{tpu_custom_call.1} parent=1 // pred_check_branch
      %4326 = sbr.rel (0) target = $region93
    $region92: #{tpu_custom_call.1} parent=1 // pred_region
      %s4328 = ssub.s32 256, 256
      %4329 = vsyncadd [#allocation6], %s4328
      %s4330 = sshll.u32 [#allocation18], 4
      %s4331 = int_to_ptr.vmem [resolvable:$true] %s4330
      %4336 = dma.vmem_to_hbm [thread:$0]  %s4331, 256, %s14, [#allocation6], 128, 128, 8
    $region93: #{tpu_custom_call.1} parent=1 // pred_fallthru
      _
    // Predicated region
    $region94: #{tpu_custom_call.1} parent=1 // pred_check
      _
    $region95: #{tpu_custom_call.1} parent=1 // pred_check_branch
      %4338 = sbr.rel (0) target = $region97
    $region96: #{tpu_custom_call.1} parent=1 // pred_region
      %4339 = dma.done [#allocation6], 256
    $region97: #{tpu_custom_call.1} parent=1 // pred_fallthru
      _
    %4340 = vsyncpa [#allocation5], 1
    %4341 = vsyncpa [#allocation8], 1
    %4342 = vsyncpa [#allocation11], 1
    %4343 = vsyncpa [#allocation14], 1
    %4344 = vsyncpa [#allocation17], 1
    %4345 = vsyncpa [#allocation6], 1

</llo_original>
